<compile_context>
chip_gen: v6e
topology: v6e:2x2x1
jax: 0.10.0
libtpu: 0.0.40
codegen_flags: <defaults>
</compile_context>

<pallas_src>
import functools

import jax
import jax.numpy as jnp
from jax import lax
from jax.experimental import pallas as pl
from jax.experimental.pallas import tpu as pltpu

BN_EPS = 1e-5
LN_EPS = 1e-5
SSM_CHUNK = 8          # rows per SSM chunk (static inner unroll); must divide TILE_N
DEFAULT_TILE_N = 256   # per-generation tuning: ~256 (v6e), ~128 (v7x, 64 MiB VMEM), ~64 (v5e)
TAIL_ROWS = 8          # sublane-aligned carry for the causal depthwise conv (only last K-1 used)


# ----------------------------------------------------------------------------
# Fused per-stage kernel: conv1x1 + BN + ReLU + Mamba3D block + mask + max-pool
# Grid: (batch, N tiles).  SSM state / conv tail / pool carried across N tiles.
# ----------------------------------------------------------------------------
def _stage_kernel(x_ref,
                  w_ref, b_ref, g_ref, be_ref, m_ref, v_ref,
                  winx_ref, binx_ref, winz_ref, binz_ref,
                  wc_ref, bcv_ref, a_ref, dpar_ref,
                  wbc_ref, wo_ref, bo_ref, lng_ref, lnb_ref,
                  conv_ref, bn_ref, out_ref, mask_ref, pool_ref,
                  z_scr, bc_scr, y_scr, h_scr, tail_scr,
                  *, chunk):
    nt = pl.program_id(1)
    tile = x_ref.shape[1]
    cin = w_ref.shape[0]
    cout = w_ref.shape[1]
    d_inner = dpar_ref.shape[1]
    d_state = a_ref.shape[0]
    K = wc_ref.shape[0]
    nchunks = tile // chunk

    # ---- reset carried state at the start of each batch item -----------------
    @pl.when(nt == 0)
    def _():
        h_scr[...] = jnp.zeros_like(h_scr)
        tail_scr[...] = jnp.zeros_like(tail_scr)

    x = x_ref[0]                                            # (tile, Cin)

    # ---- 1x1 conv ------------------------------------------------------------
    if cin <= 8:
        # Cin is tiny (3): MXU would be ~2% utilized -> broadcast MACs on the VPU (f32).
        yconv = jnp.zeros((tile, cout), jnp.float32)
        for k in range(cin):
            yconv = yconv + x[:, k:k + 1] * w_ref[k:k + 1, :]
        yconv = yconv + b_ref[...]
    else:
        # bf16 MXU matmul, f32 accumulation.
        yconv = jnp.dot(x.astype(w_ref.dtype), w_ref[...],
                        preferred_element_type=jnp.float32) + b_ref[...]
    conv_ref[0] = yconv                                     # A*_x (returned, f32)

    # ---- BatchNorm (eval mode) + ReLU -----------------------------------------
    inv = g_ref[...] * lax.rsqrt(v_ref[...] + BN_EPS)
    bn = (yconv - m_ref[...]) * inv + be_ref[...]
    bn_ref[0] = bn                                          # bn*_x (returned, f32)
    relu = jnp.maximum(bn, 0.0)                             # Mamba input / residual (stays on-chip)
    relu_b = relu.astype(jnp.bfloat16)

    # ---- Mamba3D block ---------------------------------------------------------
    # in_proj split into x / z matmuls (bf16 MXU, f32 accumulate); z is stashed raw.
    xp = jnp.dot(relu_b, winx_ref[...], preferred_element_type=jnp.float32) + binx_ref[...]
    z_scr[...] = (jnp.dot(relu_b, winz_ref[...], preferred_element_type=jnp.float32)
                  + binz_ref[...])

    # causal depthwise conv over the point axis with a cross-tile tail carry:
    # out[n] = sum_j wc[K-1-j] * xp_global[n-j]   (zero for global n-j < 0)
    wc = wc_ref[...]                                        # (K, d_inner)
    tail = tail_scr[...]                                    # (8, d_inner): last rows of prev tile
    xp_ext = jnp.concatenate([tail, xp], axis=0)            # (tile+8, d_inner)
    acc = xp * wc[K - 1:K, :]
    for j in range(1, K):                                   # K-1 static shifts (XLU rolls)
        shifted = pltpu.roll(xp_ext, shift=j, axis=0)       # shifted[m] = xp_ext[m-j]
        acc = acc + shifted[TAIL_ROWS:TAIL_ROWS + tile, :] * wc[K - 1 - j:K - j, :]
    acc = acc + bcv_ref[...]
    xc = acc * jax.nn.sigmoid(acc)                          # SiLU, (tile, d_inner)
    tail_scr[...] = xp[tile - TAIL_ROWS:tile, :]            # carry tail for the next N-tile

    # fused [B | C] projection (bf16 MXU).
    bc_scr[...] = jnp.dot(xc.astype(jnp.bfloat16), wbc_ref[...],
                          preferred_element_type=jnp.float32)     # (tile, 2*d_state)

    aneg = -jnp.exp(a_ref[...])                             # (d_state, d_inner)

    # ---- streamed SSM scan: only h (d_state, d_inner) is carried ---------------
    @pl.loop(0, nchunks)
    def _(ci):
        base = pl.multiple_of(ci * chunk, chunk)
        dlt = jax.nn.sigmoid(z_scr[pl.ds(base, chunk), :])  # deferred sigmoid (EUP filler)
        # one lane->sublane move per chunk for the B/C rows (not per step).
        bc3 = bc_scr[pl.ds(base, chunk), :][:, :, None]     # (chunk, 2*d_state, 1)
        h = h_scr[...]
        rows = []
        for j in range(chunk):                              # static unroll inside the chunk
            b_col = bc3[j, 0:d_state, :]                    # (d_state, 1)
            c_col = bc3[j, d_state:2 * d_state, :]          # (d_state, 1)
            h = aneg * h + b_col * dlt[j:j + 1, :]          # rank-1 update, no dB tensor
            rows.append(jnp.sum(c_col * h, axis=0, keepdims=True))   # C.h on the XLU
        h_scr[...] = h
        y_scr[pl.ds(base, chunk), :] = jnp.concatenate(rows, axis=0)

    yssm = y_scr[...] + dpar_ref[...] * xc                  # (tile, d_inner)

    # out_proj + residual + LayerNorm
    out = jnp.dot(yssm.astype(jnp.bfloat16), wo_ref[...],
                  preferred_element_type=jnp.float32) + bo_ref[...]
    v = out + relu
    mu = jnp.mean(v, axis=1, keepdims=True)
    var = jnp.mean((v - mu) ** 2, axis=1, keepdims=True)
    normed = (v - mu) * lax.rsqrt(var + LN_EPS) * lng_ref[...] + lnb_ref[...]

    out_ref[0] = normed.astype(out_ref.dtype)               # stage output (bf16, feeds next stage)
    mask_ref[0] = (normed > 0).astype(jnp.float32)          # M* (returned, f32)

    # running max-pool over points (resident output block across the N axis).
    tile_max = jnp.max(normed, axis=0, keepdims=True)       # (1, cout)

    @pl.when(nt == 0)
    def _():
        pool_ref[0] = tile_max

    @pl.when(nt > 0)
    def _():
        pool_ref[0] = jnp.maximum(pool_ref[0], tile_max)


def fused_stage(x, mlp_p, mamba_p, *, tile_n=DEFAULT_TILE_N, chunk=SSM_CHUNK):
    B, N, cin = x.shape
    cout = mlp_p["W"].shape[1]
    d_inner = mamba_p["D"].shape[1]
    d_state = mamba_p["A_T"].shape[0]

    tile_n = min(tile_n, N)
    assert N % tile_n == 0, "number of points must be a multiple of tile_n"
    assert tile_n % chunk == 0 and tile_n >= TAIL_ROWS
    n_tiles = N // tile_n

    # bf16 MXU operands (accumulation stays f32 inside the kernel).
    w = mlp_p["W"].astype(jnp.bfloat16) if cin > 8 else mlp_p["W"]
    win = mamba_p["Win"]
    winx = win[:, :d_inner].astype(jnp.bfloat16)
    winz = win[:, d_inner:].astype(jnp.bfloat16)
    binx = mamba_p["bin"][:, :d_inner]
    binz = mamba_p["bin"][:, d_inner:]
    wbc = mamba_p["Wbc"].astype(jnp.bfloat16)
    wo = mamba_p["Wout"].astype(jnp.bfloat16)

    def full(a):
        nd = a.ndim
        return pl.BlockSpec(a.shape, lambda b, n, _nd=nd: (0,) * _nd)

    def act(c):
        return pl.BlockSpec((1, tile_n, c), lambda b, n: (b, n, 0))

    out_shape = (
        jax.ShapeDtypeStruct((B, N, cout), jnp.float32),    # A*_x
        jax.ShapeDtypeStruct((B, N, cout), jnp.float32),    # bn*_x
        jax.ShapeDtypeStruct((B, N, cout), jnp.bfloat16),   # stage output (inter-stage only)
        jax.ShapeDtypeStruct((B, N, cout), jnp.float32),    # mask M*
        jax.ShapeDtypeStruct((B, 1, cout), jnp.float32),    # max-pool over points
    )
    out_specs = (act(cout), act(cout), act(cout), act(cout),
                 pl.BlockSpec((1, 1, cout), lambda b, n: (b, 0, 0)))

    args = (x,
            w, mlp_p["b"], mlp_p["gamma"], mlp_p["beta"], mlp_p["mean"], mlp_p["var"],
            winx, binx, winz, binz,
            mamba_p["Wconv"], mamba_p["bconv"], mamba_p["A_T"], mamba_p["D"],
            wbc, wo, mamba_p["bout"], mamba_p["ln_g"], mamba_p["ln_b"])
    in_specs = [act(cin)] + [full(a) for a in args[1:]]

    kernel = functools.partial(_stage_kernel, chunk=chunk)
    return pl.pallas_call(
        kernel,
        out_shape=out_shape,
        grid=(B, n_tiles),
        in_specs=in_specs,
        out_specs=out_specs,
        scratch_shapes=[
            pltpu.VMEM((tile_n, d_inner), jnp.float32),       # raw z (delta before sigmoid)
            pltpu.VMEM((tile_n, 2 * d_state), jnp.float32),   # fused [B | C]
            pltpu.VMEM((tile_n, d_inner), jnp.float32),       # SSM output y
            pltpu.VMEM((d_state, d_inner), jnp.float32),      # carried hidden state h
            pltpu.VMEM((TAIL_ROWS, d_inner), jnp.float32),    # causal-conv tail carry
        ],
        compiler_params=pltpu.CompilerParams(
            dimension_semantics=("parallel", "arbitrary"),
            vmem_limit_bytes=64 * 1024 * 1024,
        ),
    )(*args)


# ----------------------------------------------------------------------------
# Full forward (iter == -1 path of Pointnet_Features.forward)
# ----------------------------------------------------------------------------
def pointnet_features_forward(points, params, *, tile_n=DEFAULT_TILE_N):
    a1, bn1, x1, M1, _ = fused_stage(points, params["mlp1"], params["mamba1"], tile_n=tile_n)
    a2, bn2, x2, M2, _ = fused_stage(x1, params["mlp2"], params["mamba2"], tile_n=tile_n)
    a3, bn3, _x3, M3, pool3 = fused_stage(x2, params["mlp3"], params["mamba3"], tile_n=tile_n)

    feat = pool3.reshape(pool3.shape[0], pool3.shape[2])     # [B, dim_k]
    weights = [params["mlp1"]["W_torch"],
               params["mlp2"]["W_torch"],
               params["mlp3"]["W_torch"]]                    # torch conv layout [Cout, Cin, 1]
    return feat, [M1, M2, M3], weights, [a1, a2, a3], [bn1, bn2, bn3], None


# ----------------------------------------------------------------------------
# Deterministic parameter initialization (shapes follow the PyTorch __init__).
# ----------------------------------------------------------------------------
def init_params(key, dim_k=256, d_state=16, d_conv=4, expand=2):
    keys = iter(jax.random.split(key, 64))

    def nrm(shape, scale=0.1):
        return (scale * jax.random.normal(next(keys), shape)).astype(jnp.float32)

    def mlp_params(cin, cout):
        W = nrm((cin, cout))
        return {
            "W": W,
            "W_torch": jnp.transpose(W)[:, :, None],
            "b": nrm((1, cout)),
            "gamma": jnp.ones((1, cout), jnp.float32),
            "beta": jnp.zeros((1, cout), jnp.float32),
            "mean": jnp.zeros((1, cout), jnp.float32),
            "var": jnp.ones((1, cout), jnp.float32),
        }

    def mamba_params(dim):
        d_inner = expand * dim
        return {
            "Win": nrm((dim, 2 * d_inner)),
            "bin": nrm((1, 2 * d_inner)),
            "Wconv": nrm((d_conv, d_inner)),
            "bconv": nrm((1, d_inner)),
            # biased negative so -exp(A) is a stable decay for the self-test.
            "A_T": nrm((d_state, d_inner)) - 1.0,
            "D": nrm((1, d_inner)),
            "Wbc": nrm((d_inner, 2 * d_state)),   # fused bias-free [B | C] projection
            "Wout": nrm((d_inner, dim)),
            "bout": nrm((1, dim)),
            "ln_g": jnp.ones((1, dim), jnp.float32),
            "ln_b": jnp.zeros((1, dim), jnp.float32),
        }

    return {
        "mlp1": mlp_params(3, 64), "mamba1": mamba_params(64),
        "mlp2": mlp_params(64, 128), "mamba2": mamba_params(128),
        "mlp3": mlp_params(128, dim_k), "mamba3": mamba_params(dim_k),
    }


if __name__ == "__main__":
    key = jax.random.PRNGKey(0)
    kp, kx = jax.random.split(key)

    dim_k = 256          # small dim_k for the test (reference default is 1024)
    B, N = 2, 128
    params = init_params(kp, dim_k=dim_k)
    points = jax.random.normal(kx, (B, N, 3), dtype=jnp.float32)

    # tile_n=64 -> 2 N-tiles per batch item, exercising the carried SSM/conv/pool state.
    feat, masks, weights, a_xs, bn_xs, _ = pointnet_features_forward(points, params, tile_n=64)
    jax.block_until_ready(jax.tree_util.tree_leaves((feat, masks, a_xs, bn_xs)))

    assert feat.shape == (B, dim_k)
    assert masks[0].shape == (B, N, 64)
    assert masks[1].shape == (B, N, 128)
    assert masks[2].shape == (B, N, dim_k)
    assert a_xs[0].shape == (B, N, 64) and bn_xs[0].shape == (B, N, 64)
    assert weights[0].shape == (64, 3, 1)
    assert bool(jnp.all(jnp.isfinite(feat)))
    assert bool(jnp.all(jnp.isfinite(masks[2])))

    print("KERNEL_OK")
</pallas_src>

<mosaic_0001>
module attributes {stable_mosaic.version = 11 : i64} {
  func.func @_stage_kernel(%arg0: i32, %arg1: i32, %arg2: memref<1x64x3xf32, #tpu.memory_space<vmem>>, %arg3: memref<3x64xf32, #tpu.memory_space<vmem>>, %arg4: memref<1x64xf32, #tpu.memory_space<vmem>>, %arg5: memref<1x64xf32, #tpu.memory_space<vmem>>, %arg6: memref<1x64xf32, #tpu.memory_space<vmem>>, %arg7: memref<1x64xf32, #tpu.memory_space<vmem>>, %arg8: memref<1x64xf32, #tpu.memory_space<vmem>>, %arg9: memref<64x128xbf16, #tpu.memory_space<vmem>>, %arg10: memref<1x128xf32, #tpu.memory_space<vmem>>, %arg11: memref<64x128xbf16, #tpu.memory_space<vmem>>, %arg12: memref<1x128xf32, #tpu.memory_space<vmem>>, %arg13: memref<4x128xf32, #tpu.memory_space<vmem>>, %arg14: memref<1x128xf32, #tpu.memory_space<vmem>>, %arg15: memref<16x128xf32, #tpu.memory_space<vmem>>, %arg16: memref<1x128xf32, #tpu.memory_space<vmem>>, %arg17: memref<128x32xbf16, #tpu.memory_space<vmem>>, %arg18: memref<128x64xbf16, #tpu.memory_space<vmem>>, %arg19: memref<1x64xf32, #tpu.memory_space<vmem>>, %arg20: memref<1x64xf32, #tpu.memory_space<vmem>>, %arg21: memref<1x64xf32, #tpu.memory_space<vmem>>, %arg22: memref<1x64x64xf32, #tpu.memory_space<vmem>>, %arg23: memref<1x64x64xf32, #tpu.memory_space<vmem>>, %arg24: memref<1x64x64xbf16, #tpu.memory_space<vmem>>, %arg25: memref<1x64x64xf32, #tpu.memory_space<vmem>>, %arg26: memref<1x1x64xf32, #tpu.memory_space<vmem>>, %arg27: memref<64x128xf32, #tpu.memory_space<vmem>>, %arg28: memref<64x32xf32, #tpu.memory_space<vmem>>, %arg29: memref<64x128xf32, #tpu.memory_space<vmem>>, %arg30: memref<16x128xf32, #tpu.memory_space<vmem>>, %arg31: memref<8x128xf32, #tpu.memory_space<vmem>>) attributes {dimension_semantics = [#tpu.dimension_semantics<parallel>, #tpu.dimension_semantics<arbitrary>], iteration_bounds = array<i64: 2, 2>, scalar_prefetch = 0 : i64, scratch_operands = 5 : i64, tpu.core_type = #tpu.core_type<tc>, window_params = [{transform_indices = @transform_0, window_bounds = array<i64: 1, 64, 3>}, {pipeline_mode = #tpu.pipeline_mode<synchronous>, transform_indices = @transform_1, window_bounds = array<i64: 3, 64>}, {pipeline_mode = #tpu.pipeline_mode<synchronous>, transform_indices = @transform_2, window_bounds = array<i64: 1, 64>}, {pipeline_mode = #tpu.pipeline_mode<synchronous>, transform_indices = @transform_3, window_bounds = array<i64: 1, 64>}, {pipeline_mode = #tpu.pipeline_mode<synchronous>, transform_indices = @transform_4, window_bounds = array<i64: 1, 64>}, {pipeline_mode = #tpu.pipeline_mode<synchronous>, transform_indices = @transform_5, window_bounds = array<i64: 1, 64>}, {pipeline_mode = #tpu.pipeline_mode<synchronous>, transform_indices = @transform_6, window_bounds = array<i64: 1, 64>}, {pipeline_mode = #tpu.pipeline_mode<synchronous>, transform_indices = @transform_7, window_bounds = array<i64: 64, 128>}, {pipeline_mode = #tpu.pipeline_mode<synchronous>, transform_indices = @transform_8, window_bounds = array<i64: 1, 128>}, {pipeline_mode = #tpu.pipeline_mode<synchronous>, transform_indices = @transform_9, window_bounds = array<i64: 64, 128>}, {pipeline_mode = #tpu.pipeline_mode<synchronous>, transform_indices = @transform_10, window_bounds = array<i64: 1, 128>}, {pipeline_mode = #tpu.pipeline_mode<synchronous>, transform_indices = @transform_11, window_bounds = array<i64: 4, 128>}, {pipeline_mode = #tpu.pipeline_mode<synchronous>, transform_indices = @transform_12, window_bounds = array<i64: 1, 128>}, {pipeline_mode = #tpu.pipeline_mode<synchronous>, transform_indices = @transform_13, window_bounds = array<i64: 16, 128>}, {pipeline_mode = #tpu.pipeline_mode<synchronous>, transform_indices = @transform_14, window_bounds = array<i64: 1, 128>}, {pipeline_mode = #tpu.pipeline_mode<synchronous>, transform_indices = @transform_15, window_bounds = array<i64: 128, 32>}, {pipeline_mode = #tpu.pipeline_mode<synchronous>, transform_indices = @transform_16, window_bounds = array<i64: 128, 64>}, {pipeline_mode = #tpu.pipeline_mode<synchronous>, transform_indices = @transform_17, window_bounds = array<i64: 1, 64>}, {pipeline_mode = #tpu.pipeline_mode<synchronous>, transform_indices = @transform_18, window_bounds = array<i64: 1, 64>}, {pipeline_mode = #tpu.pipeline_mode<synchronous>, transform_indices = @transform_19, window_bounds = array<i64: 1, 64>}, {transform_indices = @transform_20, window_bounds = array<i64: 1, 64, 64>}, {transform_indices = @transform_21, window_bounds = array<i64: 1, 64, 64>}, {transform_indices = @transform_22, window_bounds = array<i64: 1, 64, 64>}, {transform_indices = @transform_23, window_bounds = array<i64: 1, 64, 64>}, {transform_indices = @transform_24, window_bounds = array<i64: 1, 1, 64>}]} {
    %c0_i32 = arith.constant 0 : i32
    %0 = arith.cmpi eq, %arg1, %c0_i32 : i32
    %1 = arith.extui %0 : i1 to i32
    %c0_i32_0 = arith.constant 0 : i32
    %2 = arith.cmpi ne, %1, %c0_i32_0 : i32
    scf.if %2 {
      %cst_87 = arith.constant 0.000000e+00 : f32
      %160 = vector.broadcast %cst_87 : f32 to vector<16x128xf32>
      %c0_88 = arith.constant 0 : index
      %c0_89 = arith.constant 0 : index
      %161 = vector.load %arg30[%c0_88, %c0_89] : memref<16x128xf32, #tpu.memory_space<vmem>>, vector<16x128xf32>
      tpu.vector_store %arg30[%c0_88, %c0_89], %160 {strides = array<i32>} : memref<16x128xf32, #tpu.memory_space<vmem>>, vector<16x128xf32>,
      %cst_90 = arith.constant 0.000000e+00 : f32
      %162 = vector.broadcast %cst_90 : f32 to vector<8x128xf32>
      %c0_91 = arith.constant 0 : index
      %c0_92 = arith.constant 0 : index
      %163 = vector.load %arg31[%c0_91, %c0_92] : memref<8x128xf32, #tpu.memory_space<vmem>>, vector<8x128xf32>
      tpu.vector_store %arg31[%c0_91, %c0_92], %162 {strides = array<i32>} : memref<8x128xf32, #tpu.memory_space<vmem>>, vector<8x128xf32>,
    } else {
    }
    %c0 = arith.constant 0 : index
    %c0_1 = arith.constant 0 : index
    %c0_2 = arith.constant 0 : index
    %3 = vector.load %arg2[%c0, %c0_1, %c0_2] : memref<1x64x3xf32, #tpu.memory_space<vmem>>, vector<1x64x3xf32>
    %4 = vector.shape_cast %3 : vector<1x64x3xf32> to vector<64x3xf32>
    %cst = arith.constant 0.000000e+00 : f32
    %5 = vector.broadcast %cst : f32 to vector<64x64xf32>
    %6 = vector.extract_strided_slice %4 {offsets = [0, 0], sizes = [64, 1], strides = [1, 1]} : vector<64x3xf32> to vector<64x1xf32>
    %c0_3 = arith.constant 0 : index
    %c0_4 = arith.constant 0 : index
    %7 = vector.load %arg3[%c0_3, %c0_4] : memref<3x64xf32, #tpu.memory_space<vmem>>, vector<1x64xf32>
    %8 = vector.broadcast %6 : vector<64x1xf32> to vector<64x64xf32>
    %9 = vector.broadcast %7 : vector<1x64xf32> to vector<64x64xf32>
    %10 = arith.mulf %8, %9 : vector<64x64xf32>
    %11 = arith.addf %5, %10 : vector<64x64xf32>
    %12 = vector.extract_strided_slice %4 {offsets = [0, 1], sizes = [64, 1], strides = [1, 1]} : vector<64x3xf32> to vector<64x1xf32>
    %c1 = arith.constant 1 : index
    %c0_5 = arith.constant 0 : index
    %13 = vector.load %arg3[%c1, %c0_5] : memref<3x64xf32, #tpu.memory_space<vmem>>, vector<1x64xf32>
    %14 = vector.broadcast %12 : vector<64x1xf32> to vector<64x64xf32>
    %15 = vector.broadcast %13 : vector<1x64xf32> to vector<64x64xf32>
    %16 = arith.mulf %14, %15 : vector<64x64xf32>
    %17 = arith.addf %11, %16 : vector<64x64xf32>
    %18 = vector.extract_strided_slice %4 {offsets = [0, 2], sizes = [64, 1], strides = [1, 1]} : vector<64x3xf32> to vector<64x1xf32>
    %c2 = arith.constant 2 : index
    %c0_6 = arith.constant 0 : index
    %19 = vector.load %arg3[%c2, %c0_6] : memref<3x64xf32, #tpu.memory_space<vmem>>, vector<1x64xf32>
    %20 = vector.broadcast %18 : vector<64x1xf32> to vector<64x64xf32>
    %21 = vector.broadcast %19 : vector<1x64xf32> to vector<64x64xf32>
    %22 = arith.mulf %20, %21 : vector<64x64xf32>
    %23 = arith.addf %17, %22 : vector<64x64xf32>
    %c0_7 = arith.constant 0 : index
    %c0_8 = arith.constant 0 : index
    %24 = vector.load %arg4[%c0_7, %c0_8] : memref<1x64xf32, #tpu.memory_space<vmem>>, vector<1x64xf32>
    %25 = vector.broadcast %24 : vector<1x64xf32> to vector<64x64xf32>
    %26 = arith.addf %23, %25 : vector<64x64xf32>
    %c0_9 = arith.constant 0 : index
    %c0_10 = arith.constant 0 : index
    %c0_11 = arith.constant 0 : index
    %27 = vector.load %arg22[%c0_9, %c0_10, %c0_11] : memref<1x64x64xf32, #tpu.memory_space<vmem>>, vector<1x64x64xf32>
    %28 = vector.shape_cast %27 : vector<1x64x64xf32> to vector<64x64xf32>
    %29 = vector.shape_cast %26 : vector<64x64xf32> to vector<1x64x64xf32>
    tpu.vector_store %arg22[%c0_9, %c0_10, %c0_11], %29 {strides = array<i32>} : memref<1x64x64xf32, #tpu.memory_space<vmem>>, vector<1x64x64xf32>,
    %c0_12 = arith.constant 0 : index
    %c0_13 = arith.constant 0 : index
    %30 = vector.load %arg5[%c0_12, %c0_13] : memref<1x64xf32, #tpu.memory_space<vmem>>, vector<1x64xf32>
    %c0_14 = arith.constant 0 : index
    %c0_15 = arith.constant 0 : index
    %31 = vector.load %arg8[%c0_14, %c0_15] : memref<1x64xf32, #tpu.memory_space<vmem>>, vector<1x64xf32>
    %cst_16 = arith.constant 9.99999974E-6 : f32
    %32 = vector.broadcast %cst_16 : f32 to vector<1x64xf32>
    %33 = arith.addf %31, %32 : vector<1x64xf32>
    %34 = math.rsqrt %33 : vector<1x64xf32>
    %35 = arith.mulf %30, %34 : vector<1x64xf32>
    %c0_17 = arith.constant 0 : index
    %c0_18 = arith.constant 0 : index
    %36 = vector.load %arg7[%c0_17, %c0_18] : memref<1x64xf32, #tpu.memory_space<vmem>>, vector<1x64xf32>
    %37 = vector.broadcast %36 : vector<1x64xf32> to vector<64x64xf32>
    %38 = arith.subf %26, %37 : vector<64x64xf32>
    %39 = vector.broadcast %35 : vector<1x64xf32> to vector<64x64xf32>
    %40 = arith.mulf %38, %39 : vector<64x64xf32>
    %c0_19 = arith.constant 0 : index
    %c0_20 = arith.constant 0 : index
    %41 = vector.load %arg6[%c0_19, %c0_20] : memref<1x64xf32, #tpu.memory_space<vmem>>, vector<1x64xf32>
    %42 = vector.broadcast %41 : vector<1x64xf32> to vector<64x64xf32>
    %43 = arith.addf %40, %42 : vector<64x64xf32>
    %c0_21 = arith.constant 0 : index
    %c0_22 = arith.constant 0 : index
    %c0_23 = arith.constant 0 : index
    %44 = vector.load %arg23[%c0_21, %c0_22, %c0_23] : memref<1x64x64xf32, #tpu.memory_space<vmem>>, vector<1x64x64xf32>
    %45 = vector.shape_cast %44 : vector<1x64x64xf32> to vector<64x64xf32>
    %46 = vector.shape_cast %43 : vector<64x64xf32> to vector<1x64x64xf32>
    tpu.vector_store %arg23[%c0_21, %c0_22, %c0_23], %46 {strides = array<i32>} : memref<1x64x64xf32, #tpu.memory_space<vmem>>, vector<1x64x64xf32>,
    %cst_24 = arith.constant 0.000000e+00 : f32
    %47 = vector.broadcast %cst_24 : f32 to vector<64x64xf32>
    %48 = arith.maximumf %43, %47 : vector<64x64xf32>
    %49 = arith.truncf %48 : vector<64x64xf32> to vector<64x64xbf16>
    %c0_25 = arith.constant 0 : index
    %c0_26 = arith.constant 0 : index
    %50 = vector.load %arg9[%c0_25, %c0_26] : memref<64x128xbf16, #tpu.memory_space<vmem>>, vector<64x128xbf16>
    %cst_27 = arith.constant dense<0.000000e+00> : vector<64x128xf32>
    %51 = tpu.matmul %49, %50, %cst_27 {dimension_numbers = #tpu.dot_dimension_numbers<[1], [0], [0], [1], [0, 0, 1, 1], [], []>} : vector<64x64xbf16>, vector<64x128xbf16>, vector<64x128xf32> -> vector<64x128xf32>
    %c0_28 = arith.constant 0 : index
    %c0_29 = arith.constant 0 : index
    %52 = vector.load %arg10[%c0_28, %c0_29] : memref<1x128xf32, #tpu.memory_space<vmem>>, vector<1x128xf32>
    %53 = vector.broadcast %52 : vector<1x128xf32> to vector<64x128xf32>
    %54 = arith.addf %51, %53 : vector<64x128xf32>
    %c0_30 = arith.constant 0 : index
    %c0_31 = arith.constant 0 : index
    %55 = vector.load %arg11[%c0_30, %c0_31] : memref<64x128xbf16, #tpu.memory_space<vmem>>, vector<64x128xbf16>
    %cst_32 = arith.constant dense<0.000000e+00> : vector<64x128xf32>
    %56 = tpu.matmul %49, %55, %cst_32 {dimension_numbers = #tpu.dot_dimension_numbers<[1], [0], [0], [1], [0, 0, 1, 1], [], []>} : vector<64x64xbf16>, vector<64x128xbf16>, vector<64x128xf32> -> vector<64x128xf32>
    %c0_33 = arith.constant 0 : index
    %c0_34 = arith.constant 0 : index
    %57 = vector.load %arg12[%c0_33, %c0_34] : memref<1x128xf32, #tpu.memory_space<vmem>>, vector<1x128xf32>
    %58 = vector.broadcast %57 : vector<1x128xf32> to vector<64x128xf32>
    %59 = arith.addf %56, %58 : vector<64x128xf32>
    %c0_35 = arith.constant 0 : index
    %c0_36 = arith.constant 0 : index
    %60 = vector.load %arg27[%c0_35, %c0_36] : memref<64x128xf32, #tpu.memory_space<vmem>>, vector<64x128xf32>
    tpu.vector_store %arg27[%c0_35, %c0_36], %59 {strides = array<i32>} : memref<64x128xf32, #tpu.memory_space<vmem>>, vector<64x128xf32>,
    %c0_37 = arith.constant 0 : index
    %c0_38 = arith.constant 0 : index
    %61 = vector.load %arg13[%c0_37, %c0_38] : memref<4x128xf32, #tpu.memory_space<vmem>>, vector<4x128xf32>
    %c0_39 = arith.constant 0 : index
    %c0_40 = arith.constant 0 : index
    %62 = vector.load %arg31[%c0_39, %c0_40] : memref<8x128xf32, #tpu.memory_space<vmem>>, vector<8x128xf32>
    %63 = tpu.concatenate %62, %54 in 0 : vector<8x128xf32>, vector<64x128xf32> -> vector<72x128xf32>
    %64 = vector.extract_strided_slice %61 {offsets = [3, 0], sizes = [1, 128], strides = [1, 1]} : vector<4x128xf32> to vector<1x128xf32>
    %65 = vector.broadcast %64 : vector<1x128xf32> to vector<64x128xf32>
    %66 = arith.mulf %54, %65 : vector<64x128xf32>
    %c1_i32 = arith.constant 1 : i32
    %67 = tpu.dynamic_rotate %63 by %c1_i32 dim 0 : vector<72x128xf32>, i32 -> vector<72x128xf32>
    %68 = vector.extract_strided_slice %67 {offsets = [8, 0], sizes = [64, 128], strides = [1, 1]} : vector<72x128xf32> to vector<64x128xf32>
    %69 = vector.extract_strided_slice %61 {offsets = [2, 0], sizes = [1, 128], strides = [1, 1]} : vector<4x128xf32> to vector<1x128xf32>
    %70 = vector.broadcast %69 : vector<1x128xf32> to vector<64x128xf32>
    %71 = arith.mulf %68, %70 : vector<64x128xf32>
    %72 = arith.addf %66, %71 : vector<64x128xf32>
    %c2_i32 = arith.constant 2 : i32
    %73 = tpu.dynamic_rotate %63 by %c2_i32 dim 0 : vector<72x128xf32>, i32 -> vector<72x128xf32>
    %74 = vector.extract_strided_slice %73 {offsets = [8, 0], sizes = [64, 128], strides = [1, 1]} : vector<72x128xf32> to vector<64x128xf32>
    %75 = vector.extract_strided_slice %61 {offsets = [1, 0], sizes = [1, 128], strides = [1, 1]} : vector<4x128xf32> to vector<1x128xf32>
    %76 = vector.broadcast %75 : vector<1x128xf32> to vector<64x128xf32>
    %77 = arith.mulf %74, %76 : vector<64x128xf32>
    %78 = arith.addf %72, %77 : vector<64x128xf32>
    %c3_i32 = arith.constant 3 : i32
    %79 = tpu.dynamic_rotate %63 by %c3_i32 dim 0 : vector<72x128xf32>, i32 -> vector<72x128xf32>
    %80 = vector.extract_strided_slice %79 {offsets = [8, 0], sizes = [64, 128], strides = [1, 1]} : vector<72x128xf32> to vector<64x128xf32>
    %81 = vector.extract_strided_slice %61 {offsets = [0, 0], sizes = [1, 128], strides = [1, 1]} : vector<4x128xf32> to vector<1x128xf32>
    %82 = vector.broadcast %81 : vector<1x128xf32> to vector<64x128xf32>
    %83 = arith.mulf %80, %82 : vector<64x128xf32>
    %84 = arith.addf %78, %83 : vector<64x128xf32>
    %c0_41 = arith.constant 0 : index
    %c0_42 = arith.constant 0 : index
    %85 = vector.load %arg14[%c0_41, %c0_42] : memref<1x128xf32, #tpu.memory_space<vmem>>, vector<1x128xf32>
    %86 = vector.broadcast %85 : vector<1x128xf32> to vector<64x128xf32>
    %87 = arith.addf %84, %86 : vector<64x128xf32>
    %88 = arith.negf %87 : vector<64x128xf32>
    %89 = math.exp %88 : vector<64x128xf32>
    %cst_43 = arith.constant 1.000000e+00 : f32
    %90 = vector.broadcast %cst_43 : f32 to vector<64x128xf32>
    %91 = arith.addf %90, %89 : vector<64x128xf32>
    %92 = arith.divf %90, %91 : vector<64x128xf32>
    %93 = arith.mulf %87, %92 : vector<64x128xf32>
    %94 = vector.extract_strided_slice %54 {offsets = [56, 0], sizes = [8, 128], strides = [1, 1]} : vector<64x128xf32> to vector<8x128xf32>
    %c0_44 = arith.constant 0 : index
    %c0_45 = arith.constant 0 : index
    %95 = vector.load %arg31[%c0_44, %c0_45] : memref<8x128xf32, #tpu.memory_space<vmem>>, vector<8x128xf32>
    tpu.vector_store %arg31[%c0_44, %c0_45], %94 {strides = array<i32>} : memref<8x128xf32, #tpu.memory_space<vmem>>, vector<8x128xf32>,
    %96 = arith.truncf %93 : vector<64x128xf32> to vector<64x128xbf16>
    %c0_46 = arith.constant 0 : index
    %c0_47 = arith.constant 0 : index
    %97 = vector.load %arg17[%c0_46, %c0_47] : memref<128x32xbf16, #tpu.memory_space<vmem>>, vector<128x32xbf16>
    %cst_48 = arith.constant dense<0.000000e+00> : vector<64x32xf32>
    %98 = tpu.matmul %96, %97, %cst_48 {dimension_numbers = #tpu.dot_dimension_numbers<[1], [0], [0], [1], [0, 0, 1, 1], [], []>} : vector<64x128xbf16>, vector<128x32xbf16>, vector<64x32xf32> -> vector<64x32xf32>
    %c0_49 = arith.constant 0 : index
    %c0_50 = arith.constant 0 : index
    %99 = vector.load %arg28[%c0_49, %c0_50] : memref<64x32xf32, #tpu.memory_space<vmem>>, vector<64x32xf32>
    tpu.vector_store %arg28[%c0_49, %c0_50], %98 {strides = array<i32>} : memref<64x32xf32, #tpu.memory_space<vmem>>, vector<64x32xf32>,
    %c0_51 = arith.constant 0 : index
    %c0_52 = arith.constant 0 : index
    %100 = vector.load %arg15[%c0_51, %c0_52] : memref<16x128xf32, #tpu.memory_space<vmem>>, vector<16x128xf32>
    %101 = math.exp %100 : vector<16x128xf32>
    %cst_53 = arith.constant 0.000000e+00 : f32
    %102 = vector.broadcast %cst_53 : f32 to vector<16x128xf32>
    %103 = arith.subf %102, %101 : vector<16x128xf32>
    %c0_i32_54 = arith.constant 0 : i32
    %c8_i32 = arith.constant 8 : i32
    %104 = arith.addi %c0_i32_54, %c8_i32 : i32
    %c1_i32_55 = arith.constant 1 : i32
    scf.for %arg32 = %c0_i32_54 to %104 step %c1_i32_55  : i32 {
      %c1_i32_87 = arith.constant 1 : i32
      %160 = arith.muli %arg32, %c1_i32_87 : i32
      %c0_i32_88 = arith.constant 0 : i32
      %161 = arith.addi %c0_i32_88, %160 : i32
      %c8_i32_89 = arith.constant 8 : i32
      %162 = arith.muli %161, %c8_i32_89 : i32
      %163 = tpu.assume_multiple %162, 8 : i32
      %164 = arith.index_cast %163 : i32 to index
      %c0_90 = arith.constant 0 : index
      %165 = vector.load %arg27[%164, %c0_90] : memref<64x128xf32, #tpu.memory_space<vmem>>, vector<8x128xf32>
      %166 = arith.negf %165 : vector<8x128xf32>
      %167 = math.exp %166 : vector<8x128xf32>
      %cst_91 = arith.constant 1.000000e+00 : f32
      %168 = vector.broadcast %cst_91 : f32 to vector<8x128xf32>
      %169 = arith.addf %168, %167 : vector<8x128xf32>
      %170 = arith.divf %168, %169 : vector<8x128xf32>
      %171 = arith.index_cast %163 : i32 to index
      %c0_92 = arith.constant 0 : index
      %172 = vector.load %arg28[%171, %c0_92] : memref<64x32xf32, #tpu.memory_space<vmem>>, vector<8x32xf32>
      %173 = vector.shape_cast %172 : vector<8x32xf32> to vector<8x32x1xf32>
      %c0_93 = arith.constant 0 : index
      %c0_94 = arith.constant 0 : index
      %174 = vector.load %arg30[%c0_93, %c0_94] : memref<16x128xf32, #tpu.memory_space<vmem>>, vector<16x128xf32>
      %175 = vector.extract_strided_slice %173 {offsets = [0, 0, 0], sizes = [1, 16, 1], strides = [1, 1, 1]} : vector<8x32x1xf32> to vector<1x16x1xf32>
      %176 = vector.shape_cast %175 : vector<1x16x1xf32> to vector<16x1xf32>
      %177 = vector.extract_strided_slice %173 {offsets = [0, 16, 0], sizes = [1, 16, 1], strides = [1, 1, 1]} : vector<8x32x1xf32> to vector<1x16x1xf32>
      %178 = vector.shape_cast %177 : vector<1x16x1xf32> to vector<16x1xf32>
      %179 = arith.mulf %103, %174 : vector<16x128xf32>
      %180 = vector.extract_strided_slice %170 {offsets = [0, 0], sizes = [1, 128], strides = [1, 1]} : vector<8x128xf32> to vector<1x128xf32>
      %181 = vector.broadcast %176 : vector<16x1xf32> to vector<16x128xf32>
      %182 = vector.broadcast %180 : vector<1x128xf32> to vector<16x128xf32>
      %183 = arith.mulf %181, %182 : vector<16x128xf32>
      %184 = arith.addf %179, %183 : vector<16x128xf32>
      %185 = vector.broadcast %178 : vector<16x1xf32> to vector<16x128xf32>
      %186 = arith.mulf %185, %184 : vector<16x128xf32>
      %cst_95 = arith.constant dense<0.000000e+00> : vector<128xf32>
      %187 = vector.multi_reduction <add>, %186, %cst_95 [0] : vector<16x128xf32> to vector<128xf32>
      %188 = vector.shape_cast %187 : vector<128xf32> to vector<1x128xf32>
      %189 = vector.extract_strided_slice %173 {offsets = [1, 0, 0], sizes = [1, 16, 1], strides = [1, 1, 1]} : vector<8x32x1xf32> to vector<1x16x1xf32>
      %190 = vector.shape_cast %189 : vector<1x16x1xf32> to vector<16x1xf32>
      %191 = vector.extract_strided_slice %173 {offsets = [1, 16, 0], sizes = [1, 16, 1], strides = [1, 1, 1]} : vector<8x32x1xf32> to vector<1x16x1xf32>
      %192 = vector.shape_cast %191 : vector<1x16x1xf32> to vector<16x1xf32>
      %193 = arith.mulf %103, %184 : vector<16x128xf32>
      %194 = vector.extract_strided_slice %170 {offsets = [1, 0], sizes = [1, 128], strides = [1, 1]} : vector<8x128xf32> to vector<1x128xf32>
      %195 = vector.broadcast %190 : vector<16x1xf32> to vector<16x128xf32>
      %196 = vector.broadcast %194 : vector<1x128xf32> to vector<16x128xf32>
      %197 = arith.mulf %195, %196 : vector<16x128xf32>
      %198 = arith.addf %193, %197 : vector<16x128xf32>
      %199 = vector.broadcast %192 : vector<16x1xf32> to vector<16x128xf32>
      %200 = arith.mulf %199, %198 : vector<16x128xf32>
      %cst_96 = arith.constant dense<0.000000e+00> : vector<128xf32>
      %201 = vector.multi_reduction <add>, %200, %cst_96 [0] : vector<16x128xf32> to vector<128xf32>
      %202 = vector.shape_cast %201 : vector<128xf32> to vector<1x128xf32>
      %203 = vector.extract_strided_slice %173 {offsets = [2, 0, 0], sizes = [1, 16, 1], strides = [1, 1, 1]} : vector<8x32x1xf32> to vector<1x16x1xf32>
      %204 = vector.shape_cast %203 : vector<1x16x1xf32> to vector<16x1xf32>
      %205 = vector.extract_strided_slice %173 {offsets = [2, 16, 0], sizes = [1, 16, 1], strides = [1, 1, 1]} : vector<8x32x1xf32> to vector<1x16x1xf32>
      %206 = vector.shape_cast %205 : vector<1x16x1xf32> to vector<16x1xf32>
      %207 = arith.mulf %103, %198 : vector<16x128xf32>
      %208 = vector.extract_strided_slice %170 {offsets = [2, 0], sizes = [1, 128], strides = [1, 1]} : vector<8x128xf32> to vector<1x128xf32>
      %209 = vector.broadcast %204 : vector<16x1xf32> to vector<16x128xf32>
      %210 = vector.broadcast %208 : vector<1x128xf32> to vector<16x128xf32>
      %211 = arith.mulf %209, %210 : vector<16x128xf32>
      %212 = arith.addf %207, %211 : vector<16x128xf32>
      %213 = vector.broadcast %206 : vector<16x1xf32> to vector<16x128xf32>
      %214 = arith.mulf %213, %212 : vector<16x128xf32>
      %cst_97 = arith.constant dense<0.000000e+00> : vector<128xf32>
      %215 = vector.multi_reduction <add>, %214, %cst_97 [0] : vector<16x128xf32> to vector<128xf32>
      %216 = vector.shape_cast %215 : vector<128xf32> to vector<1x128xf32>
      %217 = vector.extract_strided_slice %173 {offsets = [3, 0, 0], sizes = [1, 16, 1], strides = [1, 1, 1]} : vector<8x32x1xf32> to vector<1x16x1xf32>
      %218 = vector.shape_cast %217 : vector<1x16x1xf32> to vector<16x1xf32>
      %219 = vector.extract_strided_slice %173 {offsets = [3, 16, 0], sizes = [1, 16, 1], strides = [1, 1, 1]} : vector<8x32x1xf32> to vector<1x16x1xf32>
      %220 = vector.shape_cast %219 : vector<1x16x1xf32> to vector<16x1xf32>
      %221 = arith.mulf %103, %212 : vector<16x128xf32>
      %222 = vector.extract_strided_slice %170 {offsets = [3, 0], sizes = [1, 128], strides = [1, 1]} : vector<8x128xf32> to vector<1x128xf32>
      %223 = vector.broadcast %218 : vector<16x1xf32> to vector<16x128xf32>
      %224 = vector.broadcast %222 : vector<1x128xf32> to vector<16x128xf32>
      %225 = arith.mulf %223, %224 : vector<16x128xf32>
      %226 = arith.addf %221, %225 : vector<16x128xf32>
      %227 = vector.broadcast %220 : vector<16x1xf32> to vector<16x128xf32>
      %228 = arith.mulf %227, %226 : vector<16x128xf32>
      %cst_98 = arith.constant dense<0.000000e+00> : vector<128xf32>
      %229 = vector.multi_reduction <add>, %228, %cst_98 [0] : vector<16x128xf32> to vector<128xf32>
      %230 = vector.shape_cast %229 : vector<128xf32> to vector<1x128xf32>
      %231 = vector.extract_strided_slice %173 {offsets = [4, 0, 0], sizes = [1, 16, 1], strides = [1, 1, 1]} : vector<8x32x1xf32> to vector<1x16x1xf32>
      %232 = vector.shape_cast %231 : vector<1x16x1xf32> to vector<16x1xf32>
      %233 = vector.extract_strided_slice %173 {offsets = [4, 16, 0], sizes = [1, 16, 1], strides = [1, 1, 1]} : vector<8x32x1xf32> to vector<1x16x1xf32>
      %234 = vector.shape_cast %233 : vector<1x16x1xf32> to vector<16x1xf32>
      %235 = arith.mulf %103, %226 : vector<16x128xf32>
      %236 = vector.extract_strided_slice %170 {offsets = [4, 0], sizes = [1, 128], strides = [1, 1]} : vector<8x128xf32> to vector<1x128xf32>
      %237 = vector.broadcast %232 : vector<16x1xf32> to vector<16x128xf32>
      %238 = vector.broadcast %236 : vector<1x128xf32> to vector<16x128xf32>
      %239 = arith.mulf %237, %238 : vector<16x128xf32>
      %240 = arith.addf %235, %239 : vector<16x128xf32>
      %241 = vector.broadcast %234 : vector<16x1xf32> to vector<16x128xf32>
      %242 = arith.mulf %241, %240 : vector<16x128xf32>
      %cst_99 = arith.constant dense<0.000000e+00> : vector<128xf32>
      %243 = vector.multi_reduction <add>, %242, %cst_99 [0] : vector<16x128xf32> to vector<128xf32>
      %244 = vector.shape_cast %243 : vector<128xf32> to vector<1x128xf32>
      %245 = vector.extract_strided_slice %173 {offsets = [5, 0, 0], sizes = [1, 16, 1], strides = [1, 1, 1]} : vector<8x32x1xf32> to vector<1x16x1xf32>
      %246 = vector.shape_cast %245 : vector<1x16x1xf32> to vector<16x1xf32>
      %247 = vector.extract_strided_slice %173 {offsets = [5, 16, 0], sizes = [1, 16, 1], strides = [1, 1, 1]} : vector<8x32x1xf32> to vector<1x16x1xf32>
      %248 = vector.shape_cast %247 : vector<1x16x1xf32> to vector<16x1xf32>
      %249 = arith.mulf %103, %240 : vector<16x128xf32>
      %250 = vector.extract_strided_slice %170 {offsets = [5, 0], sizes = [1, 128], strides = [1, 1]} : vector<8x128xf32> to vector<1x128xf32>
      %251 = vector.broadcast %246 : vector<16x1xf32> to vector<16x128xf32>
      %252 = vector.broadcast %250 : vector<1x128xf32> to vector<16x128xf32>
      %253 = arith.mulf %251, %252 : vector<16x128xf32>
      %254 = arith.addf %249, %253 : vector<16x128xf32>
      %255 = vector.broadcast %248 : vector<16x1xf32> to vector<16x128xf32>
      %256 = arith.mulf %255, %254 : vector<16x128xf32>
      %cst_100 = arith.constant dense<0.000000e+00> : vector<128xf32>
      %257 = vector.multi_reduction <add>, %256, %cst_100 [0] : vector<16x128xf32> to vector<128xf32>
      %258 = vector.shape_cast %257 : vector<128xf32> to vector<1x128xf32>
      %259 = vector.extract_strided_slice %173 {offsets = [6, 0, 0], sizes = [1, 16, 1], strides = [1, 1, 1]} : vector<8x32x1xf32> to vector<1x16x1xf32>
      %260 = vector.shape_cast %259 : vector<1x16x1xf32> to vector<16x1xf32>
      %261 = vector.extract_strided_slice %173 {offsets = [6, 16, 0], sizes = [1, 16, 1], strides = [1, 1, 1]} : vector<8x32x1xf32> to vector<1x16x1xf32>
      %262 = vector.shape_cast %261 : vector<1x16x1xf32> to vector<16x1xf32>
      %263 = arith.mulf %103, %254 : vector<16x128xf32>
      %264 = vector.extract_strided_slice %170 {offsets = [6, 0], sizes = [1, 128], strides = [1, 1]} : vector<8x128xf32> to vector<1x128xf32>
      %265 = vector.broadcast %260 : vector<16x1xf32> to vector<16x128xf32>
      %266 = vector.broadcast %264 : vector<1x128xf32> to vector<16x128xf32>
      %267 = arith.mulf %265, %266 : vector<16x128xf32>
      %268 = arith.addf %263, %267 : vector<16x128xf32>
      %269 = vector.broadcast %262 : vector<16x1xf32> to vector<16x128xf32>
      %270 = arith.mulf %269, %268 : vector<16x128xf32>
      %cst_101 = arith.constant dense<0.000000e+00> : vector<128xf32>
      %271 = vector.multi_reduction <add>, %270, %cst_101 [0] : vector<16x128xf32> to vector<128xf32>
      %272 = vector.shape_cast %271 : vector<128xf32> to vector<1x128xf32>
      %273 = vector.extract_strided_slice %173 {offsets = [7, 0, 0], sizes = [1, 16, 1], strides = [1, 1, 1]} : vector<8x32x1xf32> to vector<1x16x1xf32>
      %274 = vector.shape_cast %273 : vector<1x16x1xf32> to vector<16x1xf32>
      %275 = vector.extract_strided_slice %173 {offsets = [7, 16, 0], sizes = [1, 16, 1], strides = [1, 1, 1]} : vector<8x32x1xf32> to vector<1x16x1xf32>
      %276 = vector.shape_cast %275 : vector<1x16x1xf32> to vector<16x1xf32>
      %277 = arith.mulf %103, %268 : vector<16x128xf32>
      %278 = vector.extract_strided_slice %170 {offsets = [7, 0], sizes = [1, 128], strides = [1, 1]} : vector<8x128xf32> to vector<1x128xf32>
      %279 = vector.broadcast %274 : vector<16x1xf32> to vector<16x128xf32>
      %280 = vector.broadcast %278 : vector<1x128xf32> to vector<16x128xf32>
      %281 = arith.mulf %279, %280 : vector<16x128xf32>
      %282 = arith.addf %277, %281 : vector<16x128xf32>
      %283 = vector.broadcast %276 : vector<16x1xf32> to vector<16x128xf32>
      %284 = arith.mulf %283, %282 : vector<16x128xf32>
      %cst_102 = arith.constant dense<0.000000e+00> : vector<128xf32>
      %285 = vector.multi_reduction <add>, %284, %cst_102 [0] : vector<16x128xf32> to vector<128xf32>
      %286 = vector.shape_cast %285 : vector<128xf32> to vector<1x128xf32>
      %c0_103 = arith.constant 0 : index
      %c0_104 = arith.constant 0 : index
      %287 = vector.load %arg30[%c0_103, %c0_104] : memref<16x128xf32, #tpu.memory_space<vmem>>, vector<16x128xf32>
      tpu.vector_store %arg30[%c0_103, %c0_104], %282 {strides = array<i32>} : memref<16x128xf32, #tpu.memory_space<vmem>>, vector<16x128xf32>,
      %288 = tpu.concatenate %188, %202, %216, %230, %244, %258, %272, %286 in 0 : vector<1x128xf32>, vector<1x128xf32>, vector<1x128xf32>, vector<1x128xf32>, vector<1x128xf32>, vector<1x128xf32>, vector<1x128xf32>, vector<1x128xf32> -> vector<8x128xf32>
      %289 = arith.index_cast %163 : i32 to index
      %c0_105 = arith.constant 0 : index
      %290 = vector.load %arg29[%289, %c0_105] : memref<64x128xf32, #tpu.memory_space<vmem>>, vector<8x128xf32>
      tpu.vector_store %arg29[%289, %c0_105], %288 {strides = array<i32>} : memref<64x128xf32, #tpu.memory_space<vmem>>, vector<8x128xf32>,
    }
    %c8_i32_56 = arith.constant 8 : i32
    %c0_57 = arith.constant 0 : index
    %c0_58 = arith.constant 0 : index
    %105 = vector.load %arg29[%c0_57, %c0_58] : memref<64x128xf32, #tpu.memory_space<vmem>>, vector<64x128xf32>
    %c0_59 = arith.constant 0 : index
    %c0_60 = arith.constant 0 : index
    %106 = vector.load %arg16[%c0_59, %c0_60] : memref<1x128xf32, #tpu.memory_space<vmem>>, vector<1x128xf32>
    %107 = vector.broadcast %106 : vector<1x128xf32> to vector<64x128xf32>
    %108 = arith.mulf %107, %93 : vector<64x128xf32>
    %109 = arith.addf %105, %108 : vector<64x128xf32>
    %110 = arith.truncf %109 : vector<64x128xf32> to vector<64x128xbf16>
    %c0_61 = arith.constant 0 : index
    %c0_62 = arith.constant 0 : index
    %111 = vector.load %arg18[%c0_61, %c0_62] : memref<128x64xbf16, #tpu.memory_space<vmem>>, vector<128x64xbf16>
    %cst_63 = arith.constant dense<0.000000e+00> : vector<64x64xf32>
    %112 = tpu.matmul %110, %111, %cst_63 {dimension_numbers = #tpu.dot_dimension_numbers<[1], [0], [0], [1], [0, 0, 1, 1], [], []>} : vector<64x128xbf16>, vector<128x64xbf16>, vector<64x64xf32> -> vector<64x64xf32>
    %c0_64 = arith.constant 0 : index
    %c0_65 = arith.constant 0 : index
    %113 = vector.load %arg19[%c0_64, %c0_65] : memref<1x64xf32, #tpu.memory_space<vmem>>, vector<1x64xf32>
    %114 = vector.broadcast %113 : vector<1x64xf32> to vector<64x64xf32>
    %115 = arith.addf %112, %114 : vector<64x64xf32>
    %116 = arith.addf %115, %48 : vector<64x64xf32>
    %cst_66 = arith.constant dense<0.000000e+00> : vector<64xf32>
    %117 = vector.multi_reduction <add>, %116, %cst_66 [1] : vector<64x64xf32> to vector<64xf32>
    %118 = vector.shape_cast %117 : vector<64xf32> to vector<64x1xf32>
    %cst_67 = arith.constant 6.400000e+01 : f32
    %119 = vector.broadcast %cst_67 : f32 to vector<64x1xf32>
    %120 = arith.divf %118, %119 : vector<64x1xf32>
    %121 = vector.broadcast %120 : vector<64x1xf32> to vector<64x64xf32>
    %122 = arith.subf %116, %121 : vector<64x64xf32>
    %123 = arith.mulf %122, %122 : vector<64x64xf32>
    %cst_68 = arith.constant dense<0.000000e+00> : vector<64xf32>
    %124 = vector.multi_reduction <add>, %123, %cst_68 [1] : vector<64x64xf32> to vector<64xf32>
    %125 = vector.shape_cast %124 : vector<64xf32> to vector<64x1xf32>
    %cst_69 = arith.constant 6.400000e+01 : f32
    %126 = vector.broadcast %cst_69 : f32 to vector<64x1xf32>
    %127 = arith.divf %125, %126 : vector<64x1xf32>
    %128 = vector.broadcast %120 : vector<64x1xf32> to vector<64x64xf32>
    %129 = arith.subf %116, %128 : vector<64x64xf32>
    %cst_70 = arith.constant 9.99999974E-6 : f32
    %130 = vector.broadcast %cst_70 : f32 to vector<64x1xf32>
    %131 = arith.addf %127, %130 : vector<64x1xf32>
    %132 = math.rsqrt %131 : vector<64x1xf32>
    %133 = vector.broadcast %132 : vector<64x1xf32> to vector<64x64xf32>
    %134 = arith.mulf %129, %133 : vector<64x64xf32>
    %c0_71 = arith.constant 0 : index
    %c0_72 = arith.constant 0 : index
    %135 = vector.load %arg20[%c0_71, %c0_72] : memref<1x64xf32, #tpu.memory_space<vmem>>, vector<1x64xf32>
    %136 = vector.broadcast %135 : vector<1x64xf32> to vector<64x64xf32>
    %137 = arith.mulf %134, %136 : vector<64x64xf32>
    %c0_73 = arith.constant 0 : index
    %c0_74 = arith.constant 0 : index
    %138 = vector.load %arg21[%c0_73, %c0_74] : memref<1x64xf32, #tpu.memory_space<vmem>>, vector<1x64xf32>
    %139 = vector.broadcast %138 : vector<1x64xf32> to vector<64x64xf32>
    %140 = arith.addf %137, %139 : vector<64x64xf32>
    %141 = arith.truncf %140 : vector<64x64xf32> to vector<64x64xbf16>
    %c0_75 = arith.constant 0 : index
    %c0_76 = arith.constant 0 : index
    %c0_77 = arith.constant 0 : index
    %142 = vector.load %arg24[%c0_75, %c0_76, %c0_77] : memref<1x64x64xbf16, #tpu.memory_space<vmem>>, vector<1x64x64xbf16>
    %143 = vector.shape_cast %142 : vector<1x64x64xbf16> to vector<64x64xbf16>
    %144 = vector.shape_cast %141 : vector<64x64xbf16> to vector<1x64x64xbf16>
    tpu.vector_store %arg24[%c0_75, %c0_76, %c0_77], %144 {strides = array<i32>} : memref<1x64x64xbf16, #tpu.memory_space<vmem>>, vector<1x64x64xbf16>,
    %cst_78 = arith.constant 0.000000e+00 : f32
    %145 = vector.broadcast %cst_78 : f32 to vector<64x64xf32>
    %146 = arith.cmpf ogt, %140, %145 : vector<64x64xf32>
    %147 = arith.extui %146 : vector<64x64xi1> to vector<64x64xi32>
    %148 = arith.sitofp %147 : vector<64x64xi32> to vector<64x64xf32>
    %c0_79 = arith.constant 0 : index
    %c0_80 = arith.constant 0 : index
    %c0_81 = arith.constant 0 : index
    %149 = vector.load %arg25[%c0_79, %c0_80, %c0_81] : memref<1x64x64xf32, #tpu.memory_space<vmem>>, vector<1x64x64xf32>
    %150 = vector.shape_cast %149 : vector<1x64x64xf32> to vector<64x64xf32>
    %151 = vector.shape_cast %148 : vector<64x64xf32> to vector<1x64x64xf32>
    tpu.vector_store %arg25[%c0_79, %c0_80, %c0_81], %151 {strides = array<i32>} : memref<1x64x64xf32, #tpu.memory_space<vmem>>, vector<1x64x64xf32>,
    %cst_82 = arith.constant dense<0xFF800000> : vector<64xf32>
    %152 = vector.multi_reduction <maximumf>, %140, %cst_82 [0] : vector<64x64xf32> to vector<64xf32>
    %153 = vector.shape_cast %152 : vector<64xf32> to vector<1x64xf32>
    %c0_i32_83 = arith.constant 0 : i32
    %154 = arith.cmpi eq, %arg1, %c0_i32_83 : i32
    %155 = arith.extui %154 : i1 to i32
    %c0_i32_84 = arith.constant 0 : i32
    %156 = arith.cmpi ne, %155, %c0_i32_84 : i32
    scf.if %156 {
      %c0_87 = arith.constant 0 : index
      %c0_88 = arith.constant 0 : index
      %c0_89 = arith.constant 0 : index
      %160 = vector.load %arg26[%c0_87, %c0_88, %c0_89] : memref<1x1x64xf32, #tpu.memory_space<vmem>>, vector<1x1x64xf32>
      %161 = vector.shape_cast %160 : vector<1x1x64xf32> to vector<1x64xf32>
      %162 = vector.shape_cast %153 : vector<1x64xf32> to vector<1x1x64xf32>
      tpu.vector_store %arg26[%c0_87, %c0_88, %c0_89], %162 {strides = array<i32>} : memref<1x1x64xf32, #tpu.memory_space<vmem>>, vector<1x1x64xf32>,
    } else {
    }
    %c0_i32_85 = arith.constant 0 : i32
    %157 = arith.cmpi sgt, %arg1, %c0_i32_85 : i32
    %158 = arith.extui %157 : i1 to i32
    %c0_i32_86 = arith.constant 0 : i32
    %159 = arith.cmpi ne, %158, %c0_i32_86 : i32
    scf.if %159 {
      %c0_87 = arith.constant 0 : index
      %c0_88 = arith.constant 0 : index
      %c0_89 = arith.constant 0 : index
      %160 = vector.load %arg26[%c0_87, %c0_88, %c0_89] : memref<1x1x64xf32, #tpu.memory_space<vmem>>, vector<1x1x64xf32>
      %161 = vector.shape_cast %160 : vector<1x1x64xf32> to vector<1x64xf32>
      %162 = arith.maximumf %161, %153 : vector<1x64xf32>
      %c0_90 = arith.constant 0 : index
      %c0_91 = arith.constant 0 : index
      %c0_92 = arith.constant 0 : index
      %163 = vector.load %arg26[%c0_90, %c0_91, %c0_92] : memref<1x1x64xf32, #tpu.memory_space<vmem>>, vector<1x1x64xf32>
      %164 = vector.shape_cast %163 : vector<1x1x64xf32> to vector<1x64xf32>
      %165 = vector.shape_cast %162 : vector<1x64xf32> to vector<1x1x64xf32>
      tpu.vector_store %arg26[%c0_90, %c0_91, %c0_92], %165 {strides = array<i32>} : memref<1x1x64xf32, #tpu.memory_space<vmem>>, vector<1x1x64xf32>,
    } else {
    }
    return
  }
  func.func @transform_0(%arg0: i32, %arg1: i32) -> (i32, i32, i32) {
    %c0_i32 = arith.constant 0 : i32
    %c0_i32_0 = arith.constant 0 : i32
    return %arg0, %arg1, %c0_i32 : i32, i32, i32
  }
  func.func @transform_1(%arg0: i32, %arg1: i32) -> (i32, i32) {
    %c0_i32 = arith.constant 0 : i32
    %c0_i32_0 = arith.constant 0 : i32
    %c0_i32_1 = arith.constant 0 : i32
    return %c0_i32, %c0_i32_0 : i32, i32
  }
  func.func @transform_2(%arg0: i32, %arg1: i32) -> (i32, i32) {
    %c0_i32 = arith.constant 0 : i32
    %c0_i32_0 = arith.constant 0 : i32
    %c0_i32_1 = arith.constant 0 : i32
    return %c0_i32, %c0_i32_0 : i32, i32
  }
  func.func @transform_3(%arg0: i32, %arg1: i32) -> (i32, i32) {
    %c0_i32 = arith.constant 0 : i32
    %c0_i32_0 = arith.constant 0 : i32
    %c0_i32_1 = arith.constant 0 : i32
    return %c0_i32, %c0_i32_0 : i32, i32
  }
  func.func @transform_4(%arg0: i32, %arg1: i32) -> (i32, i32) {
    %c0_i32 = arith.constant 0 : i32
    %c0_i32_0 = arith.constant 0 : i32
    %c0_i32_1 = arith.constant 0 : i32
    return %c0_i32, %c0_i32_0 : i32, i32
  }
  func.func @transform_5(%arg0: i32, %arg1: i32) -> (i32, i32) {
    %c0_i32 = arith.constant 0 : i32
    %c0_i32_0 = arith.constant 0 : i32
    %c0_i32_1 = arith.constant 0 : i32
    return %c0_i32, %c0_i32_0 : i32, i32
  }
  func.func @transform_6(%arg0: i32, %arg1: i32) -> (i32, i32) {
    %c0_i32 = arith.constant 0 : i32
    %c0_i32_0 = arith.constant 0 : i32
    %c0_i32_1 = arith.constant 0 : i32
    return %c0_i32, %c0_i32_0 : i32, i32
  }
  func.func @transform_7(%arg0: i32, %arg1: i32) -> (i32, i32) {
    %c0_i32 = arith.constant 0 : i32
    %c0_i32_0 = arith.constant 0 : i32
    %c0_i32_1 = arith.constant 0 : i32
    return %c0_i32, %c0_i32_0 : i32, i32
  }
  func.func @transform_8(%arg0: i32, %arg1: i32) -> (i32, i32) {
    %c0_i32 = arith.constant 0 : i32
    %c0_i32_0 = arith.constant 0 : i32
    %c0_i32_1 = arith.constant 0 : i32
    return %c0_i32, %c0_i32_0 : i32, i32
  }
  func.func @transform_9(%arg0: i32, %arg1: i32) -> (i32, i32) {
    %c0_i32 = arith.constant 0 : i32
    %c0_i32_0 = arith.constant 0 : i32
    %c0_i32_1 = arith.constant 0 : i32
    return %c0_i32, %c0_i32_0 : i32, i32
  }
  func.func @transform_10(%arg0: i32, %arg1: i32) -> (i32, i32) {
    %c0_i32 = arith.constant 0 : i32
    %c0_i32_0 = arith.constant 0 : i32
    %c0_i32_1 = arith.constant 0 : i32
    return %c0_i32, %c0_i32_0 : i32, i32
  }
  func.func @transform_11(%arg0: i32, %arg1: i32) -> (i32, i32) {
    %c0_i32 = arith.constant 0 : i32
    %c0_i32_0 = arith.constant 0 : i32
    %c0_i32_1 = arith.constant 0 : i32
    return %c0_i32, %c0_i32_0 : i32, i32
  }
  func.func @transform_12(%arg0: i32, %arg1: i32) -> (i32, i32) {
    %c0_i32 = arith.constant 0 : i32
    %c0_i32_0 = arith.constant 0 : i32
    %c0_i32_1 = arith.constant 0 : i32
    return %c0_i32, %c0_i32_0 : i32, i32
  }
  func.func @transform_13(%arg0: i32, %arg1: i32) -> (i32, i32) {
    %c0_i32 = arith.constant 0 : i32
    %c0_i32_0 = arith.constant 0 : i32
    %c0_i32_1 = arith.constant 0 : i32
    return %c0_i32, %c0_i32_0 : i32, i32
  }
  func.func @transform_14(%arg0: i32, %arg1: i32) -> (i32, i32) {
    %c0_i32 = arith.constant 0 : i32
    %c0_i32_0 = arith.constant 0 : i32
    %c0_i32_1 = arith.constant 0 : i32
    return %c0_i32, %c0_i32_0 : i32, i32
  }
  func.func @transform_15(%arg0: i32, %arg1: i32) -> (i32, i32) {
    %c0_i32 = arith.constant 0 : i32
    %c0_i32_0 = arith.constant 0 : i32
    %c0_i32_1 = arith.constant 0 : i32
    return %c0_i32, %c0_i32_0 : i32, i32
  }
  func.func @transform_16(%arg0: i32, %arg1: i32) -> (i32, i32) {
    %c0_i32 = arith.constant 0 : i32
    %c0_i32_0 = arith.constant 0 : i32
    %c0_i32_1 = arith.constant 0 : i32
    return %c0_i32, %c0_i32_0 : i32, i32
  }
  func.func @transform_17(%arg0: i32, %arg1: i32) -> (i32, i32) {
    %c0_i32 = arith.constant 0 : i32
    %c0_i32_0 = arith.constant 0 : i32
    %c0_i32_1 = arith.constant 0 : i32
    return %c0_i32, %c0_i32_0 : i32, i32
  }
  func.func @transform_18(%arg0: i32, %arg1: i32) -> (i32, i32) {
    %c0_i32 = arith.constant 0 : i32
    %c0_i32_0 = arith.constant 0 : i32
    %c0_i32_1 = arith.constant 0 : i32
    return %c0_i32, %c0_i32_0 : i32, i32
  }
  func.func @transform_19(%arg0: i32, %arg1: i32) -> (i32, i32) {
    %c0_i32 = arith.constant 0 : i32
    %c0_i32_0 = arith.constant 0 : i32
    %c0_i32_1 = arith.constant 0 : i32
    return %c0_i32, %c0_i32_0 : i32, i32
  }
  func.func @transform_20(%arg0: i32, %arg1: i32) -> (i32, i32, i32) {
    %c0_i32 = arith.constant 0 : i32
    %c0_i32_0 = arith.constant 0 : i32
    return %arg0, %arg1, %c0_i32 : i32, i32, i32
  }
  func.func @transform_21(%arg0: i32, %arg1: i32) -> (i32, i32, i32) {
    %c0_i32 = arith.constant 0 : i32
    %c0_i32_0 = arith.constant 0 : i32
    return %arg0, %arg1, %c0_i32 : i32, i32, i32
  }
  func.func @transform_22(%arg0: i32, %arg1: i32) -> (i32, i32, i32) {
    %c0_i32 = arith.constant 0 : i32
    %c0_i32_0 = arith.constant 0 : i32
    return %arg0, %arg1, %c0_i32 : i32, i32, i32
  }
  func.func @transform_23(%arg0: i32, %arg1: i32) -> (i32, i32, i32) {
    %c0_i32 = arith.constant 0 : i32
    %c0_i32_0 = arith.constant 0 : i32
    return %arg0, %arg1, %c0_i32 : i32, i32, i32
  }
  func.func @transform_24(%arg0: i32, %arg1: i32) -> (i32, i32, i32) {
    %c0_i32 = arith.constant 0 : i32
    %c0_i32_0 = arith.constant 0 : i32
    %c0_i32_1 = arith.constant 0 : i32
    return %arg0, %c0_i32, %c0_i32_0 : i32, i32, i32
  }
}

</mosaic_0001>

<llo_original>
// kernel: tpu_custom_call.1
$region0: #{tpu_custom_call.1}
  #allocation0 [shape = 'u32[]', space=smem, size = 0x4, offset = 0x4, fixed_abs, tag = 'smem constant byte address 0x4 - core index']
  #allocation1 [shape = 'u32[144,128]{1,0:T(1,128)}', space=vmem, size = 0x12000, scoped, tag = 'internal scratch']
  #allocation2 [shape = 'f32[64,128]{1,0:T(8,128)}', space=vmem, size = 0x8000, scoped, tag = 'scratch operand']
  #allocation3 [shape = 'f32[64,32]{1,0:T(8,128)}', space=vmem, size = 0x8000, scoped, tag = 'scratch operand']
  #allocation4 [shape = 'f32[64,128]{1,0:T(8,128)}', space=vmem, size = 0x8000, scoped, tag = 'scratch operand']
  #allocation5 [shape = 'f32[16,128]{1,0:T(8,128)}', space=vmem, size = 0x2000, scoped, tag = 'scratch operand']
  #allocation6 [shape = 'f32[8,128]{1,0:T(8,128)}', space=vmem, size = 0x1000, scoped, tag = 'scratch operand']
  %s0 = inlined_call_operand.vmem [shape: f32[2,128,3], index: 0, kind: input, shape index: {}]
  %s1 = inlined_call_operand.vmem [shape: f32[3,64], index: 1, kind: input, shape index: {}]
  %s2 = inlined_call_operand.vmem [shape: f32[1,64], index: 2, kind: input, shape index: {}]
  %s3 = inlined_call_operand.vmem [shape: f32[1,64], index: 3, kind: input, shape index: {}]
  %s4 = inlined_call_operand.vmem [shape: f32[1,64], index: 4, kind: input, shape index: {}]
  %s5 = inlined_call_operand.vmem [shape: f32[1,64], index: 5, kind: input, shape index: {}]
  %s6 = inlined_call_operand.vmem [shape: f32[1,64], index: 6, kind: input, shape index: {}]
  %s7 = inlined_call_operand.vmem [shape: bf16[64,128], index: 7, kind: input, shape index: {}]
  %s8 = inlined_call_operand.vmem [shape: f32[1,128], index: 8, kind: input, shape index: {}]
  %s9 = inlined_call_operand.vmem [shape: bf16[64,128], index: 9, kind: input, shape index: {}]
  %s10 = inlined_call_operand.vmem [shape: f32[1,128], index: 10, kind: input, shape index: {}]
  %s11 = inlined_call_operand.vmem [shape: f32[4,128], index: 11, kind: input, shape index: {}]
  %s12 = inlined_call_operand.vmem [shape: f32[1,128], index: 12, kind: input, shape index: {}]
  %s13 = inlined_call_operand.vmem [shape: f32[16,128], index: 13, kind: input, shape index: {}]
  %s14 = inlined_call_operand.vmem [shape: f32[1,128], index: 14, kind: input, shape index: {}]
  %s15 = inlined_call_operand.vmem [shape: bf16[128,32], index: 15, kind: input, shape index: {}]
  %s16 = inlined_call_operand.vmem [shape: bf16[128,64], index: 16, kind: input, shape index: {}]
  %s17 = inlined_call_operand.vmem [shape: f32[1,64], index: 17, kind: input, shape index: {}]
  %s18 = inlined_call_operand.vmem [shape: f32[1,64], index: 18, kind: input, shape index: {}]
  %s19 = inlined_call_operand.vmem [shape: f32[1,64], index: 19, kind: input, shape index: {}]
  %s20 = inlined_call_operand.vmem [shape: f32[2,128,64], index: 20, kind: output, shape index: {0}]
  %s21 = inlined_call_operand.vmem [shape: f32[2,128,64], index: 21, kind: output, shape index: {1}]
  %s22 = inlined_call_operand.vmem [shape: bf16[2,128,64], index: 22, kind: output, shape index: {2}]
  %s23 = inlined_call_operand.vmem [shape: f32[2,128,64], index: 23, kind: output, shape index: {3}]
  %s24 = inlined_call_operand.hbm [shape: f32[2,1,64], index: 24, kind: output, shape index: {4}]
  %25 = xla_tuple %s20, %s21, %s22, %s23, %s24
  %s26 = sld [smem:[#allocation0]]
  $region164: #{tpu_custom_call.1} parent=0
    _
  %s28 = ssub.s32 1, %s26
  %s29 = scalar_select 0, %s28, %s26
  $region1: #{tpu_custom_call.1} parent=0
    #allocation7 [shape = 'u8[1024]{0}', space=vmem, size = 0x400, scoped, tag = 'output window, operand 4']
    #allocation8 [shape = 's32[2]{0}', space=sflag, size = 0x8, scoped, tag = 'scoped memory for tpu_custom_call.1']
    %30 = vsyncpa [#allocation8], 0
    %s31 = scalar_lea.sflag [#allocation8], 1
    %32 = vsyncpa %s31, 0
    loop: start=0, step=1, limit=6
    $region2: #{tpu_custom_call.1} parent=1 // loop_pre_header
      _
    $region3: #{tpu_custom_call.1} parent=1 // loop_header
      %s34 = sphi 0, %s38
      %p35 = scmp.ge.s32.totalorder %s34, 6
      %s41 = sphi 0, %s53
      %s42 = sphi 0, %s49
      %s43 = sphi 0, %s41
      %s44 = sphi 0, %s42
      %s45 = sphi 0, %s43
      %s46 = sphi 0, %s44
      %s58 = sphi 0, %s60
      %s61 = sphi 0, %s58
      %s62 = sphi 0, %s61
      %s78 = sphi 0, %s62
      %s82 = sphi 0, %s82
      %s84 = sphi 0, %s82
      %s85 = sphi 0, %s84
      %s99 = sphi 0, %s85
      %s103 = sphi 0, %s103
      %s105 = sphi 0, %s103
      %s106 = sphi 0, %s105
      %s120 = sphi 0, %s106
      %s124 = sphi 0, %s124
      %s126 = sphi 0, %s124
      %s127 = sphi 0, %s126
      %s141 = sphi 0, %s127
      %s145 = sphi 0, %s145
      %s147 = sphi 0, %s145
      %s148 = sphi 0, %s147
      %s162 = sphi 0, %s148
      %s166 = sphi 0, %s166
      %s168 = sphi 0, %s166
      %s169 = sphi 0, %s168
      %s183 = sphi 0, %s169
      %s187 = sphi 0, %s187
      %s189 = sphi 0, %s187
      %s190 = sphi 0, %s189
      %s204 = sphi 0, %s190
      %s208 = sphi 0, %s208
      %s210 = sphi 0, %s208
      %s211 = sphi 0, %s210
      %s225 = sphi 0, %s211
      %s229 = sphi 0, %s229
      %s231 = sphi 0, %s229
      %s232 = sphi 0, %s231
      %s246 = sphi 0, %s232
      %s250 = sphi 0, %s250
      %s252 = sphi 0, %s250
      %s253 = sphi 0, %s252
      %s267 = sphi 0, %s253
      %s271 = sphi 0, %s271
      %s273 = sphi 0, %s271
      %s274 = sphi 0, %s273
      %s288 = sphi 0, %s274
      %s292 = sphi 0, %s292
      %s294 = sphi 0, %s292
      %s295 = sphi 0, %s294
      %s309 = sphi 0, %s295
      %s313 = sphi 0, %s313
      %s315 = sphi 0, %s313
      %s316 = sphi 0, %s315
      %s330 = sphi 0, %s316
      %s334 = sphi 0, %s334
      %s336 = sphi 0, %s334
      %s337 = sphi 0, %s336
      %s351 = sphi 0, %s337
      %s355 = sphi 0, %s355
      %s357 = sphi 0, %s355
      %s358 = sphi 0, %s357
      %s372 = sphi 0, %s358
      %s376 = sphi 0, %s376
      %s378 = sphi 0, %s376
      %s379 = sphi 0, %s378
      %s393 = sphi 0, %s379
      %s397 = sphi 0, %s397
      %s399 = sphi 0, %s397
      %s400 = sphi 0, %s399
      %s414 = sphi 0, %s400
      %s418 = sphi 0, %s418
      %s420 = sphi 0, %s418
      %s421 = sphi 0, %s420
      %s435 = sphi 0, %s421
      %s439 = sphi 0, %s439
      %s441 = sphi 0, %s439
      %s442 = sphi 0, %s441
      %s456 = sphi 0, %s442
      %s460 = sphi 0, %s460
      %s462 = sphi 0, %s460
      %s463 = sphi 0, %s462
      %s477 = sphi 0, %s463
      %s485 = sphi 0, %s487
      %s488 = sphi 0, %s485
      %s489 = sphi 0, %s488
      %s505 = sphi 0, %s489
      %s513 = sphi 0, %s515
      %s516 = sphi 0, %s513
      %s517 = sphi 0, %s516
      %s533 = sphi 0, %s517
      %s541 = sphi 0, %s543
      %s544 = sphi 0, %s541
      %s545 = sphi 0, %s544
      %s561 = sphi 0, %s545
      %s569 = sphi 0, %s571
      %s572 = sphi 0, %s569
      %s573 = sphi 0, %s572
      %s589 = sphi 0, %s573
      %s595 = sphi 0, %s597
      %s598 = sphi 0, %s595
      %s599 = sphi 0, %s598
      %s615 = sphi 0, %s599
    $region4: #{tpu_custom_call.1} parent=1 // loop_header_branch
      %37 = sbr.rel (%p35) target = $region8
    $region5: #{tpu_custom_call.1} parent=1 // loop_body
      %s39 = ssub.s32 %s34, 1
      %s40 = ssub.s32 %s34, 2
      %s47 = sadd.s32 1, %s42
      %p48 = scmp.ge.s32.totalorder %s47, 2
      %s49 = scalar_select %p48, 0, %s47
      %s50 = sadd.s32 1, %s41
      %s51 = scalar_select %p48, %s50, %s41
      %p52 = scmp.ge.s32.totalorder %s51, 2
      %s53 = scalar_select %p52, 0, %s51
      %s54 = ssub.s32 %s41, %s53
      %s55 = ssub.s32 %s42, %s49
      %s56 = sor.u32 %s54, %s55
      %p57 = scmp.eq.s32.totalorder %s56, 0
      %s59 = sadd.s32 %s58, 1
      %s60 = scalar_select %p57, %s58, %s59
      %p63 = pneg %p57
      %p64 = scmp.eq.s32.totalorder %s34, 3
      %p65 = por %p63, %p64
      %p66 = scmp.ne.s32.totalorder %s58, %s61
      %p67 = scmp.eq.s32.totalorder %s34, 0
      %p68 = por %p66, %p67
      %p69 = scmp.ne.s32.totalorder %s58, %s61
      %p70 = scmp.eq.s32.totalorder %s39, 3
      %p71 = por %p69, %p70
      %p72 = scmp.ne.s32.totalorder %s61, %s62
      %p73 = scmp.eq.s32.totalorder %s39, 0
      %p74 = por %p72, %p73
      %p75 = scmp.ne.s32.totalorder %s61, %s62
      %p76 = scmp.eq.s32.totalorder %s40, 3
      %p77 = por %p75, %p76
      %p79 = scmp.ne.s32.totalorder %s62, %s78
      %p80 = scmp.eq.s32.totalorder %s40, 0
      %p81 = por %p79, %p80
      %s83 = sadd.s32 %s82, 1
      %p86 = scmp.eq.s32.totalorder %s34, 3
      %p87 = scmp.ne.s32.totalorder %s82, %s84
      %p88 = scmp.eq.s32.totalorder %s34, 0
      %p89 = por %p87, %p88
      %p90 = scmp.ne.s32.totalorder %s82, %s84
      %p91 = scmp.eq.s32.totalorder %s39, 3
      %p92 = por %p90, %p91
      %p93 = scmp.ne.s32.totalorder %s84, %s85
      %p94 = scmp.eq.s32.totalorder %s39, 0
      %p95 = por %p93, %p94
      %p96 = scmp.ne.s32.totalorder %s84, %s85
      %p97 = scmp.eq.s32.totalorder %s40, 3
      %p98 = por %p96, %p97
      %p100 = scmp.ne.s32.totalorder %s85, %s99
      %p101 = scmp.eq.s32.totalorder %s40, 0
      %p102 = por %p100, %p101
      %s104 = sadd.s32 %s103, 1
      %p107 = scmp.eq.s32.totalorder %s34, 3
      %p108 = scmp.ne.s32.totalorder %s103, %s105
      %p109 = scmp.eq.s32.totalorder %s34, 0
      %p110 = por %p108, %p109
      %p111 = scmp.ne.s32.totalorder %s103, %s105
      %p112 = scmp.eq.s32.totalorder %s39, 3
      %p113 = por %p111, %p112
      %p114 = scmp.ne.s32.totalorder %s105, %s106
      %p115 = scmp.eq.s32.totalorder %s39, 0
      %p116 = por %p114, %p115
      %p117 = scmp.ne.s32.totalorder %s105, %s106
      %p118 = scmp.eq.s32.totalorder %s40, 3
      %p119 = por %p117, %p118
      %p121 = scmp.ne.s32.totalorder %s106, %s120
      %p122 = scmp.eq.s32.totalorder %s40, 0
      %p123 = por %p121, %p122
      %s125 = sadd.s32 %s124, 1
      %p128 = scmp.eq.s32.totalorder %s34, 3
      %p129 = scmp.ne.s32.totalorder %s124, %s126
      %p130 = scmp.eq.s32.totalorder %s34, 0
      %p131 = por %p129, %p130
      %p132 = scmp.ne.s32.totalorder %s124, %s126
      %p133 = scmp.eq.s32.totalorder %s39, 3
      %p134 = por %p132, %p133
      %p135 = scmp.ne.s32.totalorder %s126, %s127
      %p136 = scmp.eq.s32.totalorder %s39, 0
      %p137 = por %p135, %p136
      %p138 = scmp.ne.s32.totalorder %s126, %s127
      %p139 = scmp.eq.s32.totalorder %s40, 3
      %p140 = por %p138, %p139
      %p142 = scmp.ne.s32.totalorder %s127, %s141
      %p143 = scmp.eq.s32.totalorder %s40, 0
      %p144 = por %p142, %p143
      %s146 = sadd.s32 %s145, 1
      %p149 = scmp.eq.s32.totalorder %s34, 3
      %p150 = scmp.ne.s32.totalorder %s145, %s147
      %p151 = scmp.eq.s32.totalorder %s34, 0
      %p152 = por %p150, %p151
      %p153 = scmp.ne.s32.totalorder %s145, %s147
      %p154 = scmp.eq.s32.totalorder %s39, 3
      %p155 = por %p153, %p154
      %p156 = scmp.ne.s32.totalorder %s147, %s148
      %p157 = scmp.eq.s32.totalorder %s39, 0
      %p158 = por %p156, %p157
      %p159 = scmp.ne.s32.totalorder %s147, %s148
      %p160 = scmp.eq.s32.totalorder %s40, 3
      %p161 = por %p159, %p160
      %p163 = scmp.ne.s32.totalorder %s148, %s162
      %p164 = scmp.eq.s32.totalorder %s40, 0
      %p165 = por %p163, %p164
      %s167 = sadd.s32 %s166, 1
      %p170 = scmp.eq.s32.totalorder %s34, 3
      %p171 = scmp.ne.s32.totalorder %s166, %s168
      %p172 = scmp.eq.s32.totalorder %s34, 0
      %p173 = por %p171, %p172
      %p174 = scmp.ne.s32.totalorder %s166, %s168
      %p175 = scmp.eq.s32.totalorder %s39, 3
      %p176 = por %p174, %p175
      %p177 = scmp.ne.s32.totalorder %s168, %s169
      %p178 = scmp.eq.s32.totalorder %s39, 0
      %p179 = por %p177, %p178
      %p180 = scmp.ne.s32.totalorder %s168, %s169
      %p181 = scmp.eq.s32.totalorder %s40, 3
      %p182 = por %p180, %p181
      %p184 = scmp.ne.s32.totalorder %s169, %s183
      %p185 = scmp.eq.s32.totalorder %s40, 0
      %p186 = por %p184, %p185
      %s188 = sadd.s32 %s187, 1
      %p191 = scmp.eq.s32.totalorder %s34, 3
      %p192 = scmp.ne.s32.totalorder %s187, %s189
      %p193 = scmp.eq.s32.totalorder %s34, 0
      %p194 = por %p192, %p193
      %p195 = scmp.ne.s32.totalorder %s187, %s189
      %p196 = scmp.eq.s32.totalorder %s39, 3
      %p197 = por %p195, %p196
      %p198 = scmp.ne.s32.totalorder %s189, %s190
      %p199 = scmp.eq.s32.totalorder %s39, 0
      %p200 = por %p198, %p199
      %p201 = scmp.ne.s32.totalorder %s189, %s190
      %p202 = scmp.eq.s32.totalorder %s40, 3
      %p203 = por %p201, %p202
      %p205 = scmp.ne.s32.totalorder %s190, %s204
      %p206 = scmp.eq.s32.totalorder %s40, 0
      %p207 = por %p205, %p206
      %s209 = sadd.s32 %s208, 1
      %p212 = scmp.eq.s32.totalorder %s34, 3
      %p213 = scmp.ne.s32.totalorder %s208, %s210
      %p214 = scmp.eq.s32.totalorder %s34, 0
      %p215 = por %p213, %p214
      %p216 = scmp.ne.s32.totalorder %s208, %s210
      %p217 = scmp.eq.s32.totalorder %s39, 3
      %p218 = por %p216, %p217
      %p219 = scmp.ne.s32.totalorder %s210, %s211
      %p220 = scmp.eq.s32.totalorder %s39, 0
      %p221 = por %p219, %p220
      %p222 = scmp.ne.s32.totalorder %s210, %s211
      %p223 = scmp.eq.s32.totalorder %s40, 3
      %p224 = por %p222, %p223
      %p226 = scmp.ne.s32.totalorder %s211, %s225
      %p227 = scmp.eq.s32.totalorder %s40, 0
      %p228 = por %p226, %p227
      %s230 = sadd.s32 %s229, 1
      %p233 = scmp.eq.s32.totalorder %s34, 3
      %p234 = scmp.ne.s32.totalorder %s229, %s231
      %p235 = scmp.eq.s32.totalorder %s34, 0
      %p236 = por %p234, %p235
      %p237 = scmp.ne.s32.totalorder %s229, %s231
      %p238 = scmp.eq.s32.totalorder %s39, 3
      %p239 = por %p237, %p238
      %p240 = scmp.ne.s32.totalorder %s231, %s232
      %p241 = scmp.eq.s32.totalorder %s39, 0
      %p242 = por %p240, %p241
      %p243 = scmp.ne.s32.totalorder %s231, %s232
      %p244 = scmp.eq.s32.totalorder %s40, 3
      %p245 = por %p243, %p244
      %p247 = scmp.ne.s32.totalorder %s232, %s246
      %p248 = scmp.eq.s32.totalorder %s40, 0
      %p249 = por %p247, %p248
      %s251 = sadd.s32 %s250, 1
      %p254 = scmp.eq.s32.totalorder %s34, 3
      %p255 = scmp.ne.s32.totalorder %s250, %s252
      %p256 = scmp.eq.s32.totalorder %s34, 0
      %p257 = por %p255, %p256
      %p258 = scmp.ne.s32.totalorder %s250, %s252
      %p259 = scmp.eq.s32.totalorder %s39, 3
      %p260 = por %p258, %p259
      %p261 = scmp.ne.s32.totalorder %s252, %s253
      %p262 = scmp.eq.s32.totalorder %s39, 0
      %p263 = por %p261, %p262
      %p264 = scmp.ne.s32.totalorder %s252, %s253
      %p265 = scmp.eq.s32.totalorder %s40, 3
      %p266 = por %p264, %p265
      %p268 = scmp.ne.s32.totalorder %s253, %s267
      %p269 = scmp.eq.s32.totalorder %s40, 0
      %p270 = por %p268, %p269
      %s272 = sadd.s32 %s271, 1
      %p275 = scmp.eq.s32.totalorder %s34, 3
      %p276 = scmp.ne.s32.totalorder %s271, %s273
      %p277 = scmp.eq.s32.totalorder %s34, 0
      %p278 = por %p276, %p277
      %p279 = scmp.ne.s32.totalorder %s271, %s273
      %p280 = scmp.eq.s32.totalorder %s39, 3
      %p281 = por %p279, %p280
      %p282 = scmp.ne.s32.totalorder %s273, %s274
      %p283 = scmp.eq.s32.totalorder %s39, 0
      %p284 = por %p282, %p283
      %p285 = scmp.ne.s32.totalorder %s273, %s274
      %p286 = scmp.eq.s32.totalorder %s40, 3
      %p287 = por %p285, %p286
      %p289 = scmp.ne.s32.totalorder %s274, %s288
      %p290 = scmp.eq.s32.totalorder %s40, 0
      %p291 = por %p289, %p290
      %s293 = sadd.s32 %s292, 1
      %p296 = scmp.eq.s32.totalorder %s34, 3
      %p297 = scmp.ne.s32.totalorder %s292, %s294
      %p298 = scmp.eq.s32.totalorder %s34, 0
      %p299 = por %p297, %p298
      %p300 = scmp.ne.s32.totalorder %s292, %s294
      %p301 = scmp.eq.s32.totalorder %s39, 3
      %p302 = por %p300, %p301
      %p303 = scmp.ne.s32.totalorder %s294, %s295
      %p304 = scmp.eq.s32.totalorder %s39, 0
      %p305 = por %p303, %p304
      %p306 = scmp.ne.s32.totalorder %s294, %s295
      %p307 = scmp.eq.s32.totalorder %s40, 3
      %p308 = por %p306, %p307
      %p310 = scmp.ne.s32.totalorder %s295, %s309
      %p311 = scmp.eq.s32.totalorder %s40, 0
      %p312 = por %p310, %p311
      %s314 = sadd.s32 %s313, 1
      %p317 = scmp.eq.s32.totalorder %s34, 3
      %p318 = scmp.ne.s32.totalorder %s313, %s315
      %p319 = scmp.eq.s32.totalorder %s34, 0
      %p320 = por %p318, %p319
      %p321 = scmp.ne.s32.totalorder %s313, %s315
      %p322 = scmp.eq.s32.totalorder %s39, 3
      %p323 = por %p321, %p322
      %p324 = scmp.ne.s32.totalorder %s315, %s316
      %p325 = scmp.eq.s32.totalorder %s39, 0
      %p326 = por %p324, %p325
      %p327 = scmp.ne.s32.totalorder %s315, %s316
      %p328 = scmp.eq.s32.totalorder %s40, 3
      %p329 = por %p327, %p328
      %p331 = scmp.ne.s32.totalorder %s316, %s330
      %p332 = scmp.eq.s32.totalorder %s40, 0
      %p333 = por %p331, %p332
      %s335 = sadd.s32 %s334, 1
      %p338 = scmp.eq.s32.totalorder %s34, 3
      %p339 = scmp.ne.s32.totalorder %s334, %s336
      %p340 = scmp.eq.s32.totalorder %s34, 0
      %p341 = por %p339, %p340
      %p342 = scmp.ne.s32.totalorder %s334, %s336
      %p343 = scmp.eq.s32.totalorder %s39, 3
      %p344 = por %p342, %p343
      %p345 = scmp.ne.s32.totalorder %s336, %s337
      %p346 = scmp.eq.s32.totalorder %s39, 0
      %p347 = por %p345, %p346
      %p348 = scmp.ne.s32.totalorder %s336, %s337
      %p349 = scmp.eq.s32.totalorder %s40, 3
      %p350 = por %p348, %p349
      %p352 = scmp.ne.s32.totalorder %s337, %s351
      %p353 = scmp.eq.s32.totalorder %s40, 0
      %p354 = por %p352, %p353
      %s356 = sadd.s32 %s355, 1
      %p359 = scmp.eq.s32.totalorder %s34, 3
      %p360 = scmp.ne.s32.totalorder %s355, %s357
      %p361 = scmp.eq.s32.totalorder %s34, 0
      %p362 = por %p360, %p361
      %p363 = scmp.ne.s32.totalorder %s355, %s357
      %p364 = scmp.eq.s32.totalorder %s39, 3
      %p365 = por %p363, %p364
      %p366 = scmp.ne.s32.totalorder %s357, %s358
      %p367 = scmp.eq.s32.totalorder %s39, 0
      %p368 = por %p366, %p367
      %p369 = scmp.ne.s32.totalorder %s357, %s358
      %p370 = scmp.eq.s32.totalorder %s40, 3
      %p371 = por %p369, %p370
      %p373 = scmp.ne.s32.totalorder %s358, %s372
      %p374 = scmp.eq.s32.totalorder %s40, 0
      %p375 = por %p373, %p374
      %s377 = sadd.s32 %s376, 1
      %p380 = scmp.eq.s32.totalorder %s34, 3
      %p381 = scmp.ne.s32.totalorder %s376, %s378
      %p382 = scmp.eq.s32.totalorder %s34, 0
      %p383 = por %p381, %p382
      %p384 = scmp.ne.s32.totalorder %s376, %s378
      %p385 = scmp.eq.s32.totalorder %s39, 3
      %p386 = por %p384, %p385
      %p387 = scmp.ne.s32.totalorder %s378, %s379
      %p388 = scmp.eq.s32.totalorder %s39, 0
      %p389 = por %p387, %p388
      %p390 = scmp.ne.s32.totalorder %s378, %s379
      %p391 = scmp.eq.s32.totalorder %s40, 3
      %p392 = por %p390, %p391
      %p394 = scmp.ne.s32.totalorder %s379, %s393
      %p395 = scmp.eq.s32.totalorder %s40, 0
      %p396 = por %p394, %p395
      %s398 = sadd.s32 %s397, 1
      %p401 = scmp.eq.s32.totalorder %s34, 3
      %p402 = scmp.ne.s32.totalorder %s397, %s399
      %p403 = scmp.eq.s32.totalorder %s34, 0
      %p404 = por %p402, %p403
      %p405 = scmp.ne.s32.totalorder %s397, %s399
      %p406 = scmp.eq.s32.totalorder %s39, 3
      %p407 = por %p405, %p406
      %p408 = scmp.ne.s32.totalorder %s399, %s400
      %p409 = scmp.eq.s32.totalorder %s39, 0
      %p410 = por %p408, %p409
      %p411 = scmp.ne.s32.totalorder %s399, %s400
      %p412 = scmp.eq.s32.totalorder %s40, 3
      %p413 = por %p411, %p412
      %p415 = scmp.ne.s32.totalorder %s400, %s414
      %p416 = scmp.eq.s32.totalorder %s40, 0
      %p417 = por %p415, %p416
      %s419 = sadd.s32 %s418, 1
      %p422 = scmp.eq.s32.totalorder %s34, 3
      %p423 = scmp.ne.s32.totalorder %s418, %s420
      %p424 = scmp.eq.s32.totalorder %s34, 0
      %p425 = por %p423, %p424
      %p426 = scmp.ne.s32.totalorder %s418, %s420
      %p427 = scmp.eq.s32.totalorder %s39, 3
      %p428 = por %p426, %p427
      %p429 = scmp.ne.s32.totalorder %s420, %s421
      %p430 = scmp.eq.s32.totalorder %s39, 0
      %p431 = por %p429, %p430
      %p432 = scmp.ne.s32.totalorder %s420, %s421
      %p433 = scmp.eq.s32.totalorder %s40, 3
      %p434 = por %p432, %p433
      %p436 = scmp.ne.s32.totalorder %s421, %s435
      %p437 = scmp.eq.s32.totalorder %s40, 0
      %p438 = por %p436, %p437
      %s440 = sadd.s32 %s439, 1
      %p443 = scmp.eq.s32.totalorder %s34, 3
      %p444 = scmp.ne.s32.totalorder %s439, %s441
      %p445 = scmp.eq.s32.totalorder %s34, 0
      %p446 = por %p444, %p445
      %p447 = scmp.ne.s32.totalorder %s439, %s441
      %p448 = scmp.eq.s32.totalorder %s39, 3
      %p449 = por %p447, %p448
      %p450 = scmp.ne.s32.totalorder %s441, %s442
      %p451 = scmp.eq.s32.totalorder %s39, 0
      %p452 = por %p450, %p451
      %p453 = scmp.ne.s32.totalorder %s441, %s442
      %p454 = scmp.eq.s32.totalorder %s40, 3
      %p455 = por %p453, %p454
      %p457 = scmp.ne.s32.totalorder %s442, %s456
      %p458 = scmp.eq.s32.totalorder %s40, 0
      %p459 = por %p457, %p458
      %s461 = sadd.s32 %s460, 1
      %p464 = scmp.eq.s32.totalorder %s34, 3
      %p465 = scmp.ne.s32.totalorder %s460, %s462
      %p466 = scmp.eq.s32.totalorder %s34, 0
      %p467 = por %p465, %p466
      %p468 = scmp.ne.s32.totalorder %s460, %s462
      %p469 = scmp.eq.s32.totalorder %s39, 3
      %p470 = por %p468, %p469
      %p471 = scmp.ne.s32.totalorder %s462, %s463
      %p472 = scmp.eq.s32.totalorder %s39, 0
      %p473 = por %p471, %p472
      %p474 = scmp.ne.s32.totalorder %s462, %s463
      %p475 = scmp.eq.s32.totalorder %s40, 3
      %p476 = por %p474, %p475
      %p478 = scmp.ne.s32.totalorder %s463, %s477
      %p479 = scmp.eq.s32.totalorder %s40, 0
      %p480 = por %p478, %p479
      %s481 = ssub.s32 %s41, %s53
      %s482 = ssub.s32 %s42, %s49
      %s483 = sor.u32 %s481, %s482
      %p484 = scmp.eq.s32.totalorder %s483, 0
      %s486 = sadd.s32 %s485, 1
      %s487 = scalar_select %p484, %s485, %s486
      %p490 = pneg %p484
      %p491 = scmp.eq.s32.totalorder %s34, 3
      %p492 = por %p490, %p491
      %p493 = scmp.ne.s32.totalorder %s485, %s488
      %p494 = scmp.eq.s32.totalorder %s34, 0
      %p495 = por %p493, %p494
      %p496 = scmp.ne.s32.totalorder %s485, %s488
      %p497 = scmp.eq.s32.totalorder %s39, 3
      %p498 = por %p496, %p497
      %p499 = scmp.ne.s32.totalorder %s488, %s489
      %p500 = scmp.eq.s32.totalorder %s39, 0
      %p501 = por %p499, %p500
      %p502 = scmp.ne.s32.totalorder %s488, %s489
      %p503 = scmp.eq.s32.totalorder %s40, 3
      %p504 = por %p502, %p503
      %p506 = scmp.ne.s32.totalorder %s489, %s505
      %p507 = scmp.eq.s32.totalorder %s40, 0
      %p508 = por %p506, %p507
      %s509 = ssub.s32 %s41, %s53
      %s510 = ssub.s32 %s42, %s49
      %s511 = sor.u32 %s509, %s510
      %p512 = scmp.eq.s32.totalorder %s511, 0
      %s514 = sadd.s32 %s513, 1
      %s515 = scalar_select %p512, %s513, %s514
      %p518 = pneg %p512
      %p519 = scmp.eq.s32.totalorder %s34, 3
      %p520 = por %p518, %p519
      %p521 = scmp.ne.s32.totalorder %s513, %s516
      %p522 = scmp.eq.s32.totalorder %s34, 0
      %p523 = por %p521, %p522
      %p524 = scmp.ne.s32.totalorder %s513, %s516
      %p525 = scmp.eq.s32.totalorder %s39, 3
      %p526 = por %p524, %p525
      %p527 = scmp.ne.s32.totalorder %s516, %s517
      %p528 = scmp.eq.s32.totalorder %s39, 0
      %p529 = por %p527, %p528
      %p530 = scmp.ne.s32.totalorder %s516, %s517
      %p531 = scmp.eq.s32.totalorder %s40, 3
      %p532 = por %p530, %p531
      %p534 = scmp.ne.s32.totalorder %s517, %s533
      %p535 = scmp.eq.s32.totalorder %s40, 0
      %p536 = por %p534, %p535
      %s537 = ssub.s32 %s41, %s53
      %s538 = ssub.s32 %s42, %s49
      %s539 = sor.u32 %s537, %s538
      %p540 = scmp.eq.s32.totalorder %s539, 0
      %s542 = sadd.s32 %s541, 1
      %s543 = scalar_select %p540, %s541, %s542
      %p546 = pneg %p540
      %p547 = scmp.eq.s32.totalorder %s34, 3
      %p548 = por %p546, %p547
      %p549 = scmp.ne.s32.totalorder %s541, %s544
      %p550 = scmp.eq.s32.totalorder %s34, 0
      %p551 = por %p549, %p550
      %p552 = scmp.ne.s32.totalorder %s541, %s544
      %p553 = scmp.eq.s32.totalorder %s39, 3
      %p554 = por %p552, %p553
      %p555 = scmp.ne.s32.totalorder %s544, %s545
      %p556 = scmp.eq.s32.totalorder %s39, 0
      %p557 = por %p555, %p556
      %p558 = scmp.ne.s32.totalorder %s544, %s545
      %p559 = scmp.eq.s32.totalorder %s40, 3
      %p560 = por %p558, %p559
      %p562 = scmp.ne.s32.totalorder %s545, %s561
      %p563 = scmp.eq.s32.totalorder %s40, 0
      %p564 = por %p562, %p563
      %s565 = ssub.s32 %s41, %s53
      %s566 = ssub.s32 %s42, %s49
      %s567 = sor.u32 %s565, %s566
      %p568 = scmp.eq.s32.totalorder %s567, 0
      %s570 = sadd.s32 %s569, 1
      %s571 = scalar_select %p568, %s569, %s570
      %p574 = pneg %p568
      %p575 = scmp.eq.s32.totalorder %s34, 3
      %p576 = por %p574, %p575
      %p577 = scmp.ne.s32.totalorder %s569, %s572
      %p578 = scmp.eq.s32.totalorder %s34, 0
      %p579 = por %p577, %p578
      %p580 = scmp.ne.s32.totalorder %s569, %s572
      %p581 = scmp.eq.s32.totalorder %s39, 3
      %p582 = por %p580, %p581
      %p583 = scmp.ne.s32.totalorder %s572, %s573
      %p584 = scmp.eq.s32.totalorder %s39, 0
      %p585 = por %p583, %p584
      %p586 = scmp.ne.s32.totalorder %s572, %s573
      %p587 = scmp.eq.s32.totalorder %s40, 3
      %p588 = por %p586, %p587
      %p590 = scmp.ne.s32.totalorder %s573, %s589
      %p591 = scmp.eq.s32.totalorder %s40, 0
      %p592 = por %p590, %p591
      %s593 = ssub.s32 %s41, %s53
      %p594 = scmp.eq.s32.totalorder %s593, 0
      %s596 = sadd.s32 %s595, 1
      %s597 = scalar_select %p594, %s595, %s596
      %p600 = pneg %p594
      %p601 = scmp.eq.s32.totalorder %s34, 3
      %p602 = por %p600, %p601
      %p603 = scmp.ne.s32.totalorder %s595, %s598
      %p604 = scmp.eq.s32.totalorder %s34, 0
      %p605 = por %p603, %p604
      %p606 = scmp.ne.s32.totalorder %s595, %s598
      %p607 = scmp.eq.s32.totalorder %s39, 3
      %p608 = por %p606, %p607
      %p609 = scmp.ne.s32.totalorder %s598, %s599
      %p610 = scmp.eq.s32.totalorder %s39, 0
      %p611 = por %p609, %p610
      %p612 = scmp.ne.s32.totalorder %s598, %s599
      %p613 = scmp.eq.s32.totalorder %s40, 3
      %p614 = por %p612, %p613
      %p616 = scmp.ne.s32.totalorder %s599, %s615
      %p617 = scmp.eq.s32.totalorder %s40, 0
      %p618 = por %p616, %p617
      %p619 = scmp.le.s32.totalorder 1, %s34
      %p620 = scmp.lt.s32.totalorder %s34, 5
      %p621 = pnand %p619, %p620
      %p622 = pneg %p621
      // Predicated region
      $region9: #{tpu_custom_call.1} parent=5 // pred_check
        _
      $region10: #{tpu_custom_call.1} parent=5 // pred_check_branch
        %624 = sbr.rel (%p621) target = $region12
      $region11: #{tpu_custom_call.1} parent=5 // pred_region
        %s625 = ssub.s32 %s34, 1
        // Predicated region
        $region13: #{tpu_custom_call.1} parent=11 // pred_check
          %p626 = pneg %p95
        $region14: #{tpu_custom_call.1} parent=11 // pred_check_branch
          %628 = sbr.rel (%p626) target = $region16
        $region15: #{tpu_custom_call.1} parent=11 // pred_region
          _
        $region16: #{tpu_custom_call.1} parent=11 // pred_fallthru
          _
        // Predicated region
        $region17: #{tpu_custom_call.1} parent=11 // pred_check
          %p629 = pneg %p116
        $region18: #{tpu_custom_call.1} parent=11 // pred_check_branch
          %631 = sbr.rel (%p629) target = $region20
        $region19: #{tpu_custom_call.1} parent=11 // pred_region
          _
        $region20: #{tpu_custom_call.1} parent=11 // pred_fallthru
          _
        // Predicated region
        $region21: #{tpu_custom_call.1} parent=11 // pred_check
          %p632 = pneg %p137
        $region22: #{tpu_custom_call.1} parent=11 // pred_check_branch
          %634 = sbr.rel (%p632) target = $region24
        $region23: #{tpu_custom_call.1} parent=11 // pred_region
          _
        $region24: #{tpu_custom_call.1} parent=11 // pred_fallthru
          _
        // Predicated region
        $region25: #{tpu_custom_call.1} parent=11 // pred_check
          %p635 = pneg %p158
        $region26: #{tpu_custom_call.1} parent=11 // pred_check_branch
          %637 = sbr.rel (%p635) target = $region28
        $region27: #{tpu_custom_call.1} parent=11 // pred_region
          _
        $region28: #{tpu_custom_call.1} parent=11 // pred_fallthru
          _
        // Predicated region
        $region29: #{tpu_custom_call.1} parent=11 // pred_check
          %p638 = pneg %p179
        $region30: #{tpu_custom_call.1} parent=11 // pred_check_branch
          %640 = sbr.rel (%p638) target = $region32
        $region31: #{tpu_custom_call.1} parent=11 // pred_region
          _
        $region32: #{tpu_custom_call.1} parent=11 // pred_fallthru
          _
        // Predicated region
        $region33: #{tpu_custom_call.1} parent=11 // pred_check
          %p641 = pneg %p200
        $region34: #{tpu_custom_call.1} parent=11 // pred_check_branch
          %643 = sbr.rel (%p641) target = $region36
        $region35: #{tpu_custom_call.1} parent=11 // pred_region
          _
        $region36: #{tpu_custom_call.1} parent=11 // pred_fallthru
          _
        // Predicated region
        $region37: #{tpu_custom_call.1} parent=11 // pred_check
          %p644 = pneg %p221
        $region38: #{tpu_custom_call.1} parent=11 // pred_check_branch
          %646 = sbr.rel (%p644) target = $region40
        $region39: #{tpu_custom_call.1} parent=11 // pred_region
          _
        $region40: #{tpu_custom_call.1} parent=11 // pred_fallthru
          _
        // Predicated region
        $region41: #{tpu_custom_call.1} parent=11 // pred_check
          %p647 = pneg %p242
        $region42: #{tpu_custom_call.1} parent=11 // pred_check_branch
          %649 = sbr.rel (%p647) target = $region44
        $region43: #{tpu_custom_call.1} parent=11 // pred_region
          _
        $region44: #{tpu_custom_call.1} parent=11 // pred_fallthru
          _
        // Predicated region
        $region45: #{tpu_custom_call.1} parent=11 // pred_check
          %p650 = pneg %p263
        $region46: #{tpu_custom_call.1} parent=11 // pred_check_branch
          %652 = sbr.rel (%p650) target = $region48
        $region47: #{tpu_custom_call.1} parent=11 // pred_region
          _
        $region48: #{tpu_custom_call.1} parent=11 // pred_fallthru
          _
        // Predicated region
        $region49: #{tpu_custom_call.1} parent=11 // pred_check
          %p653 = pneg %p284
        $region50: #{tpu_custom_call.1} parent=11 // pred_check_branch
          %655 = sbr.rel (%p653) target = $region52
        $region51: #{tpu_custom_call.1} parent=11 // pred_region
          _
        $region52: #{tpu_custom_call.1} parent=11 // pred_fallthru
          _
        // Predicated region
        $region53: #{tpu_custom_call.1} parent=11 // pred_check
          %p656 = pneg %p305
        $region54: #{tpu_custom_call.1} parent=11 // pred_check_branch
          %658 = sbr.rel (%p656) target = $region56
        $region55: #{tpu_custom_call.1} parent=11 // pred_region
          _
        $region56: #{tpu_custom_call.1} parent=11 // pred_fallthru
          _
        // Predicated region
        $region57: #{tpu_custom_call.1} parent=11 // pred_check
          %p659 = pneg %p326
        $region58: #{tpu_custom_call.1} parent=11 // pred_check_branch
          %661 = sbr.rel (%p659) target = $region60
        $region59: #{tpu_custom_call.1} parent=11 // pred_region
          _
        $region60: #{tpu_custom_call.1} parent=11 // pred_fallthru
          _
        // Predicated region
        $region61: #{tpu_custom_call.1} parent=11 // pred_check
          %p662 = pneg %p347
        $region62: #{tpu_custom_call.1} parent=11 // pred_check_branch
          %664 = sbr.rel (%p662) target = $region64
        $region63: #{tpu_custom_call.1} parent=11 // pred_region
          _
        $region64: #{tpu_custom_call.1} parent=11 // pred_fallthru
          _
        // Predicated region
        $region65: #{tpu_custom_call.1} parent=11 // pred_check
          %p665 = pneg %p368
        $region66: #{tpu_custom_call.1} parent=11 // pred_check_branch
          %667 = sbr.rel (%p665) target = $region68
        $region67: #{tpu_custom_call.1} parent=11 // pred_region
          _
        $region68: #{tpu_custom_call.1} parent=11 // pred_fallthru
          _
        // Predicated region
        $region69: #{tpu_custom_call.1} parent=11 // pred_check
          %p668 = pneg %p389
        $region70: #{tpu_custom_call.1} parent=11 // pred_check_branch
          %670 = sbr.rel (%p668) target = $region72
        $region71: #{tpu_custom_call.1} parent=11 // pred_region
          _
        $region72: #{tpu_custom_call.1} parent=11 // pred_fallthru
          _
        // Predicated region
        $region73: #{tpu_custom_call.1} parent=11 // pred_check
          %p671 = pneg %p410
        $region74: #{tpu_custom_call.1} parent=11 // pred_check_branch
          %673 = sbr.rel (%p671) target = $region76
        $region75: #{tpu_custom_call.1} parent=11 // pred_region
          _
        $region76: #{tpu_custom_call.1} parent=11 // pred_fallthru
          _
        // Predicated region
        $region77: #{tpu_custom_call.1} parent=11 // pred_check
          %p674 = pneg %p431
        $region78: #{tpu_custom_call.1} parent=11 // pred_check_branch
          %676 = sbr.rel (%p674) target = $region80
        $region79: #{tpu_custom_call.1} parent=11 // pred_region
          _
        $region80: #{tpu_custom_call.1} parent=11 // pred_fallthru
          _
        // Predicated region
        $region81: #{tpu_custom_call.1} parent=11 // pred_check
          %p677 = pneg %p452
        $region82: #{tpu_custom_call.1} parent=11 // pred_check_branch
          %679 = sbr.rel (%p677) target = $region84
        $region83: #{tpu_custom_call.1} parent=11 // pred_region
          _
        $region84: #{tpu_custom_call.1} parent=11 // pred_fallthru
          _
        // Predicated region
        $region85: #{tpu_custom_call.1} parent=11 // pred_check
          %p680 = pneg %p473
        $region86: #{tpu_custom_call.1} parent=11 // pred_check_branch
          %682 = sbr.rel (%p680) target = $region88
        $region87: #{tpu_custom_call.1} parent=11 // pred_region
          _
        $region88: #{tpu_custom_call.1} parent=11 // pred_fallthru
          _
      $region12: #{tpu_custom_call.1} parent=5 // pred_fallthru
        _
      %p683 = scmp.lt.s32.totalorder %s34, 4
      // Predicated region
      $region89: #{tpu_custom_call.1} parent=5 // pred_check
        %p684 = pneg %p683
      $region90: #{tpu_custom_call.1} parent=5 // pred_check_branch
        %686 = sbr.rel (%p684) target = $region92
      $region91: #{tpu_custom_call.1} parent=5 // pred_region
        // Predicated region
        $region93: #{tpu_custom_call.1} parent=91 // pred_check
          %p687 = pneg %p68
        $region94: #{tpu_custom_call.1} parent=91 // pred_check_branch
          %689 = sbr.rel (%p687) target = $region96
        $region95: #{tpu_custom_call.1} parent=91 // pred_region
          %s690 = smul.u32 8, %s42
          %p691 = scmp.lt.s32.totalorder %s41, 1
          %s692 = scalar_select %p691, %s41, 1
          %p693 = scmp.lt.s32.totalorder %s690, 15
          %s694 = scalar_select %p693, %s690, 15
          %s695 = smul.addr %s692, 16
          %s696 = sadd.s32 %s694, %s695
          %s697 = smul.addr %s696, 8
          %s698 = scalar_lea.vmem %s0, %s697
          %s699 = smul.u32 8, %s42
        $region96: #{tpu_custom_call.1} parent=91 // pred_fallthru
          _
      $region92: #{tpu_custom_call.1} parent=5 // pred_fallthru
        _
      %p700 = scmp.le.s32.totalorder 1, %s34
      %p701 = scmp.lt.s32.totalorder %s34, 5
      %p702 = pnand %p700, %p701
      %p703 = pneg %p702
      // Predicated region
      $region97: #{tpu_custom_call.1} parent=5 // pred_check
        _
      $region98: #{tpu_custom_call.1} parent=5 // pred_check_branch
        %705 = sbr.rel (%p702) target = $region100
      $region99: #{tpu_custom_call.1} parent=5 // pred_region
        %s706 = ssub.s32 %s34, 1
        %s707 = smul.u32 8, %s44
        %p708 = scmp.lt.s32.totalorder %s43, 1
        %s709 = scalar_select %p708, %s43, 1
        %p710 = scmp.lt.s32.totalorder %s707, 15
        %s711 = scalar_select %p710, %s707, 15
        %s712 = smul.addr %s709, 16
        %s713 = sadd.s32 %s711, %s712
        %s714 = smul.addr %s713, 8
        %s715 = scalar_lea.vmem %s0, %s714
        %p716 = pneg %p74
        %p717 = pneg %p71
        %p718 = pneg %p95
        %p719 = pneg %p92
        %p720 = pneg %p116
        %p721 = pneg %p113
        %p722 = pneg %p137
        %p723 = pneg %p134
        %p724 = pneg %p158
        %p725 = pneg %p155
        %p726 = pneg %p179
        %p727 = pneg %p176
        %p728 = pneg %p200
        %p729 = pneg %p197
        %p730 = pneg %p221
        %p731 = pneg %p218
        %p732 = pneg %p242
        %p733 = pneg %p239
        %p734 = pneg %p263
        %p735 = pneg %p260
        %p736 = pneg %p284
        %p737 = pneg %p281
        %p738 = pneg %p305
        %p739 = pneg %p302
        %p740 = pneg %p326
        %p741 = pneg %p323
        %p742 = pneg %p347
        %p743 = pneg %p344
        %p744 = pneg %p368
        %p745 = pneg %p365
        %p746 = pneg %p389
        %p747 = pneg %p386
        %p748 = pneg %p410
        %p749 = pneg %p407
        %p750 = pneg %p431
        %p751 = pneg %p428
        %p752 = pneg %p452
        %p753 = pneg %p449
        %p754 = pneg %p473
        %p755 = pneg %p470
        %p756 = pneg %p501
        %p757 = pneg %p498
        %s758 = smul.u32 8, %s44
        %p759 = scmp.lt.s32.totalorder %s43, 1
        %s760 = scalar_select %p759, %s43, 1
        %p761 = scmp.lt.s32.totalorder %s758, 15
        %s762 = scalar_select %p761, %s758, 15
        %s763 = smul.addr %s760, 16
        %s764 = sadd.s32 %s762, %s763
        %s765 = smul.addr %s764, 8
        %s766 = scalar_lea.vmem %s20, %s765
        %p767 = pneg %p529
        %p768 = pneg %p526
        %s769 = smul.u32 8, %s44
        %p770 = scmp.lt.s32.totalorder %s43, 1
        %s771 = scalar_select %p770, %s43, 1
        %p772 = scmp.lt.s32.totalorder %s769, 15
        %s773 = scalar_select %p772, %s769, 15
        %s774 = smul.addr %s771, 16
        %s775 = sadd.s32 %s773, %s774
        %s776 = smul.addr %s775, 8
        %s777 = scalar_lea.vmem %s21, %s776
        %p778 = pneg %p557
        %p779 = pneg %p554
        %s780 = smul.u32 8, %s44
        %p781 = scmp.lt.s32.totalorder %s43, 1
        %s782 = scalar_select %p781, %s43, 1
        %p783 = scmp.lt.s32.totalorder %s780, 15
        %s784 = scalar_select %p783, %s780, 15
        %s785 = smul.addr %s782, 16
        %s786 = sadd.s32 %s784, %s785
        %s787 = smul.addr %s786, 4
        %s788 = scalar_lea.vmem %s22, %s787
        %p789 = pneg %p585
        %p790 = pneg %p582
        %s791 = smul.u32 8, %s44
        %p792 = scmp.lt.s32.totalorder %s43, 1
        %s793 = scalar_select %p792, %s43, 1
        %p794 = scmp.lt.s32.totalorder %s791, 15
        %s795 = scalar_select %p794, %s791, 15
        %s796 = smul.addr %s793, 16
        %s797 = sadd.s32 %s795, %s796
        %s798 = smul.addr %s797, 8
        %s799 = scalar_lea.vmem %s23, %s798
        %p800 = pneg %p611
        %p801 = pneg %p608
        %s802 = sand.u32 %s598, 1
        %s803 = scalar_lea.sflag [#allocation8], %s802
        %s804 = sand.u32 %s598, 1
        %s805 = scalar_lea.vmem [#allocation7], %s804
        %s806 = smul.u32 8, %s44
        %p807 = scmp.lt.s32.totalorder %s43, 1
        %s808 = scalar_select %p807, %s43, 1
        %p809 = scmp.lt.s32.totalorder %s806, 15
        %s810 = scalar_select %p809, %s806, 15
        %s811 = smul.addr %s808, 16
        %s812 = sadd.s32 %s810, %s811
        %s813 = smul.addr %s812, 8
        %s814 = scalar_lea.vmem %s0, %s813
        %s815 = smul.u32 8, %s44
        %s816 = smul.u32 8, %s44
        %p817 = scmp.lt.s32.totalorder %s43, 1
        %s818 = scalar_select %p817, %s43, 1
        %p819 = scmp.lt.s32.totalorder %s816, 15
        %s820 = scalar_select %p819, %s816, 15
        %s821 = smul.addr %s818, 16
        %s822 = sadd.s32 %s820, %s821
        %s823 = smul.addr %s822, 8
        %s824 = scalar_lea.vmem %s20, %s823
        %s825 = smul.u32 8, %s44
        %s826 = smul.u32 8, %s44
        %p827 = scmp.lt.s32.totalorder %s43, 1
        %s828 = scalar_select %p827, %s43, 1
        %p829 = scmp.lt.s32.totalorder %s826, 15
        %s830 = scalar_select %p829, %s826, 15
        %s831 = smul.addr %s828, 16
        %s832 = sadd.s32 %s830, %s831
        %s833 = smul.addr %s832, 8
        %s834 = scalar_lea.vmem %s21, %s833
        %s835 = smul.u32 8, %s44
        %s836 = smul.u32 8, %s44
        %p837 = scmp.lt.s32.totalorder %s43, 1
        %s838 = scalar_select %p837, %s43, 1
        %p839 = scmp.lt.s32.totalorder %s836, 15
        %s840 = scalar_select %p839, %s836, 15
        %s841 = smul.addr %s838, 16
        %s842 = sadd.s32 %s840, %s841
        %s843 = smul.addr %s842, 4
        %s844 = scalar_lea.vmem %s22, %s843
        %s845 = smul.u32 8, %s44
        %s846 = smul.u32 8, %s44
        %p847 = scmp.lt.s32.totalorder %s43, 1
        %s848 = scalar_select %p847, %s43, 1
        %p849 = scmp.lt.s32.totalorder %s846, 15
        %s850 = scalar_select %p849, %s846, 15
        %s851 = smul.addr %s848, 16
        %s852 = sadd.s32 %s850, %s851
        %s853 = smul.addr %s852, 8
        %s854 = scalar_lea.vmem %s23, %s853
        %s855 = smul.u32 8, %s44
        %p857 = scmp.eq.s32.totalorder %s44, 0
        // Predicated region
        $region101: #{tpu_custom_call.1} parent=99 // pred_check
          %p858 = pneg %p857
        $region102: #{tpu_custom_call.1} parent=99 // pred_check_branch
          %860 = sbr.rel (%p858) target = $region104
        $region103: #{tpu_custom_call.1} parent=99 // pred_region
          %861 = vst [vmem:[#allocation5] sm:$0xff] 0.0
          %862 = vst [vmem:[#allocation5 + $0x8] sm:$0xff] 0.0
          %863 = vst [vmem:[#allocation6] sm:$0xff] 0.0
        $region104: #{tpu_custom_call.1} parent=99 // pred_fallthru
          _
        %v864 = vld [vmem:[%s814] sm:$0xff]
        %v865 = vld [vmem:[%s814 + $0x8] sm:$0xff]
        %v866 = vld [vmem:[%s814 + $0x10] sm:$0xff]
        %v867 = vld [vmem:[%s814 + $0x18] sm:$0xff]
        %v868 = vld [vmem:[%s814 + $0x20] sm:$0xff]
        %v869 = vld [vmem:[%s814 + $0x28] sm:$0xff]
        %v870 = vld [vmem:[%s814 + $0x30] sm:$0xff]
        %v871 = vld [vmem:[%s814 + $0x38] sm:$0xff]
        %v872 = vld [vmem:[%s1] sm:$0x1]
        %874 = vset.pattern.permute.xlu0 0
        %875 = vperm.xlu0 %874, %v864
        %v876 = vpop.permute.xlu0 %875
        %879 = vset.pattern.permute.xlu0 0
        %880 = vperm.xlu0 %879, %v865
        %v881 = vpop.permute.xlu0 %880
        %884 = vset.pattern.permute.xlu0 0
        %885 = vperm.xlu0 %884, %v866
        %v886 = vpop.permute.xlu0 %885
        %889 = vset.pattern.permute.xlu0 0
        %890 = vperm.xlu0 %889, %v867
        %v891 = vpop.permute.xlu0 %890
        %894 = vset.pattern.permute.xlu0 0
        %895 = vperm.xlu0 %894, %v868
        %v896 = vpop.permute.xlu0 %895
        %899 = vset.pattern.permute.xlu0 0
        %900 = vperm.xlu0 %899, %v869
        %v901 = vpop.permute.xlu0 %900
        %904 = vset.pattern.permute.xlu0 0
        %905 = vperm.xlu0 %904, %v870
        %v906 = vpop.permute.xlu0 %905
        %909 = vset.pattern.permute.xlu0 0
        %910 = vperm.xlu0 %909, %v871
        %v911 = vpop.permute.xlu0 %910
        %v913 = vlaneseq
        %v914 = vshrl.u32 %v913, 7
        %v915 = vsub.s32 0, %v914
        %v916 = vrot.slane %v872, %v915
        %v917 = vmul.f32 %v876, %v916
        %v918 = vmul.f32 %v881, %v916
        %v919 = vmul.f32 %v886, %v916
        %v920 = vmul.f32 %v891, %v916
        %v921 = vmul.f32 %v896, %v916
        %v922 = vmul.f32 %v901, %v916
        %v923 = vmul.f32 %v906, %v916
        %v924 = vmul.f32 %v911, %v916
        %v925 = vadd.f32 %v917, 0.0
        %v926 = vadd.f32 %v918, 0.0
        %v927 = vadd.f32 %v919, 0.0
        %v928 = vadd.f32 %v920, 0.0
        %v929 = vadd.f32 %v921, 0.0
        %v930 = vadd.f32 %v922, 0.0
        %v931 = vadd.f32 %v923, 0.0
        %v932 = vadd.f32 %v924, 0.0
        %v933 = vld [vmem:[%s1 + $0x1] sm:$0x1]
        %934 = vset.pattern.permute.xlu0 1
        %935 = vperm.xlu0 %934, %v864
        %v936 = vpop.permute.xlu0 %935
        %938 = vset.pattern.permute.xlu0 1
        %939 = vperm.xlu0 %938, %v865
        %v940 = vpop.permute.xlu0 %939
        %942 = vset.pattern.permute.xlu0 1
        %943 = vperm.xlu0 %942, %v866
        %v944 = vpop.permute.xlu0 %943
        %946 = vset.pattern.permute.xlu0 1
        %947 = vperm.xlu0 %946, %v867
        %v948 = vpop.permute.xlu0 %947
        %950 = vset.pattern.permute.xlu0 1
        %951 = vperm.xlu0 %950, %v868
        %v952 = vpop.permute.xlu0 %951
        %954 = vset.pattern.permute.xlu0 1
        %955 = vperm.xlu0 %954, %v869
        %v956 = vpop.permute.xlu0 %955
        %958 = vset.pattern.permute.xlu0 1
        %959 = vperm.xlu0 %958, %v870
        %v960 = vpop.permute.xlu0 %959
        %962 = vset.pattern.permute.xlu0 1
        %963 = vperm.xlu0 %962, %v871
        %v964 = vpop.permute.xlu0 %963
        %v966 = vlaneseq
        %v967 = vshrl.u32 %v966, 7
        %v968 = vsub.s32 0, %v967
        %v969 = vrot.slane %v933, %v968
        %v970 = vmul.f32 %v936, %v969
        %v971 = vmul.f32 %v940, %v969
        %v972 = vmul.f32 %v944, %v969
        %v973 = vmul.f32 %v948, %v969
        %v974 = vmul.f32 %v952, %v969
        %v975 = vmul.f32 %v956, %v969
        %v976 = vmul.f32 %v960, %v969
        %v977 = vmul.f32 %v964, %v969
        %v978 = vadd.f32 %v925, %v970
        %v979 = vadd.f32 %v926, %v971
        %v980 = vadd.f32 %v927, %v972
        %v981 = vadd.f32 %v928, %v973
        %v982 = vadd.f32 %v929, %v974
        %v983 = vadd.f32 %v930, %v975
        %v984 = vadd.f32 %v931, %v976
        %v985 = vadd.f32 %v932, %v977
        %v986 = vld [vmem:[%s1 + $0x2] sm:$0x1]
        %987 = vset.pattern.permute.xlu0 2
        %988 = vperm.xlu0 %987, %v864
        %v989 = vpop.permute.xlu0 %988
        %991 = vset.pattern.permute.xlu0 2
        %992 = vperm.xlu0 %991, %v865
        %v993 = vpop.permute.xlu0 %992
        %995 = vset.pattern.permute.xlu0 2
        %996 = vperm.xlu0 %995, %v866
        %v997 = vpop.permute.xlu0 %996
        %999 = vset.pattern.permute.xlu0 2
        %1000 = vperm.xlu0 %999, %v867
        %v1001 = vpop.permute.xlu0 %1000
        %1003 = vset.pattern.permute.xlu0 2
        %1004 = vperm.xlu0 %1003, %v868
        %v1005 = vpop.permute.xlu0 %1004
        %1007 = vset.pattern.permute.xlu0 2
        %1008 = vperm.xlu0 %1007, %v869
        %v1009 = vpop.permute.xlu0 %1008
        %1011 = vset.pattern.permute.xlu0 2
        %1012 = vperm.xlu0 %1011, %v870
        %v1013 = vpop.permute.xlu0 %1012
        %1015 = vset.pattern.permute.xlu0 2
        %1016 = vperm.xlu0 %1015, %v871
        %v1017 = vpop.permute.xlu0 %1016
        %v1019 = vlaneseq
        %v1020 = vshrl.u32 %v1019, 7
        %v1021 = vsub.s32 0, %v1020
        %v1022 = vrot.slane %v986, %v1021
        %v1023 = vmul.f32 %v989, %v1022
        %v1024 = vmul.f32 %v993, %v1022
        %v1025 = vmul.f32 %v997, %v1022
        %v1026 = vmul.f32 %v1001, %v1022
        %v1027 = vmul.f32 %v1005, %v1022
        %v1028 = vmul.f32 %v1009, %v1022
        %v1029 = vmul.f32 %v1013, %v1022
        %v1030 = vmul.f32 %v1017, %v1022
        %v1031 = vadd.f32 %v978, %v1023
        %v1032 = vadd.f32 %v979, %v1024
        %v1033 = vadd.f32 %v980, %v1025
        %v1034 = vadd.f32 %v981, %v1026
        %v1035 = vadd.f32 %v982, %v1027
        %v1036 = vadd.f32 %v983, %v1028
        %v1037 = vadd.f32 %v984, %v1029
        %v1038 = vadd.f32 %v985, %v1030
        %v1039 = vld [vmem:[%s2] sm:$0x1]
        %v1041 = vlaneseq
        %v1042 = vshrl.u32 %v1041, 7
        %v1043 = vsub.s32 0, %v1042
        %v1044 = vrot.slane %v1039, %v1043
        %v1046 = vadd.f32 %v1031, %v1044
        %v1047 = vadd.f32 %v1032, %v1044
        %v1048 = vadd.f32 %v1033, %v1044
        %v1049 = vadd.f32 %v1034, %v1044
        %v1050 = vadd.f32 %v1035, %v1044
        %v1051 = vadd.f32 %v1036, %v1044
        %v1052 = vadd.f32 %v1037, %v1044
        %v1053 = vadd.f32 %v1038, %v1044
        %vm1054 = vcmask 523264
        %1055 = vst.msk [vmem:[%s824] sm:$0xff] %vm1054, %v1046
        %1056 = vst.msk [vmem:[%s824 + $0x8] sm:$0xff] %vm1054, %v1047
        %1057 = vst.msk [vmem:[%s824 + $0x10] sm:$0xff] %vm1054, %v1048
        %1058 = vst.msk [vmem:[%s824 + $0x18] sm:$0xff] %vm1054, %v1049
        %1059 = vst.msk [vmem:[%s824 + $0x20] sm:$0xff] %vm1054, %v1050
        %1060 = vst.msk [vmem:[%s824 + $0x28] sm:$0xff] %vm1054, %v1051
        %1061 = vst.msk [vmem:[%s824 + $0x30] sm:$0xff] %vm1054, %v1052
        %1062 = vst.msk [vmem:[%s824 + $0x38] sm:$0xff] %vm1054, %v1053
        %v1063 = vld [vmem:[%s3] sm:$0x1]
        %v1064 = vld [vmem:[%s6] sm:$0x1]
        %v1065 = vadd.f32 %v1064, 1e-05
        %v1066 = vrsqrt.pop %v1065
        %v1067 = vmul.f32 %v1063, %v1066
        %v1068 = vld [vmem:[%s5] sm:$0x1]
        %v1070 = vlaneseq
        %v1071 = vshrl.u32 %v1070, 7
        %v1072 = vsub.s32 0, %v1071
        %v1073 = vrot.slane %v1068, %v1072
        %v1075 = vsub.f32 %v1046, %v1073
        %v1076 = vsub.f32 %v1047, %v1073
        %v1077 = vsub.f32 %v1048, %v1073
        %v1078 = vsub.f32 %v1049, %v1073
        %v1079 = vsub.f32 %v1050, %v1073
        %v1080 = vsub.f32 %v1051, %v1073
        %v1081 = vsub.f32 %v1052, %v1073
        %v1082 = vsub.f32 %v1053, %v1073
        %v1084 = vlaneseq
        %v1085 = vshrl.u32 %v1084, 7
        %v1086 = vsub.s32 0, %v1085
        %v1087 = vrot.slane %v1067, %v1086
        %v1089 = vmul.f32 %v1075, %v1087
        %v1090 = vmul.f32 %v1076, %v1087
        %v1091 = vmul.f32 %v1077, %v1087
        %v1092 = vmul.f32 %v1078, %v1087
        %v1093 = vmul.f32 %v1079, %v1087
        %v1094 = vmul.f32 %v1080, %v1087
        %v1095 = vmul.f32 %v1081, %v1087
        %v1096 = vmul.f32 %v1082, %v1087
        %v1097 = vld [vmem:[%s4] sm:$0x1]
        %v1099 = vlaneseq
        %v1100 = vshrl.u32 %v1099, 7
        %v1101 = vsub.s32 0, %v1100
        %v1102 = vrot.slane %v1097, %v1101
        %v1104 = vadd.f32 %v1089, %v1102
        %v1105 = vadd.f32 %v1090, %v1102
        %v1106 = vadd.f32 %v1091, %v1102
        %v1107 = vadd.f32 %v1092, %v1102
        %v1108 = vadd.f32 %v1093, %v1102
        %v1109 = vadd.f32 %v1094, %v1102
        %v1110 = vadd.f32 %v1095, %v1102
        %v1111 = vadd.f32 %v1096, %v1102
        %1112 = vst.msk [vmem:[%s834] sm:$0xff] %vm1054, %v1104
        %1113 = vst.msk [vmem:[%s834 + $0x8] sm:$0xff] %vm1054, %v1105
        %1114 = vst.msk [vmem:[%s834 + $0x10] sm:$0xff] %vm1054, %v1106
        %1115 = vst.msk [vmem:[%s834 + $0x18] sm:$0xff] %vm1054, %v1107
        %1116 = vst.msk [vmem:[%s834 + $0x20] sm:$0xff] %vm1054, %v1108
        %1117 = vst.msk [vmem:[%s834 + $0x28] sm:$0xff] %vm1054, %v1109
        %1118 = vst.msk [vmem:[%s834 + $0x30] sm:$0xff] %vm1054, %v1110
        %1119 = vst.msk [vmem:[%s834 + $0x38] sm:$0xff] %vm1054, %v1111
        %v1120 = vmax.f32 %v1104, 0.0
        %v1121 = vmax.f32 %v1105, 0.0
        %v1122 = vmax.f32 %v1106, 0.0
        %v1123 = vmax.f32 %v1107, 0.0
        %v1124 = vmax.f32 %v1108, 0.0
        %v1125 = vmax.f32 %v1109, 0.0
        %v1126 = vmax.f32 %v1110, 0.0
        %v1127 = vmax.f32 %v1111, 0.0
        %v1128 = vpack.c.bf16 %v1121, %v1120
        %v1129 = vpack.c.bf16 %v1123, %v1122
        %v1130 = vpack.c.bf16 %v1125, %v1124
        %v1131 = vpack.c.bf16 %v1127, %v1126
        %v1132 = vld [vmem:[%s7] sm:$0xf]
        %v1133 = vld [vmem:[%s7 + $0x4] sm:$0xf]
        %v1134 = vld [vmem:[%s7 + $0x8] sm:$0xf]
        %v1135 = vld [vmem:[%s7 + $0xc] sm:$0xf]
        %v1136 = vld [vmem:[%s7 + $0x10] sm:$0xf]
        %v1137 = vld [vmem:[%s7 + $0x14] sm:$0xf]
        %v1138 = vld [vmem:[%s7 + $0x18] sm:$0xf]
        %v1139 = vld [vmem:[%s7 + $0x1c] sm:$0xf]
        %v1140 = vld [vmem:[%s8] sm:$0x1]
        %v1142 = vlaneseq
        %v1143 = vshrl.u32 %v1142, 7
        %v1144 = vsub.s32 0, %v1143
        %v1145 = vrot.slane %v1140, %v1144
        %v1155 = vunpack.c.l.b16 %v1132
        %v1156 = vunpack.c.l.b16 %v1133
        %v1157 = vunpack.c.l.b16 %v1134
        %v1158 = vunpack.c.l.b16 %v1135
        %v1159 = vunpack.c.l.b16 %v1136
        %v1160 = vunpack.c.l.b16 %v1137
        %v1161 = vunpack.c.l.b16 %v1138
        %v1162 = vunpack.c.l.b16 %v1139
        %v1163 = vpack.c.b16 %v1156, %v1155
        %v1164 = vpack.c.b16 %v1158, %v1157
        %v1165 = vpack.c.b16 %v1160, %v1159
        %v1166 = vpack.c.b16 %v1162, %v1161
        %v1172 = vsel %vm1054, %v1128, 0
        %v1175 = vsel %vm1054, %v1129, 0
        %v1178 = vsel %vm1054, %v1130, 0
        %v1181 = vsel %vm1054, %v1131, 0
        %1183 = vmatprep.subr.bf16.mxu0 0
        %1184 = vmatpush1.bf16.msra.mxu0 0
        %1185 = vmatprep.subr.bf16.mxu0 0
        %1186 = vmatpush1.bf16.msra.mxu0 0
        %1187 = vmatprep.subr.bf16.mxu0 0
        %1188 = vmatpush1.bf16.msra.mxu0 0
        %1189 = vmatprep.subr.bf16.mxu0 0
        %1190 = vmatpush1.bf16.msra.mxu0 0
        %1191 = vmatprep.subr.bf16.mxu0 0
        %1192 = vmatpush1.bf16.msra.mxu0 %v1166
        %1193 = vmatprep.subr.bf16.mxu0 0
        %1194 = vmatpush1.bf16.msra.mxu0 %v1165
        %1195 = vmatprep.subr.bf16.mxu0 0
        %1196 = vmatpush1.bf16.msra.mxu0 %v1164
        %1197 = vmatprep.subr.bf16.mxu0 0
        %1198 = vmatpush1.bf16.msra.mxu0 %v1163
        %1199 = vmatprep.subr.bf16.mxu0 0
        %1200 = vmatpush2.bf16.msra.mxu0 0
        %1201 = vmatprep.subr.bf16.mxu0 0
        %1202 = vmatpush2.bf16.msra.mxu0 0
        %1203 = vmatprep.subr.bf16.mxu0 0
        %1204 = vmatpush2.bf16.msra.mxu0 0
        %1205 = vmatprep.subr.bf16.mxu0 0
        %1206 = vmatpush2.bf16.msra.mxu0 0
        %1207 = vmatprep.subr.bf16.mxu0 0
        %1208 = vmatpush2.bf16.msra.mxu0 0
        %1209 = vmatprep.subr.bf16.mxu0 0
        %1210 = vmatpush2.bf16.msra.mxu0 0
        %1211 = vmatprep.subr.bf16.mxu0 0
        %1212 = vmatpush2.bf16.msra.mxu0 0
        %1213 = vmatprep.subr.bf16.mxu0 0
        %1214 = vmatpush2.bf16.msra.mxu0 0
        %1215 = vmatprep.mubr.bf16.mxu0 0
        %1216 = vmatmul.mubr.bf16.gmra.mxu0 %v1172
        %v1217 = vpop.f32.mrf.mxu0
        %v1218 = vadd.f32 %v1145, %v1217
        %v1219 = vpop.f32.mrf.mxu0
        %v1220 = vpop.f32.mrf.mxu0
        %v1221 = vadd.f32 %v1145, %v1220
        %v1222 = vpop.f32.mrf.mxu0
        %1223 = vmatprep.mubr.bf16.mxu0 0
        %1224 = vmatmul.mubr.bf16.gmra.mxu0 %v1175
        %v1225 = vpop.f32.mrf.mxu0
        %v1226 = vadd.f32 %v1145, %v1225
        %v1227 = vpop.f32.mrf.mxu0
        %v1228 = vpop.f32.mrf.mxu0
        %v1229 = vadd.f32 %v1145, %v1228
        %v1230 = vpop.f32.mrf.mxu0
        %1231 = vmatprep.mubr.bf16.mxu0 0
        %1232 = vmatmul.mubr.bf16.gmra.mxu0 %v1178
        %v1233 = vpop.f32.mrf.mxu0
        %v1234 = vadd.f32 %v1145, %v1233
        %v1235 = vpop.f32.mrf.mxu0
        %v1236 = vpop.f32.mrf.mxu0
        %v1237 = vadd.f32 %v1145, %v1236
        %v1238 = vpop.f32.mrf.mxu0
        %1239 = vmatprep.mubr.bf16.mxu0 0
        %1240 = vmatmul.mubr.bf16.gmra.mxu0 %v1181
        %v1241 = vpop.f32.mrf.mxu0
        %v1242 = vadd.f32 %v1145, %v1241
        %v1243 = vpop.f32.mrf.mxu0
        %v1244 = vpop.f32.mrf.mxu0
        %v1245 = vadd.f32 %v1145, %v1244
        %v1246 = vpop.f32.mrf.mxu0
        %1247 = vdwg.mxu0
        %v1248 = vld [vmem:[%s9] sm:$0xf]
        %v1249 = vld [vmem:[%s9 + $0x4] sm:$0xf]
        %v1250 = vld [vmem:[%s9 + $0x8] sm:$0xf]
        %v1251 = vld [vmem:[%s9 + $0xc] sm:$0xf]
        %v1252 = vld [vmem:[%s9 + $0x10] sm:$0xf]
        %v1253 = vld [vmem:[%s9 + $0x14] sm:$0xf]
        %v1254 = vld [vmem:[%s9 + $0x18] sm:$0xf]
        %v1255 = vld [vmem:[%s9 + $0x1c] sm:$0xf]
        %v1256 = vld [vmem:[%s10] sm:$0x1]
        %v1258 = vlaneseq
        %v1259 = vshrl.u32 %v1258, 7
        %v1260 = vsub.s32 0, %v1259
        %v1261 = vrot.slane %v1256, %v1260
        %v1271 = vunpack.c.l.b16 %v1248
        %v1272 = vunpack.c.l.b16 %v1249
        %v1273 = vunpack.c.l.b16 %v1250
        %v1274 = vunpack.c.l.b16 %v1251
        %v1275 = vunpack.c.l.b16 %v1252
        %v1276 = vunpack.c.l.b16 %v1253
        %v1277 = vunpack.c.l.b16 %v1254
        %v1278 = vunpack.c.l.b16 %v1255
        %v1279 = vpack.c.b16 %v1272, %v1271
        %v1280 = vpack.c.b16 %v1274, %v1273
        %v1281 = vpack.c.b16 %v1276, %v1275
        %v1282 = vpack.c.b16 %v1278, %v1277
        %1287 = vmatprep.subr.bf16.mxu0 0
        %1288 = vmatpush1.bf16.msra.mxu0 0
        %1289 = vmatprep.subr.bf16.mxu0 0
        %1290 = vmatpush1.bf16.msra.mxu0 0
        %1291 = vmatprep.subr.bf16.mxu0 0
        %1292 = vmatpush1.bf16.msra.mxu0 0
        %1293 = vmatprep.subr.bf16.mxu0 0
        %1294 = vmatpush1.bf16.msra.mxu0 0
        %1295 = vmatprep.subr.bf16.mxu0 0
        %1296 = vmatpush1.bf16.msra.mxu0 %v1282
        %1297 = vmatprep.subr.bf16.mxu0 0
        %1298 = vmatpush1.bf16.msra.mxu0 %v1281
        %1299 = vmatprep.subr.bf16.mxu0 0
        %1300 = vmatpush1.bf16.msra.mxu0 %v1280
        %1301 = vmatprep.subr.bf16.mxu0 0
        %1302 = vmatpush1.bf16.msra.mxu0 %v1279
        %1303 = vmatprep.subr.bf16.mxu0 0
        %1304 = vmatpush2.bf16.msra.mxu0 0
        %1305 = vmatprep.subr.bf16.mxu0 0
        %1306 = vmatpush2.bf16.msra.mxu0 0
        %1307 = vmatprep.subr.bf16.mxu0 0
        %1308 = vmatpush2.bf16.msra.mxu0 0
        %1309 = vmatprep.subr.bf16.mxu0 0
        %1310 = vmatpush2.bf16.msra.mxu0 0
        %1311 = vmatprep.subr.bf16.mxu0 0
        %1312 = vmatpush2.bf16.msra.mxu0 0
        %1313 = vmatprep.subr.bf16.mxu0 0
        %1314 = vmatpush2.bf16.msra.mxu0 0
        %1315 = vmatprep.subr.bf16.mxu0 0
        %1316 = vmatpush2.bf16.msra.mxu0 0
        %1317 = vmatprep.subr.bf16.mxu0 0
        %1318 = vmatpush2.bf16.msra.mxu0 0
        %1319 = vmatprep.mubr.bf16.mxu0 0
        %1320 = vmatmul.mubr.bf16.gmra.mxu0 %v1172
        %v1321 = vpop.f32.mrf.mxu0
        %v1322 = vadd.f32 %v1261, %v1321
        %v1323 = vpop.f32.mrf.mxu0
        %v1324 = vpop.f32.mrf.mxu0
        %v1325 = vadd.f32 %v1261, %v1324
        %v1326 = vpop.f32.mrf.mxu0
        %1327 = vmatprep.mubr.bf16.mxu0 0
        %1328 = vmatmul.mubr.bf16.gmra.mxu0 %v1175
        %v1329 = vpop.f32.mrf.mxu0
        %v1330 = vadd.f32 %v1261, %v1329
        %v1331 = vpop.f32.mrf.mxu0
        %v1332 = vpop.f32.mrf.mxu0
        %v1333 = vadd.f32 %v1261, %v1332
        %v1334 = vpop.f32.mrf.mxu0
        %1335 = vmatprep.mubr.bf16.mxu0 0
        %1336 = vmatmul.mubr.bf16.gmra.mxu0 %v1178
        %v1337 = vpop.f32.mrf.mxu0
        %v1338 = vadd.f32 %v1261, %v1337
        %v1339 = vpop.f32.mrf.mxu0
        %v1340 = vpop.f32.mrf.mxu0
        %v1341 = vadd.f32 %v1261, %v1340
        %v1342 = vpop.f32.mrf.mxu0
        %1343 = vmatprep.mubr.bf16.mxu0 0
        %1344 = vmatmul.mubr.bf16.gmra.mxu0 %v1181
        %v1345 = vpop.f32.mrf.mxu0
        %v1346 = vadd.f32 %v1261, %v1345
        %v1347 = vpop.f32.mrf.mxu0
        %v1348 = vpop.f32.mrf.mxu0
        %v1349 = vadd.f32 %v1261, %v1348
        %v1350 = vpop.f32.mrf.mxu0
        %1351 = vdwg.mxu0
        %1352 = vst [vmem:[#allocation2] sm:$0xff] %v1322
        %1353 = vst [vmem:[#allocation2 + $0x8] sm:$0xff] %v1325
        %1354 = vst [vmem:[#allocation2 + $0x10] sm:$0xff] %v1330
        %1355 = vst [vmem:[#allocation2 + $0x18] sm:$0xff] %v1333
        %1356 = vst [vmem:[#allocation2 + $0x20] sm:$0xff] %v1338
        %1357 = vst [vmem:[#allocation2 + $0x28] sm:$0xff] %v1341
        %1358 = vst [vmem:[#allocation2 + $0x30] sm:$0xff] %v1346
        %1359 = vst [vmem:[#allocation2 + $0x38] sm:$0xff] %v1349
        %v1360 = vld [vmem:[%s11] sm:$0xf]
        %v1361 = vld [vmem:[#allocation6] sm:$0xff]
        %v1362 = vlaneseq
        %v1363 = vshrl.u32 %v1362, 7
        %v1364 = vsub.s32 3, %v1363
        %v1365 = vrot.slane %v1360, %v1364
        %v1366 = vmul.f32 %v1218, %v1365
        %v1367 = vmul.f32 %v1221, %v1365
        %v1368 = vmul.f32 %v1226, %v1365
        %v1369 = vmul.f32 %v1229, %v1365
        %v1370 = vmul.f32 %v1234, %v1365
        %v1371 = vmul.f32 %v1237, %v1365
        %v1372 = vmul.f32 %v1242, %v1365
        %v1373 = vmul.f32 %v1245, %v1365
        %v1374 = vrot.slane %v1361, 7
        %v1375 = vrot.slane %v1218, 7
        %v1376 = vrot.slane %v1221, 7
        %v1377 = vrot.slane %v1226, 7
        %v1378 = vrot.slane %v1229, 7
        %v1379 = vrot.slane %v1234, 7
        %v1380 = vrot.slane %v1237, 7
        %v1381 = vrot.slane %v1242, 7
        %v1382 = vrot.slane %v1245, 7
        %v1383 = vlaneseq
        %v1384 = vshrl.u32 %v1383, 7
        %vm1385 = vcmp.lt.s32.totalorder %v1384, 1
        %v1386 = vsel %vm1385, %v1381, %v1382
        %v1387 = vsel %vm1385, %v1380, %v1381
        %v1388 = vsel %vm1385, %v1379, %v1380
        %v1389 = vsel %vm1385, %v1378, %v1379
        %v1390 = vsel %vm1385, %v1377, %v1378
        %v1391 = vsel %vm1385, %v1376, %v1377
        %v1392 = vsel %vm1385, %v1375, %v1376
        %v1393 = vsel %vm1385, %v1374, %v1375
        %v1394 = vlaneseq
        %v1395 = vshrl.u32 %v1394, 7
        %v1396 = vsub.s32 2, %v1395
        %v1397 = vrot.slane %v1360, %v1396
        %v1398 = vmul.f32 %v1393, %v1397
        %v1399 = vmul.f32 %v1392, %v1397
        %v1400 = vmul.f32 %v1391, %v1397
        %v1401 = vmul.f32 %v1390, %v1397
        %v1402 = vmul.f32 %v1389, %v1397
        %v1403 = vmul.f32 %v1388, %v1397
        %v1404 = vmul.f32 %v1387, %v1397
        %v1405 = vmul.f32 %v1386, %v1397
        %v1406 = vadd.f32 %v1366, %v1398
        %v1407 = vadd.f32 %v1367, %v1399
        %v1408 = vadd.f32 %v1368, %v1400
        %v1409 = vadd.f32 %v1369, %v1401
        %v1410 = vadd.f32 %v1370, %v1402
        %v1411 = vadd.f32 %v1371, %v1403
        %v1412 = vadd.f32 %v1372, %v1404
        %v1413 = vadd.f32 %v1373, %v1405
        %v1414 = vrot.slane %v1361, 6
        %v1415 = vrot.slane %v1218, 6
        %v1416 = vrot.slane %v1221, 6
        %v1417 = vrot.slane %v1226, 6
        %v1418 = vrot.slane %v1229, 6
        %v1419 = vrot.slane %v1234, 6
        %v1420 = vrot.slane %v1237, 6
        %v1421 = vrot.slane %v1242, 6
        %v1422 = vrot.slane %v1245, 6
        %vm1423 = vcmp.lt.s32.totalorder %v1384, 2
        %v1424 = vsel %vm1423, %v1421, %v1422
        %v1425 = vsel %vm1423, %v1420, %v1421
        %v1426 = vsel %vm1423, %v1419, %v1420
        %v1427 = vsel %vm1423, %v1418, %v1419
        %v1428 = vsel %vm1423, %v1417, %v1418
        %v1429 = vsel %vm1423, %v1416, %v1417
        %v1430 = vsel %vm1423, %v1415, %v1416
        %v1431 = vsel %vm1423, %v1414, %v1415
        %v1432 = vlaneseq
        %v1433 = vshrl.u32 %v1432, 7
        %v1434 = vsub.s32 1, %v1433
        %v1435 = vrot.slane %v1360, %v1434
        %v1436 = vmul.f32 %v1431, %v1435
        %v1437 = vmul.f32 %v1430, %v1435
        %v1438 = vmul.f32 %v1429, %v1435
        %v1439 = vmul.f32 %v1428, %v1435
        %v1440 = vmul.f32 %v1427, %v1435
        %v1441 = vmul.f32 %v1426, %v1435
        %v1442 = vmul.f32 %v1425, %v1435
        %v1443 = vmul.f32 %v1424, %v1435
        %v1444 = vadd.f32 %v1406, %v1436
        %v1445 = vadd.f32 %v1407, %v1437
        %v1446 = vadd.f32 %v1408, %v1438
        %v1447 = vadd.f32 %v1409, %v1439
        %v1448 = vadd.f32 %v1410, %v1440
        %v1449 = vadd.f32 %v1411, %v1441
        %v1450 = vadd.f32 %v1412, %v1442
        %v1451 = vadd.f32 %v1413, %v1443
        %v1452 = vrot.slane %v1361, 5
        %v1453 = vrot.slane %v1218, 5
        %v1454 = vrot.slane %v1221, 5
        %v1455 = vrot.slane %v1226, 5
        %v1456 = vrot.slane %v1229, 5
        %v1457 = vrot.slane %v1234, 5
        %v1458 = vrot.slane %v1237, 5
        %v1459 = vrot.slane %v1242, 5
        %v1460 = vrot.slane %v1245, 5
        %vm1461 = vcmp.lt.s32.totalorder %v1384, 3
        %v1462 = vsel %vm1461, %v1459, %v1460
        %v1463 = vsel %vm1461, %v1458, %v1459
        %v1464 = vsel %vm1461, %v1457, %v1458
        %v1465 = vsel %vm1461, %v1456, %v1457
        %v1466 = vsel %vm1461, %v1455, %v1456
        %v1467 = vsel %vm1461, %v1454, %v1455
        %v1468 = vsel %vm1461, %v1453, %v1454
        %v1469 = vsel %vm1461, %v1452, %v1453
        %v1470 = vlaneseq
        %v1471 = vshrl.u32 %v1470, 7
        %v1472 = vsub.s32 0, %v1471
        %v1473 = vrot.slane %v1360, %v1472
        %v1474 = vmul.f32 %v1469, %v1473
        %v1475 = vmul.f32 %v1468, %v1473
        %v1476 = vmul.f32 %v1467, %v1473
        %v1477 = vmul.f32 %v1466, %v1473
        %v1478 = vmul.f32 %v1465, %v1473
        %v1479 = vmul.f32 %v1464, %v1473
        %v1480 = vmul.f32 %v1463, %v1473
        %v1481 = vmul.f32 %v1462, %v1473
        %v1482 = vadd.f32 %v1444, %v1474
        %v1483 = vadd.f32 %v1445, %v1475
        %v1484 = vadd.f32 %v1446, %v1476
        %v1485 = vadd.f32 %v1447, %v1477
        %v1486 = vadd.f32 %v1448, %v1478
        %v1487 = vadd.f32 %v1449, %v1479
        %v1488 = vadd.f32 %v1450, %v1480
        %v1489 = vadd.f32 %v1451, %v1481
        %v1490 = vld [vmem:[%s12] sm:$0x1]
        %v1492 = vlaneseq
        %v1493 = vshrl.u32 %v1492, 7
        %v1494 = vsub.s32 0, %v1493
        %v1495 = vrot.slane %v1490, %v1494
        %v1497 = vadd.f32 %v1482, %v1495
        %v1498 = vadd.f32 %v1483, %v1495
        %v1499 = vadd.f32 %v1484, %v1495
        %v1500 = vadd.f32 %v1485, %v1495
        %v1501 = vadd.f32 %v1486, %v1495
        %v1502 = vadd.f32 %v1487, %v1495
        %v1503 = vadd.f32 %v1488, %v1495
        %v1504 = vadd.f32 %v1489, %v1495
        %v1505 = vxor.u32 %v1497, 2147483648
        %v1506 = vxor.u32 %v1498, 2147483648
        %v1507 = vxor.u32 %v1499, 2147483648
        %v1508 = vxor.u32 %v1500, 2147483648
        %v1509 = vxor.u32 %v1501, 2147483648
        %v1510 = vxor.u32 %v1502, 2147483648
        %v1511 = vxor.u32 %v1503, 2147483648
        %v1512 = vxor.u32 %v1504, 2147483648
        %v1513 = vmul.f32 %v1505, 1.442695
        %v1514 = vpow.pop %v1513
        %v1515 = vmul.f32 %v1506, 1.442695
        %v1516 = vpow.pop %v1515
        %v1517 = vmul.f32 %v1507, 1.442695
        %v1518 = vpow.pop %v1517
        %v1519 = vmul.f32 %v1508, 1.442695
        %v1520 = vpow.pop %v1519
        %v1521 = vmul.f32 %v1509, 1.442695
        %v1522 = vpow.pop %v1521
        %v1523 = vmul.f32 %v1510, 1.442695
        %v1524 = vpow.pop %v1523
        %v1525 = vmul.f32 %v1511, 1.442695
        %v1526 = vpow.pop %v1525
        %v1527 = vmul.f32 %v1512, 1.442695
        %v1528 = vpow.pop %v1527
        %v1529 = vadd.f32 %v1514, 1.0
        %v1530 = vadd.f32 %v1516, 1.0
        %v1531 = vadd.f32 %v1518, 1.0
        %v1532 = vadd.f32 %v1520, 1.0
        %v1533 = vadd.f32 %v1522, 1.0
        %v1534 = vadd.f32 %v1524, 1.0
        %v1535 = vadd.f32 %v1526, 1.0
        %v1536 = vadd.f32 %v1528, 1.0
        %v1537 = vrcp.pop %v1529
        %v1538 = vmul.f32 1.0, %v1537
        %v1539 = vrcp.pop %v1530
        %v1540 = vmul.f32 1.0, %v1539
        %v1541 = vrcp.pop %v1531
        %v1542 = vmul.f32 1.0, %v1541
        %v1543 = vrcp.pop %v1532
        %v1544 = vmul.f32 1.0, %v1543
        %v1545 = vrcp.pop %v1533
        %v1546 = vmul.f32 1.0, %v1545
        %v1547 = vrcp.pop %v1534
        %v1548 = vmul.f32 1.0, %v1547
        %v1549 = vrcp.pop %v1535
        %v1550 = vmul.f32 1.0, %v1549
        %v1551 = vrcp.pop %v1536
        %v1552 = vmul.f32 1.0, %v1551
        %v1553 = vmul.f32 %v1497, %v1538
        %v1554 = vmul.f32 %v1498, %v1540
        %v1555 = vmul.f32 %v1499, %v1542
        %v1556 = vmul.f32 %v1500, %v1544
        %v1557 = vmul.f32 %v1501, %v1546
        %v1558 = vmul.f32 %v1502, %v1548
        %v1559 = vmul.f32 %v1503, %v1550
        %v1560 = vmul.f32 %v1504, %v1552
        %1561 = vst [vmem:[#allocation6] sm:$0xff] %v1245
        %v1562 = vpack.c.bf16 %v1554, %v1553
        %v1563 = vpack.c.bf16 %v1556, %v1555
        %v1564 = vpack.c.bf16 %v1558, %v1557
        %v1565 = vpack.c.bf16 %v1560, %v1559
        %v1566 = vld [vmem:[%s15] sm:$0xf]
        %v1567 = vld [vmem:[%s15 + $0x4] sm:$0xf]
        %v1568 = vld [vmem:[%s15 + $0x8] sm:$0xf]
        %v1569 = vld [vmem:[%s15 + $0xc] sm:$0xf]
        %v1570 = vld [vmem:[%s15 + $0x10] sm:$0xf]
        %v1571 = vld [vmem:[%s15 + $0x14] sm:$0xf]
        %v1572 = vld [vmem:[%s15 + $0x18] sm:$0xf]
        %v1573 = vld [vmem:[%s15 + $0x1c] sm:$0xf]
        %v1574 = vld [vmem:[%s15 + $0x20] sm:$0xf]
        %v1575 = vld [vmem:[%s15 + $0x24] sm:$0xf]
        %v1576 = vld [vmem:[%s15 + $0x28] sm:$0xf]
        %v1577 = vld [vmem:[%s15 + $0x2c] sm:$0xf]
        %v1578 = vld [vmem:[%s15 + $0x30] sm:$0xf]
        %v1579 = vld [vmem:[%s15 + $0x34] sm:$0xf]
        %v1580 = vld [vmem:[%s15 + $0x38] sm:$0xf]
        %v1581 = vld [vmem:[%s15 + $0x3c] sm:$0xf]
        %v1598 = vunpack.c.l.b16 %v1566
        %v1599 = vunpack.c.l.b16 %v1567
        %v1600 = vunpack.c.l.b16 %v1568
        %v1601 = vunpack.c.l.b16 %v1569
        %v1602 = vunpack.c.l.b16 %v1570
        %v1603 = vunpack.c.l.b16 %v1571
        %v1604 = vunpack.c.l.b16 %v1572
        %v1605 = vunpack.c.l.b16 %v1573
        %v1606 = vunpack.c.l.b16 %v1574
        %v1607 = vunpack.c.l.b16 %v1575
        %v1608 = vunpack.c.l.b16 %v1576
        %v1609 = vunpack.c.l.b16 %v1577
        %v1610 = vunpack.c.l.b16 %v1578
        %v1611 = vunpack.c.l.b16 %v1579
        %v1612 = vunpack.c.l.b16 %v1580
        %v1613 = vunpack.c.l.b16 %v1581
        %v1614 = vpack.c.b16 %v1599, %v1598
        %v1615 = vpack.c.b16 %v1601, %v1600
        %v1616 = vpack.c.b16 %v1603, %v1602
        %v1617 = vpack.c.b16 %v1605, %v1604
        %v1618 = vpack.c.b16 %v1607, %v1606
        %v1619 = vpack.c.b16 %v1609, %v1608
        %v1620 = vpack.c.b16 %v1611, %v1610
        %v1621 = vpack.c.b16 %v1613, %v1612
        %1630 = vmatprep.subr.bf16.mxu0 0
        %1631 = vmatpush1.bf16.msra.mxu0 %v1621
        %1632 = vmatprep.subr.bf16.mxu0 0
        %1633 = vmatpush1.bf16.msra.mxu0 %v1620
        %1634 = vmatprep.subr.bf16.mxu0 0
        %1635 = vmatpush1.bf16.msra.mxu0 %v1619
        %1636 = vmatprep.subr.bf16.mxu0 0
        %1637 = vmatpush1.bf16.msra.mxu0 %v1618
        %1638 = vmatprep.subr.bf16.mxu0 0
        %1639 = vmatpush1.bf16.msra.mxu0 %v1617
        %1640 = vmatprep.subr.bf16.mxu0 0
        %1641 = vmatpush1.bf16.msra.mxu0 %v1616
        %1642 = vmatprep.subr.bf16.mxu0 0
        %1643 = vmatpush1.bf16.msra.mxu0 %v1615
        %1644 = vmatprep.subr.bf16.mxu0 0
        %1645 = vmatpush1.bf16.msra.mxu0 %v1614
        %1646 = vmatprep.subr.bf16.mxu0 0
        %1647 = vmatpush2.bf16.msra.mxu0 0
        %1648 = vmatprep.subr.bf16.mxu0 0
        %1649 = vmatpush2.bf16.msra.mxu0 0
        %1650 = vmatprep.subr.bf16.mxu0 0
        %1651 = vmatpush2.bf16.msra.mxu0 0
        %1652 = vmatprep.subr.bf16.mxu0 0
        %1653 = vmatpush2.bf16.msra.mxu0 0
        %1654 = vmatprep.subr.bf16.mxu0 0
        %1655 = vmatpush2.bf16.msra.mxu0 0
        %1656 = vmatprep.subr.bf16.mxu0 0
        %1657 = vmatpush2.bf16.msra.mxu0 0
        %1658 = vmatprep.subr.bf16.mxu0 0
        %1659 = vmatpush2.bf16.msra.mxu0 0
        %1660 = vmatprep.subr.bf16.mxu0 0
        %1661 = vmatpush2.bf16.msra.mxu0 0
        %1662 = vmatprep.mubr.bf16.mxu0 0
        %1663 = vmatmul.mubr.bf16.gmra.mxu0 %v1562
        %v1664 = vpop.f32.mrf.mxu0
        %v1665 = vadd.f32 0.0, %v1664
        %v1666 = vpop.f32.mrf.mxu0
        %v1667 = vpop.f32.mrf.mxu0
        %v1668 = vadd.f32 0.0, %v1667
        %v1669 = vpop.f32.mrf.mxu0
        %1670 = vmatprep.mubr.bf16.mxu0 0
        %1671 = vmatmul.mubr.bf16.gmra.mxu0 %v1563
        %v1672 = vpop.f32.mrf.mxu0
        %v1673 = vadd.f32 0.0, %v1672
        %v1674 = vpop.f32.mrf.mxu0
        %v1675 = vpop.f32.mrf.mxu0
        %v1676 = vadd.f32 0.0, %v1675
        %v1677 = vpop.f32.mrf.mxu0
        %1678 = vmatprep.mubr.bf16.mxu0 0
        %1679 = vmatmul.mubr.bf16.gmra.mxu0 %v1564
        %v1680 = vpop.f32.mrf.mxu0
        %v1681 = vadd.f32 0.0, %v1680
        %v1682 = vpop.f32.mrf.mxu0
        %v1683 = vpop.f32.mrf.mxu0
        %v1684 = vadd.f32 0.0, %v1683
        %v1685 = vpop.f32.mrf.mxu0
        %1686 = vmatprep.mubr.bf16.mxu0 0
        %1687 = vmatmul.mubr.bf16.gmra.mxu0 %v1565
        %v1688 = vpop.f32.mrf.mxu0
        %v1689 = vadd.f32 0.0, %v1688
        %v1690 = vpop.f32.mrf.mxu0
        %v1691 = vpop.f32.mrf.mxu0
        %v1692 = vadd.f32 0.0, %v1691
        %v1693 = vpop.f32.mrf.mxu0
        %1694 = vdwg.mxu0
        %vm1695 = vcmask 261120
        %1696 = vst.msk [vmem:[#allocation3] sm:$0xff] %vm1695, %v1665
        %1697 = vst.msk [vmem:[#allocation3 + $0x8] sm:$0xff] %vm1695, %v1668
        %1698 = vst.msk [vmem:[#allocation3 + $0x10] sm:$0xff] %vm1695, %v1673
        %1699 = vst.msk [vmem:[#allocation3 + $0x18] sm:$0xff] %vm1695, %v1676
        %1700 = vst.msk [vmem:[#allocation3 + $0x20] sm:$0xff] %vm1695, %v1681
        %1701 = vst.msk [vmem:[#allocation3 + $0x28] sm:$0xff] %vm1695, %v1684
        %1702 = vst.msk [vmem:[#allocation3 + $0x30] sm:$0xff] %vm1695, %v1689
        %1703 = vst.msk [vmem:[#allocation3 + $0x38] sm:$0xff] %vm1695, %v1692
        %v1704 = vld [vmem:[%s13] sm:$0xff]
        %v1705 = vld [vmem:[%s13 + $0x8] sm:$0xff]
        %v1706 = vmul.f32 %v1704, 1.442695
        %v1707 = vpow.pop %v1706
        %v1708 = vmul.f32 %v1705, 1.442695
        %v1709 = vpow.pop %v1708
        %v1710 = vsub.f32 0.0, %v1707
        %v1711 = vsub.f32 0.0, %v1709
        loop: start=0, step=1, limit=8
        $region105: #{tpu_custom_call.1} parent=99 // loop_pre_header
          _
        $region106: #{tpu_custom_call.1} parent=99 // loop_header
          %s1713 = sphi 0, %s1717
          %p1714 = scmp.ge.s32.totalorder %s1713, 8
        $region107: #{tpu_custom_call.1} parent=99 // loop_header_branch
          %1716 = sbr.rel (%p1714) target = $region111
        $region108: #{tpu_custom_call.1} parent=99 // loop_body
          %s1718 = smul.u32 %s1713, 8
          %s1719 = scalar_lea.vmem [#allocation2], %s1718
          %v1720 = vld [vmem:[%s1719] sm:$0xff]
          %v1721 = vxor.u32 %v1720, 2147483648
          %v1722 = vmul.f32 %v1721, 1.442695
          %v1723 = vpow.pop %v1722
          %v1724 = vadd.f32 %v1723, 1.0
          %v1725 = vrcp.pop %v1724
          %v1726 = vmul.f32 1.0, %v1725
          %s1727 = scalar_lea.vmem [#allocation3], %s1718
          %v1728 = vld [vmem:[%s1727] sm:$0xff]
          %v1729 = vlaneseq
          %v1730 = vshrl.u32 %v1729, 7
          %v1731 = vsub.s32 0, %v1730
          %v1732 = vrot.slane %v1728, %v1731
          %1734 = vbcast.lane.b32.xlu0 %v1732, 256
          %v1735 = vpop.permute.xlu0 %1734
          %s1737 = sor.u32 256, 8
          %1738 = vbcast.lane.b32.xlu0 %v1732, %s1737
          %v1739 = vpop.permute.xlu0 %1738
          %s1741 = sor.u32 256, 16
          %1742 = vbcast.lane.b32.xlu0 %v1732, %s1741
          %v1743 = vpop.permute.xlu0 %1742
          %s1745 = sor.u32 256, 24
          %1746 = vbcast.lane.b32.xlu0 %v1732, %s1745
          %v1747 = vpop.permute.xlu0 %1746
          %v1748 = vlaneseq
          %v1749 = vshrl.u32 %v1748, 7
          %v1750 = vsub.s32 1, %v1749
          %v1751 = vrot.slane %v1728, %v1750
          %1753 = vbcast.lane.b32.xlu0 %v1751, 256
          %v1754 = vpop.permute.xlu0 %1753
          %s1756 = sor.u32 256, 8
          %1757 = vbcast.lane.b32.xlu0 %v1751, %s1756
          %v1758 = vpop.permute.xlu0 %1757
          %s1760 = sor.u32 256, 16
          %1761 = vbcast.lane.b32.xlu0 %v1751, %s1760
          %v1762 = vpop.permute.xlu0 %1761
          %s1764 = sor.u32 256, 24
          %1765 = vbcast.lane.b32.xlu0 %v1751, %s1764
          %v1766 = vpop.permute.xlu0 %1765
          %v1767 = vlaneseq
          %v1768 = vshrl.u32 %v1767, 7
          %v1769 = vsub.s32 2, %v1768
          %v1770 = vrot.slane %v1728, %v1769
          %1772 = vbcast.lane.b32.xlu0 %v1770, 256
          %v1773 = vpop.permute.xlu0 %1772
          %s1775 = sor.u32 256, 8
          %1776 = vbcast.lane.b32.xlu0 %v1770, %s1775
          %v1777 = vpop.permute.xlu0 %1776
          %s1779 = sor.u32 256, 16
          %1780 = vbcast.lane.b32.xlu0 %v1770, %s1779
          %v1781 = vpop.permute.xlu0 %1780
          %s1783 = sor.u32 256, 24
          %1784 = vbcast.lane.b32.xlu0 %v1770, %s1783
          %v1785 = vpop.permute.xlu0 %1784
          %v1786 = vlaneseq
          %v1787 = vshrl.u32 %v1786, 7
          %v1788 = vsub.s32 3, %v1787
          %v1789 = vrot.slane %v1728, %v1788
          %1791 = vbcast.lane.b32.xlu0 %v1789, 256
          %v1792 = vpop.permute.xlu0 %1791
          %s1794 = sor.u32 256, 8
          %1795 = vbcast.lane.b32.xlu0 %v1789, %s1794
          %v1796 = vpop.permute.xlu0 %1795
          %s1798 = sor.u32 256, 16
          %1799 = vbcast.lane.b32.xlu0 %v1789, %s1798
          %v1800 = vpop.permute.xlu0 %1799
          %s1802 = sor.u32 256, 24
          %1803 = vbcast.lane.b32.xlu0 %v1789, %s1802
          %v1804 = vpop.permute.xlu0 %1803
          %v1805 = vlaneseq
          %v1806 = vshrl.u32 %v1805, 7
          %v1807 = vsub.s32 4, %v1806
          %v1808 = vrot.slane %v1728, %v1807
          %1810 = vbcast.lane.b32.xlu0 %v1808, 256
          %v1811 = vpop.permute.xlu0 %1810
          %s1813 = sor.u32 256, 8
          %1814 = vbcast.lane.b32.xlu0 %v1808, %s1813
          %v1815 = vpop.permute.xlu0 %1814
          %s1817 = sor.u32 256, 16
          %1818 = vbcast.lane.b32.xlu0 %v1808, %s1817
          %v1819 = vpop.permute.xlu0 %1818
          %s1821 = sor.u32 256, 24
          %1822 = vbcast.lane.b32.xlu0 %v1808, %s1821
          %v1823 = vpop.permute.xlu0 %1822
          %v1824 = vlaneseq
          %v1825 = vshrl.u32 %v1824, 7
          %v1826 = vsub.s32 5, %v1825
          %v1827 = vrot.slane %v1728, %v1826
          %1829 = vbcast.lane.b32.xlu0 %v1827, 256
          %v1830 = vpop.permute.xlu0 %1829
          %s1832 = sor.u32 256, 8
          %1833 = vbcast.lane.b32.xlu0 %v1827, %s1832
          %v1834 = vpop.permute.xlu0 %1833
          %s1836 = sor.u32 256, 16
          %1837 = vbcast.lane.b32.xlu0 %v1827, %s1836
          %v1838 = vpop.permute.xlu0 %1837
          %s1840 = sor.u32 256, 24
          %1841 = vbcast.lane.b32.xlu0 %v1827, %s1840
          %v1842 = vpop.permute.xlu0 %1841
          %v1843 = vlaneseq
          %v1844 = vshrl.u32 %v1843, 7
          %v1845 = vsub.s32 6, %v1844
          %v1846 = vrot.slane %v1728, %v1845
          %1848 = vbcast.lane.b32.xlu0 %v1846, 256
          %v1849 = vpop.permute.xlu0 %1848
          %s1851 = sor.u32 256, 8
          %1852 = vbcast.lane.b32.xlu0 %v1846, %s1851
          %v1853 = vpop.permute.xlu0 %1852
          %s1855 = sor.u32 256, 16
          %1856 = vbcast.lane.b32.xlu0 %v1846, %s1855
          %v1857 = vpop.permute.xlu0 %1856
          %s1859 = sor.u32 256, 24
          %1860 = vbcast.lane.b32.xlu0 %v1846, %s1859
          %v1861 = vpop.permute.xlu0 %1860
          %v1862 = vlaneseq
          %v1863 = vshrl.u32 %v1862, 7
          %v1864 = vsub.s32 7, %v1863
          %v1865 = vrot.slane %v1728, %v1864
          %1867 = vbcast.lane.b32.xlu0 %v1865, 256
          %v1868 = vpop.permute.xlu0 %1867
          %s1870 = sor.u32 256, 8
          %1871 = vbcast.lane.b32.xlu0 %v1865, %s1870
          %v1872 = vpop.permute.xlu0 %1871
          %s1874 = sor.u32 256, 16
          %1875 = vbcast.lane.b32.xlu0 %v1865, %s1874
          %v1876 = vpop.permute.xlu0 %1875
          %s1878 = sor.u32 256, 24
          %1879 = vbcast.lane.b32.xlu0 %v1865, %s1878
          %v1880 = vpop.permute.xlu0 %1879
          %v1881 = vld [vmem:[#allocation5] sm:$0xff]
          %v1882 = vld [vmem:[#allocation5 + $0x8] sm:$0xff]
          %v1883 = vmul.f32 %v1710, %v1881
          %v1884 = vmul.f32 %v1711, %v1882
          %v1885 = vlaneseq
          %v1886 = vshrl.u32 %v1885, 7
          %v1887 = vsub.s32 0, %v1886
          %v1888 = vrot.slane %v1726, %v1887
          %v1889 = vmul.f32 %v1735, %v1888
          %v1890 = vmul.f32 %v1739, %v1888
          %v1891 = vadd.f32 %v1883, %v1889
          %v1892 = vadd.f32 %v1884, %v1890
          %v1893 = vmul.f32 %v1743, %v1891
          %v1894 = vmul.f32 %v1747, %v1892
          %v1895 = vadd.f32 %v1893, %v1894
          %v1896 = vrot.slane %v1895, 4
          %v1897 = vadd.f32 %v1895, %v1896
          %v1898 = vrot.slane %v1897, 2
          %v1899 = vadd.f32 %v1897, %v1898
          %v1900 = vrot.slane %v1899, 1
          %v1901 = vadd.f32 %v1899, %v1900
          %v1902 = vmul.f32 %v1710, %v1891
          %v1903 = vmul.f32 %v1711, %v1892
          %v1904 = vlaneseq
          %v1905 = vshrl.u32 %v1904, 7
          %v1906 = vsub.s32 1, %v1905
          %v1907 = vrot.slane %v1726, %v1906
          %v1908 = vmul.f32 %v1754, %v1907
          %v1909 = vmul.f32 %v1758, %v1907
          %v1910 = vadd.f32 %v1902, %v1908
          %v1911 = vadd.f32 %v1903, %v1909
          %v1912 = vmul.f32 %v1762, %v1910
          %v1913 = vmul.f32 %v1766, %v1911
          %v1914 = vadd.f32 %v1912, %v1913
          %v1915 = vrot.slane %v1914, 4
          %v1916 = vadd.f32 %v1914, %v1915
          %v1917 = vrot.slane %v1916, 2
          %v1918 = vadd.f32 %v1916, %v1917
          %v1919 = vrot.slane %v1918, 1
          %v1920 = vadd.f32 %v1918, %v1919
          %v1921 = vmul.f32 %v1710, %v1910
          %v1922 = vmul.f32 %v1711, %v1911
          %v1923 = vlaneseq
          %v1924 = vshrl.u32 %v1923, 7
          %v1925 = vsub.s32 2, %v1924
          %v1926 = vrot.slane %v1726, %v1925
          %v1927 = vmul.f32 %v1773, %v1926
          %v1928 = vmul.f32 %v1777, %v1926
          %v1929 = vadd.f32 %v1921, %v1927
          %v1930 = vadd.f32 %v1922, %v1928
          %v1931 = vmul.f32 %v1781, %v1929
          %v1932 = vmul.f32 %v1785, %v1930
          %v1933 = vadd.f32 %v1931, %v1932
          %v1934 = vrot.slane %v1933, 4
          %v1935 = vadd.f32 %v1933, %v1934
          %v1936 = vrot.slane %v1935, 2
          %v1937 = vadd.f32 %v1935, %v1936
          %v1938 = vrot.slane %v1937, 1
          %v1939 = vadd.f32 %v1937, %v1938
          %v1940 = vmul.f32 %v1710, %v1929
          %v1941 = vmul.f32 %v1711, %v1930
          %v1942 = vlaneseq
          %v1943 = vshrl.u32 %v1942, 7
          %v1944 = vsub.s32 3, %v1943
          %v1945 = vrot.slane %v1726, %v1944
          %v1946 = vmul.f32 %v1792, %v1945
          %v1947 = vmul.f32 %v1796, %v1945
          %v1948 = vadd.f32 %v1940, %v1946
          %v1949 = vadd.f32 %v1941, %v1947
          %v1950 = vmul.f32 %v1800, %v1948
          %v1951 = vmul.f32 %v1804, %v1949
          %v1952 = vadd.f32 %v1950, %v1951
          %v1953 = vrot.slane %v1952, 4
          %v1954 = vadd.f32 %v1952, %v1953
          %v1955 = vrot.slane %v1954, 2
          %v1956 = vadd.f32 %v1954, %v1955
          %v1957 = vrot.slane %v1956, 1
          %v1958 = vadd.f32 %v1956, %v1957
          %v1959 = vmul.f32 %v1710, %v1948
          %v1960 = vmul.f32 %v1711, %v1949
          %v1961 = vlaneseq
          %v1962 = vshrl.u32 %v1961, 7
          %v1963 = vsub.s32 4, %v1962
          %v1964 = vrot.slane %v1726, %v1963
          %v1965 = vmul.f32 %v1811, %v1964
          %v1966 = vmul.f32 %v1815, %v1964
          %v1967 = vadd.f32 %v1959, %v1965
          %v1968 = vadd.f32 %v1960, %v1966
          %v1969 = vmul.f32 %v1819, %v1967
          %v1970 = vmul.f32 %v1823, %v1968
          %v1971 = vadd.f32 %v1969, %v1970
          %v1972 = vrot.slane %v1971, 4
          %v1973 = vadd.f32 %v1971, %v1972
          %v1974 = vrot.slane %v1973, 2
          %v1975 = vadd.f32 %v1973, %v1974
          %v1976 = vrot.slane %v1975, 1
          %v1977 = vadd.f32 %v1975, %v1976
          %v1978 = vmul.f32 %v1710, %v1967
          %v1979 = vmul.f32 %v1711, %v1968
          %v1980 = vlaneseq
          %v1981 = vshrl.u32 %v1980, 7
          %v1982 = vsub.s32 5, %v1981
          %v1983 = vrot.slane %v1726, %v1982
          %v1984 = vmul.f32 %v1830, %v1983
          %v1985 = vmul.f32 %v1834, %v1983
          %v1986 = vadd.f32 %v1978, %v1984
          %v1987 = vadd.f32 %v1979, %v1985
          %v1988 = vmul.f32 %v1838, %v1986
          %v1989 = vmul.f32 %v1842, %v1987
          %v1990 = vadd.f32 %v1988, %v1989
          %v1991 = vrot.slane %v1990, 4
          %v1992 = vadd.f32 %v1990, %v1991
          %v1993 = vrot.slane %v1992, 2
          %v1994 = vadd.f32 %v1992, %v1993
          %v1995 = vrot.slane %v1994, 1
          %v1996 = vadd.f32 %v1994, %v1995
          %v1997 = vmul.f32 %v1710, %v1986
          %v1998 = vmul.f32 %v1711, %v1987
          %v1999 = vlaneseq
          %v2000 = vshrl.u32 %v1999, 7
          %v2001 = vsub.s32 6, %v2000
          %v2002 = vrot.slane %v1726, %v2001
          %v2003 = vmul.f32 %v1849, %v2002
          %v2004 = vmul.f32 %v1853, %v2002
          %v2005 = vadd.f32 %v1997, %v2003
          %v2006 = vadd.f32 %v1998, %v2004
          %v2007 = vmul.f32 %v1857, %v2005
          %v2008 = vmul.f32 %v1861, %v2006
          %v2009 = vadd.f32 %v2007, %v2008
          %v2010 = vrot.slane %v2009, 4
          %v2011 = vadd.f32 %v2009, %v2010
          %v2012 = vrot.slane %v2011, 2
          %v2013 = vadd.f32 %v2011, %v2012
          %v2014 = vrot.slane %v2013, 1
          %v2015 = vadd.f32 %v2013, %v2014
          %v2016 = vmul.f32 %v1710, %v2005
          %v2017 = vmul.f32 %v1711, %v2006
          %v2018 = vlaneseq
          %v2019 = vshrl.u32 %v2018, 7
          %v2020 = vsub.s32 7, %v2019
          %v2021 = vrot.slane %v1726, %v2020
          %v2022 = vmul.f32 %v1868, %v2021
          %v2023 = vmul.f32 %v1872, %v2021
          %v2024 = vadd.f32 %v2016, %v2022
          %v2025 = vadd.f32 %v2017, %v2023
          %v2026 = vmul.f32 %v1876, %v2024
          %v2027 = vmul.f32 %v1880, %v2025
          %v2028 = vadd.f32 %v2026, %v2027
          %v2029 = vrot.slane %v2028, 4
          %v2030 = vadd.f32 %v2028, %v2029
          %v2031 = vrot.slane %v2030, 2
          %v2032 = vadd.f32 %v2030, %v2031
          %v2033 = vrot.slane %v2032, 1
          %v2034 = vadd.f32 %v2032, %v2033
          %2035 = vst [vmem:[#allocation5] sm:$0xff] %v2024
          %2036 = vst [vmem:[#allocation5 + $0x8] sm:$0xff] %v2025
          %vm2037 = vcmask 1040384
          %v2038 = vsel %vm2037, %v1901, %v1920
          %vm2039 = vcmask 1041408
          %v2040 = vsel %vm2039, %v2038, %v1939
          %vm2041 = vcmask 1042432
          %v2042 = vsel %vm2041, %v2040, %v1958
          %vm2043 = vcmask 1043456
          %v2044 = vsel %vm2043, %v2042, %v1977
          %vm2045 = vcmask 1044480
          %v2046 = vsel %vm2045, %v2044, %v1996
          %vm2047 = vcmask 1045504
          %v2048 = vsel %vm2047, %v2046, %v2015
          %vm2049 = vcmask 1046528
          %v2050 = vsel %vm2049, %v2048, %v2034
          %s2051 = scalar_lea.vmem [#allocation4], %s1718
          %2052 = vst [vmem:[%s2051] sm:$0xff] %v2050
        $region109: #{tpu_custom_call.1} parent=99 // loop_footer
          %s1717 = sadd.s32 1, %s1713
        $region110: #{tpu_custom_call.1} parent=99 // loop_footer_branch
          %1712 = sbr.rel target = $region106
        $region111: #{tpu_custom_call.1} parent=99 // loop_exit
          _
        %v2053 = vld [vmem:[#allocation4] sm:$0xff]
        %v2054 = vld [vmem:[#allocation4 + $0x8] sm:$0xff]
        %v2055 = vld [vmem:[#allocation4 + $0x10] sm:$0xff]
        %v2056 = vld [vmem:[#allocation4 + $0x18] sm:$0xff]
        %v2057 = vld [vmem:[#allocation4 + $0x20] sm:$0xff]
        %v2058 = vld [vmem:[#allocation4 + $0x28] sm:$0xff]
        %v2059 = vld [vmem:[#allocation4 + $0x30] sm:$0xff]
        %v2060 = vld [vmem:[#allocation4 + $0x38] sm:$0xff]
        %v2061 = vld [vmem:[%s14] sm:$0x1]
        %v2063 = vlaneseq
        %v2064 = vshrl.u32 %v2063, 7
        %v2065 = vsub.s32 0, %v2064
        %v2066 = vrot.slane %v2061, %v2065
        %v2068 = vmul.f32 %v2066, %v1553
        %v2069 = vmul.f32 %v2066, %v1554
        %v2070 = vmul.f32 %v2066, %v1555
        %v2071 = vmul.f32 %v2066, %v1556
        %v2072 = vmul.f32 %v2066, %v1557
        %v2073 = vmul.f32 %v2066, %v1558
        %v2074 = vmul.f32 %v2066, %v1559
        %v2075 = vmul.f32 %v2066, %v1560
        %v2076 = vadd.f32 %v2053, %v2068
        %v2077 = vadd.f32 %v2054, %v2069
        %v2078 = vadd.f32 %v2055, %v2070
        %v2079 = vadd.f32 %v2056, %v2071
        %v2080 = vadd.f32 %v2057, %v2072
        %v2081 = vadd.f32 %v2058, %v2073
        %v2082 = vadd.f32 %v2059, %v2074
        %v2083 = vadd.f32 %v2060, %v2075
        %v2084 = vpack.c.bf16 %v2077, %v2076
        %v2085 = vpack.c.bf16 %v2079, %v2078
        %v2086 = vpack.c.bf16 %v2081, %v2080
        %v2087 = vpack.c.bf16 %v2083, %v2082
        %v2088 = vld [vmem:[%s16] sm:$0xf]
        %v2089 = vld [vmem:[%s16 + $0x4] sm:$0xf]
        %v2090 = vld [vmem:[%s16 + $0x8] sm:$0xf]
        %v2091 = vld [vmem:[%s16 + $0xc] sm:$0xf]
        %v2092 = vld [vmem:[%s16 + $0x10] sm:$0xf]
        %v2093 = vld [vmem:[%s16 + $0x14] sm:$0xf]
        %v2094 = vld [vmem:[%s16 + $0x18] sm:$0xf]
        %v2095 = vld [vmem:[%s16 + $0x1c] sm:$0xf]
        %v2096 = vld [vmem:[%s16 + $0x20] sm:$0xf]
        %v2097 = vld [vmem:[%s16 + $0x24] sm:$0xf]
        %v2098 = vld [vmem:[%s16 + $0x28] sm:$0xf]
        %v2099 = vld [vmem:[%s16 + $0x2c] sm:$0xf]
        %v2100 = vld [vmem:[%s16 + $0x30] sm:$0xf]
        %v2101 = vld [vmem:[%s16 + $0x34] sm:$0xf]
        %v2102 = vld [vmem:[%s16 + $0x38] sm:$0xf]
        %v2103 = vld [vmem:[%s16 + $0x3c] sm:$0xf]
        %v2104 = vld [vmem:[%s17] sm:$0x1]
        %v2106 = vlaneseq
        %v2107 = vshrl.u32 %v2106, 7
        %v2108 = vsub.s32 0, %v2107
        %v2109 = vrot.slane %v2104, %v2108
        %v2127 = vunpack.c.l.b16 %v2088
        %v2128 = vunpack.c.l.b16 %v2089
        %v2129 = vunpack.c.l.b16 %v2090
        %v2130 = vunpack.c.l.b16 %v2091
        %v2131 = vunpack.c.l.b16 %v2092
        %v2132 = vunpack.c.l.b16 %v2093
        %v2133 = vunpack.c.l.b16 %v2094
        %v2134 = vunpack.c.l.b16 %v2095
        %v2135 = vunpack.c.l.b16 %v2096
        %v2136 = vunpack.c.l.b16 %v2097
        %v2137 = vunpack.c.l.b16 %v2098
        %v2138 = vunpack.c.l.b16 %v2099
        %v2139 = vunpack.c.l.b16 %v2100
        %v2140 = vunpack.c.l.b16 %v2101
        %v2141 = vunpack.c.l.b16 %v2102
        %v2142 = vunpack.c.l.b16 %v2103
        %v2143 = vpack.c.b16 %v2128, %v2127
        %v2144 = vpack.c.b16 %v2130, %v2129
        %v2145 = vpack.c.b16 %v2132, %v2131
        %v2146 = vpack.c.b16 %v2134, %v2133
        %v2147 = vpack.c.b16 %v2136, %v2135
        %v2148 = vpack.c.b16 %v2138, %v2137
        %v2149 = vpack.c.b16 %v2140, %v2139
        %v2150 = vpack.c.b16 %v2142, %v2141
        %2159 = vmatprep.subr.bf16.mxu0 0
        %2160 = vmatpush1.bf16.msra.mxu0 %v2150
        %2161 = vmatprep.subr.bf16.mxu0 0
        %2162 = vmatpush1.bf16.msra.mxu0 %v2149
        %2163 = vmatprep.subr.bf16.mxu0 0
        %2164 = vmatpush1.bf16.msra.mxu0 %v2148
        %2165 = vmatprep.subr.bf16.mxu0 0
        %2166 = vmatpush1.bf16.msra.mxu0 %v2147
        %2167 = vmatprep.subr.bf16.mxu0 0
        %2168 = vmatpush1.bf16.msra.mxu0 %v2146
        %2169 = vmatprep.subr.bf16.mxu0 0
        %2170 = vmatpush1.bf16.msra.mxu0 %v2145
        %2171 = vmatprep.subr.bf16.mxu0 0
        %2172 = vmatpush1.bf16.msra.mxu0 %v2144
        %2173 = vmatprep.subr.bf16.mxu0 0
        %2174 = vmatpush1.bf16.msra.mxu0 %v2143
        %2175 = vmatprep.subr.bf16.mxu0 0
        %2176 = vmatpush2.bf16.msra.mxu0 0
        %2177 = vmatprep.subr.bf16.mxu0 0
        %2178 = vmatpush2.bf16.msra.mxu0 0
        %2179 = vmatprep.subr.bf16.mxu0 0
        %2180 = vmatpush2.bf16.msra.mxu0 0
        %2181 = vmatprep.subr.bf16.mxu0 0
        %2182 = vmatpush2.bf16.msra.mxu0 0
        %2183 = vmatprep.subr.bf16.mxu0 0
        %2184 = vmatpush2.bf16.msra.mxu0 0
        %2185 = vmatprep.subr.bf16.mxu0 0
        %2186 = vmatpush2.bf16.msra.mxu0 0
        %2187 = vmatprep.subr.bf16.mxu0 0
        %2188 = vmatpush2.bf16.msra.mxu0 0
        %2189 = vmatprep.subr.bf16.mxu0 0
        %2190 = vmatpush2.bf16.msra.mxu0 0
        %2191 = vmatprep.mubr.bf16.mxu0 0
        %2192 = vmatmul.mubr.bf16.gmra.mxu0 %v2084
        %v2193 = vpop.f32.mrf.mxu0
        %v2194 = vadd.f32 %v2109, %v2193
        %v2195 = vpop.f32.mrf.mxu0
        %v2196 = vpop.f32.mrf.mxu0
        %v2197 = vadd.f32 %v2109, %v2196
        %v2198 = vpop.f32.mrf.mxu0
        %2199 = vmatprep.mubr.bf16.mxu0 0
        %2200 = vmatmul.mubr.bf16.gmra.mxu0 %v2085
        %v2201 = vpop.f32.mrf.mxu0
        %v2202 = vadd.f32 %v2109, %v2201
        %v2203 = vpop.f32.mrf.mxu0
        %v2204 = vpop.f32.mrf.mxu0
        %v2205 = vadd.f32 %v2109, %v2204
        %v2206 = vpop.f32.mrf.mxu0
        %2207 = vmatprep.mubr.bf16.mxu0 0
        %2208 = vmatmul.mubr.bf16.gmra.mxu0 %v2086
        %v2209 = vpop.f32.mrf.mxu0
        %v2210 = vadd.f32 %v2109, %v2209
        %v2211 = vpop.f32.mrf.mxu0
        %v2212 = vpop.f32.mrf.mxu0
        %v2213 = vadd.f32 %v2109, %v2212
        %v2214 = vpop.f32.mrf.mxu0
        %2215 = vmatprep.mubr.bf16.mxu0 0
        %2216 = vmatmul.mubr.bf16.gmra.mxu0 %v2087
        %v2217 = vpop.f32.mrf.mxu0
        %v2218 = vadd.f32 %v2109, %v2217
        %v2219 = vpop.f32.mrf.mxu0
        %v2220 = vpop.f32.mrf.mxu0
        %v2221 = vadd.f32 %v2109, %v2220
        %v2222 = vpop.f32.mrf.mxu0
        %2223 = vdwg.mxu0
        %v2224 = vadd.f32 %v2194, %v1120
        %v2225 = vadd.f32 %v2197, %v1121
        %v2226 = vadd.f32 %v2202, %v1122
        %v2227 = vadd.f32 %v2205, %v1123
        %v2228 = vadd.f32 %v2210, %v1124
        %v2229 = vadd.f32 %v2213, %v1125
        %v2230 = vadd.f32 %v2218, %v1126
        %v2231 = vadd.f32 %v2221, %v1127
        %v2232 = vsel %vm1054, %v2224, 0.0
        %2233 = vadd.xlane.f32.xlu0 %v2232
        %v2234 = vpop.xlane.xlu0 %2233
        %v2235 = vsel %vm1054, %v2225, 0.0
        %2236 = vadd.xlane.f32.xlu0 %v2235
        %v2237 = vpop.xlane.xlu0 %2236
        %v2238 = vsel %vm1054, %v2226, 0.0
        %2239 = vadd.xlane.f32.xlu0 %v2238
        %v2240 = vpop.xlane.xlu0 %2239
        %v2241 = vsel %vm1054, %v2227, 0.0
        %2242 = vadd.xlane.f32.xlu0 %v2241
        %v2243 = vpop.xlane.xlu0 %2242
        %v2244 = vsel %vm1054, %v2228, 0.0
        %2245 = vadd.xlane.f32.xlu0 %v2244
        %v2246 = vpop.xlane.xlu0 %2245
        %v2247 = vsel %vm1054, %v2229, 0.0
        %2248 = vadd.xlane.f32.xlu0 %v2247
        %v2249 = vpop.xlane.xlu0 %2248
        %v2250 = vsel %vm1054, %v2230, 0.0
        %2251 = vadd.xlane.f32.xlu0 %v2250
        %v2252 = vpop.xlane.xlu0 %2251
        %v2253 = vsel %vm1054, %v2231, 0.0
        %2254 = vadd.xlane.f32.xlu0 %v2253
        %v2255 = vpop.xlane.xlu0 %2254
        %v2256 = vrcp.pop 64.0
        %v2257 = vmul.f32 %v2234, %v2256
        %v2258 = vmul.f32 %v2237, %v2256
        %v2259 = vmul.f32 %v2240, %v2256
        %v2260 = vmul.f32 %v2243, %v2256
        %v2261 = vmul.f32 %v2246, %v2256
        %v2262 = vmul.f32 %v2249, %v2256
        %v2263 = vmul.f32 %v2252, %v2256
        %v2264 = vmul.f32 %v2255, %v2256
        %v2265 = vsub.f32 %v2224, %v2257
        %v2266 = vsub.f32 %v2225, %v2258
        %v2267 = vsub.f32 %v2226, %v2259
        %v2268 = vsub.f32 %v2227, %v2260
        %v2269 = vsub.f32 %v2228, %v2261
        %v2270 = vsub.f32 %v2229, %v2262
        %v2271 = vsub.f32 %v2230, %v2263
        %v2272 = vsub.f32 %v2231, %v2264
        %v2273 = vmul.f32 %v2265, %v2265
        %v2274 = vmul.f32 %v2266, %v2266
        %v2275 = vmul.f32 %v2267, %v2267
        %v2276 = vmul.f32 %v2268, %v2268
        %v2277 = vmul.f32 %v2269, %v2269
        %v2278 = vmul.f32 %v2270, %v2270
        %v2279 = vmul.f32 %v2271, %v2271
        %v2280 = vmul.f32 %v2272, %v2272
        %v2281 = vsel %vm1054, %v2273, 0.0
        %2282 = vadd.xlane.f32.xlu0 %v2281
        %v2283 = vpop.xlane.xlu0 %2282
        %v2284 = vsel %vm1054, %v2274, 0.0
        %2285 = vadd.xlane.f32.xlu0 %v2284
        %v2286 = vpop.xlane.xlu0 %2285
        %v2287 = vsel %vm1054, %v2275, 0.0
        %2288 = vadd.xlane.f32.xlu0 %v2287
        %v2289 = vpop.xlane.xlu0 %2288
        %v2290 = vsel %vm1054, %v2276, 0.0
        %2291 = vadd.xlane.f32.xlu0 %v2290
        %v2292 = vpop.xlane.xlu0 %2291
        %v2293 = vsel %vm1054, %v2277, 0.0
        %2294 = vadd.xlane.f32.xlu0 %v2293
        %v2295 = vpop.xlane.xlu0 %2294
        %v2296 = vsel %vm1054, %v2278, 0.0
        %2297 = vadd.xlane.f32.xlu0 %v2296
        %v2298 = vpop.xlane.xlu0 %2297
        %v2299 = vsel %vm1054, %v2279, 0.0
        %2300 = vadd.xlane.f32.xlu0 %v2299
        %v2301 = vpop.xlane.xlu0 %2300
        %v2302 = vsel %vm1054, %v2280, 0.0
        %2303 = vadd.xlane.f32.xlu0 %v2302
        %v2304 = vpop.xlane.xlu0 %2303
        %v2305 = vmul.f32 %v2283, %v2256
        %v2306 = vmul.f32 %v2286, %v2256
        %v2307 = vmul.f32 %v2289, %v2256
        %v2308 = vmul.f32 %v2292, %v2256
        %v2309 = vmul.f32 %v2295, %v2256
        %v2310 = vmul.f32 %v2298, %v2256
        %v2311 = vmul.f32 %v2301, %v2256
        %v2312 = vmul.f32 %v2304, %v2256
        %v2313 = vadd.f32 %v2305, 1e-05
        %v2314 = vadd.f32 %v2306, 1e-05
        %v2315 = vadd.f32 %v2307, 1e-05
        %v2316 = vadd.f32 %v2308, 1e-05
        %v2317 = vadd.f32 %v2309, 1e-05
        %v2318 = vadd.f32 %v2310, 1e-05
        %v2319 = vadd.f32 %v2311, 1e-05
        %v2320 = vadd.f32 %v2312, 1e-05
        %v2321 = vrsqrt.pop %v2313
        %v2322 = vrsqrt.pop %v2314
        %v2323 = vrsqrt.pop %v2315
        %v2324 = vrsqrt.pop %v2316
        %v2325 = vrsqrt.pop %v2317
        %v2326 = vrsqrt.pop %v2318
        %v2327 = vrsqrt.pop %v2319
        %v2328 = vrsqrt.pop %v2320
        %v2329 = vmul.f32 %v2265, %v2321
        %v2330 = vmul.f32 %v2266, %v2322
        %v2331 = vmul.f32 %v2267, %v2323
        %v2332 = vmul.f32 %v2268, %v2324
        %v2333 = vmul.f32 %v2269, %v2325
        %v2334 = vmul.f32 %v2270, %v2326
        %v2335 = vmul.f32 %v2271, %v2327
        %v2336 = vmul.f32 %v2272, %v2328
        %v2337 = vld [vmem:[%s18] sm:$0x1]
        %v2339 = vlaneseq
        %v2340 = vshrl.u32 %v2339, 7
        %v2341 = vsub.s32 0, %v2340
        %v2342 = vrot.slane %v2337, %v2341
        %v2344 = vmul.f32 %v2329, %v2342
        %v2345 = vmul.f32 %v2330, %v2342
        %v2346 = vmul.f32 %v2331, %v2342
        %v2347 = vmul.f32 %v2332, %v2342
        %v2348 = vmul.f32 %v2333, %v2342
        %v2349 = vmul.f32 %v2334, %v2342
        %v2350 = vmul.f32 %v2335, %v2342
        %v2351 = vmul.f32 %v2336, %v2342
        %v2352 = vld [vmem:[%s19] sm:$0x1]
        %v2354 = vlaneseq
        %v2355 = vshrl.u32 %v2354, 7
        %v2356 = vsub.s32 0, %v2355
        %v2357 = vrot.slane %v2352, %v2356
        %v2359 = vadd.f32 %v2344, %v2357
        %v2360 = vadd.f32 %v2345, %v2357
        %v2361 = vadd.f32 %v2346, %v2357
        %v2362 = vadd.f32 %v2347, %v2357
        %v2363 = vadd.f32 %v2348, %v2357
        %v2364 = vadd.f32 %v2349, %v2357
        %v2365 = vadd.f32 %v2350, %v2357
        %v2366 = vadd.f32 %v2351, %v2357
        %v2367 = vpack.c.bf16 %v2360, %v2359
        %v2368 = vpack.c.bf16 %v2362, %v2361
        %v2369 = vpack.c.bf16 %v2364, %v2363
        %v2370 = vpack.c.bf16 %v2366, %v2365
        %v2375 = vunpack.c.l.b16 %v2367
        %v2376 = vunpack.c.h.b16 %v2367
        %v2377 = vunpack.c.l.b16 %v2368
        %v2378 = vunpack.c.h.b16 %v2368
        %v2379 = vunpack.c.l.b16 %v2369
        %v2380 = vunpack.c.h.b16 %v2369
        %v2381 = vunpack.c.l.b16 %v2370
        %v2382 = vunpack.c.h.b16 %v2370
        %v2383 = vpack.c.b16 %v2375, %v2375
        %v2384 = vpack.c.b16 %v2376, %v2376
        %v2385 = vpack.c.b16 %v2377, %v2377
        %v2386 = vpack.c.b16 %v2378, %v2378
        %v2387 = vpack.c.b16 %v2379, %v2379
        %v2388 = vpack.c.b16 %v2380, %v2380
        %v2389 = vpack.c.b16 %v2381, %v2381
        %v2390 = vpack.c.b16 %v2382, %v2382
        %vm2399 = vcmask 519168
        %2400 = vst.msk [vmem:[%s844] sm:$0xf] %vm2399, %v2383
        %2401 = vst.msk [vmem:[%s844 + $0x4] sm:$0xf] %vm2399, %v2384
        %2402 = vst.msk [vmem:[%s844 + $0x8] sm:$0xf] %vm2399, %v2385
        %2403 = vst.msk [vmem:[%s844 + $0xc] sm:$0xf] %vm2399, %v2386
        %2404 = vst.msk [vmem:[%s844 + $0x10] sm:$0xf] %vm2399, %v2387
        %2405 = vst.msk [vmem:[%s844 + $0x14] sm:$0xf] %vm2399, %v2388
        %2406 = vst.msk [vmem:[%s844 + $0x18] sm:$0xf] %vm2399, %v2389
        %2407 = vst.msk [vmem:[%s844 + $0x1c] sm:$0xf] %vm2399, %v2390
        %vm2408 = vcmp.gt.f32.partialorder %v2359, 0.0
        %vm2409 = vcmp.gt.f32.partialorder %v2360, 0.0
        %vm2410 = vcmp.gt.f32.partialorder %v2361, 0.0
        %vm2411 = vcmp.gt.f32.partialorder %v2362, 0.0
        %vm2412 = vcmp.gt.f32.partialorder %v2363, 0.0
        %vm2413 = vcmp.gt.f32.partialorder %v2364, 0.0
        %vm2414 = vcmp.gt.f32.partialorder %v2365, 0.0
        %vm2415 = vcmp.gt.f32.partialorder %v2366, 0.0
        %v2416 = vsel %vm2408, 1, 0
        %v2417 = vsel %vm2409, 1, 0
        %v2418 = vsel %vm2410, 1, 0
        %v2419 = vsel %vm2411, 1, 0
        %v2420 = vsel %vm2412, 1, 0
        %v2421 = vsel %vm2413, 1, 0
        %v2422 = vsel %vm2414, 1, 0
        %v2423 = vsel %vm2415, 1, 0
        %v2424 = vcvt.s32.f32 %v2416
        %v2425 = vcvt.s32.f32 %v2417
        %v2426 = vcvt.s32.f32 %v2418
        %v2427 = vcvt.s32.f32 %v2419
        %v2428 = vcvt.s32.f32 %v2420
        %v2429 = vcvt.s32.f32 %v2421
        %v2430 = vcvt.s32.f32 %v2422
        %v2431 = vcvt.s32.f32 %v2423
        %2432 = vst.msk [vmem:[%s854] sm:$0xff] %vm1054, %v2424
        %2433 = vst.msk [vmem:[%s854 + $0x8] sm:$0xff] %vm1054, %v2425
        %2434 = vst.msk [vmem:[%s854 + $0x10] sm:$0xff] %vm1054, %v2426
        %2435 = vst.msk [vmem:[%s854 + $0x18] sm:$0xff] %vm1054, %v2427
        %2436 = vst.msk [vmem:[%s854 + $0x20] sm:$0xff] %vm1054, %v2428
        %2437 = vst.msk [vmem:[%s854 + $0x28] sm:$0xff] %vm1054, %v2429
        %2438 = vst.msk [vmem:[%s854 + $0x30] sm:$0xff] %vm1054, %v2430
        %2439 = vst.msk [vmem:[%s854 + $0x38] sm:$0xff] %vm1054, %v2431
        %v2440 = vsel %vm1054, %v2359, -inf
        %v2441 = vsel %vm1054, %v2360, -inf
        %v2442 = vsel %vm1054, %v2361, -inf
        %v2443 = vsel %vm1054, %v2362, -inf
        %v2444 = vsel %vm1054, %v2363, -inf
        %v2445 = vmax.f32 %v2440, %v2444
        %v2446 = vsel %vm1054, %v2364, -inf
        %v2447 = vmax.f32 %v2441, %v2446
        %v2448 = vsel %vm1054, %v2365, -inf
        %v2449 = vmax.f32 %v2442, %v2448
        %v2450 = vsel %vm1054, %v2366, -inf
        %v2451 = vmax.f32 %v2443, %v2450
        %v2452 = vmax.f32 %v2445, %v2447
        %v2453 = vmax.f32 %v2449, %v2451
        %v2454 = vmax.f32 %v2452, %v2453
        %v2455 = vrot.slane %v2454, 4
        %v2456 = vmax.f32 %v2454, %v2455
        %v2457 = vrot.slane %v2456, 2
        %v2458 = vmax.f32 %v2456, %v2457
        %v2459 = vrot.slane %v2458, 1
        %v2460 = vmax.f32 %v2458, %v2459
        // Predicated region
        $region112: #{tpu_custom_call.1} parent=99 // pred_check
          %p2461 = pneg %p857
        $region113: #{tpu_custom_call.1} parent=99 // pred_check_branch
          %2463 = sbr.rel (%p2461) target = $region115
        $region114: #{tpu_custom_call.1} parent=99 // pred_region
          %vm2464 = vcmask 516096
          %2465 = vst.msk [vmem:[%s805] sm:$0x1] %vm2464, %v2460
        $region115: #{tpu_custom_call.1} parent=99 // pred_fallthru
          _
        %p2466 = scmp.gt.s32.totalorder %s44, 0
        // Predicated region
        $region116: #{tpu_custom_call.1} parent=99 // pred_check
          %p2467 = pneg %p2466
        $region117: #{tpu_custom_call.1} parent=99 // pred_check_branch
          %2469 = sbr.rel (%p2467) target = $region119
        $region118: #{tpu_custom_call.1} parent=99 // pred_region
          %v2470 = vld [vmem:[%s805] sm:$0x1]
          %v2471 = vmax.f32 %v2470, %v2460
          %vm2472 = vcmask 516096
          %2473 = vst.msk [vmem:[%s805] sm:$0x1] %vm2472, %v2471
        $region119: #{tpu_custom_call.1} parent=99 // pred_fallthru
          _
        %s2474 = smul.u32 8, %s44
        %p2475 = scmp.lt.s32.totalorder %s43, 1
        %s2476 = scalar_select %p2475, %s43, 1
        %p2477 = scmp.lt.s32.totalorder %s2474, 15
        %s2478 = scalar_select %p2477, %s2474, 15
        %s2479 = smul.addr %s2476, 16
        %s2480 = sadd.s32 %s2478, %s2479
        %s2481 = smul.addr %s2480, 8
        %s2482 = scalar_lea.vmem %s20, %s2481
        %s2483 = smul.u32 8, %s44
        %p2484 = scmp.lt.s32.totalorder %s43, 1
        %s2485 = scalar_select %p2484, %s43, 1
        %p2486 = scmp.lt.s32.totalorder %s2483, 15
        %s2487 = scalar_select %p2486, %s2483, 15
        %s2488 = smul.addr %s2485, 16
        %s2489 = sadd.s32 %s2487, %s2488
        %s2490 = smul.addr %s2489, 8
        %s2491 = scalar_lea.vmem %s21, %s2490
        %s2492 = smul.u32 8, %s44
        %p2493 = scmp.lt.s32.totalorder %s43, 1
        %s2494 = scalar_select %p2493, %s43, 1
        %p2495 = scmp.lt.s32.totalorder %s2492, 15
        %s2496 = scalar_select %p2495, %s2492, 15
        %s2497 = smul.addr %s2494, 16
        %s2498 = sadd.s32 %s2496, %s2497
        %s2499 = smul.addr %s2498, 4
        %s2500 = scalar_lea.vmem %s22, %s2499
        %s2501 = smul.u32 8, %s44
        %p2502 = scmp.lt.s32.totalorder %s43, 1
        %s2503 = scalar_select %p2502, %s43, 1
        %p2504 = scmp.lt.s32.totalorder %s2501, 15
        %s2505 = scalar_select %p2504, %s2501, 15
        %s2506 = smul.addr %s2503, 16
        %s2507 = sadd.s32 %s2505, %s2506
        %s2508 = smul.addr %s2507, 8
        %s2509 = scalar_lea.vmem %s23, %s2508
        %s2510 = sand.u32 %s598, 1
        %s2511 = scalar_lea.sflag [#allocation8], %s2510
        %s2512 = sand.u32 %s598, 1
        %s2513 = scalar_lea.vmem [#allocation7], %s2512
        // Predicated region
        $region120: #{tpu_custom_call.1} parent=99 // pred_check
          %p2514 = pneg %p498
        $region121: #{tpu_custom_call.1} parent=99 // pred_check_branch
          %2516 = sbr.rel (%p2514) target = $region123
        $region122: #{tpu_custom_call.1} parent=99 // pred_region
          %s2517 = smul.u32 8, %s44
        $region123: #{tpu_custom_call.1} parent=99 // pred_fallthru
          _
        // Predicated region
        $region124: #{tpu_custom_call.1} parent=99 // pred_check
          %p2518 = pneg %p526
        $region125: #{tpu_custom_call.1} parent=99 // pred_check_branch
          %2520 = sbr.rel (%p2518) target = $region127
        $region126: #{tpu_custom_call.1} parent=99 // pred_region
          %s2521 = smul.u32 8, %s44
        $region127: #{tpu_custom_call.1} parent=99 // pred_fallthru
          _
        // Predicated region
        $region128: #{tpu_custom_call.1} parent=99 // pred_check
          %p2522 = pneg %p554
        $region129: #{tpu_custom_call.1} parent=99 // pred_check_branch
          %2524 = sbr.rel (%p2522) target = $region131
        $region130: #{tpu_custom_call.1} parent=99 // pred_region
          %s2525 = smul.u32 8, %s44
        $region131: #{tpu_custom_call.1} parent=99 // pred_fallthru
          _
        // Predicated region
        $region132: #{tpu_custom_call.1} parent=99 // pred_check
          %p2526 = pneg %p582
        $region133: #{tpu_custom_call.1} parent=99 // pred_check_branch
          %2528 = sbr.rel (%p2526) target = $region135
        $region134: #{tpu_custom_call.1} parent=99 // pred_region
          %s2529 = smul.u32 8, %s44
        $region135: #{tpu_custom_call.1} parent=99 // pred_fallthru
          _
        // Predicated region
        $region136: #{tpu_custom_call.1} parent=99 // pred_check
          %p2530 = pneg %p608
        $region137: #{tpu_custom_call.1} parent=99 // pred_check_branch
          %2532 = sbr.rel (%p2530) target = $region139
        $region138: #{tpu_custom_call.1} parent=99 // pred_region
          %s2534 = ssub.s32 16, 16
          %2535 = vsyncadd %s2511, %s2534
          %s2536 = smul.addr %s43, 16
          %s2537 = scalar_lea.hbm %s24, %s2536
          %s2539 = sshll.u32 %s2513, 4
          %s2540 = int_to_ptr.vmem [resolvable:$true] %s2539
          %2542 = dma.vmem_to_hbm [thread:$0]  %s2540, 16, %s2537, %s2511
        $region139: #{tpu_custom_call.1} parent=99 // pred_fallthru
          _
      $region100: #{tpu_custom_call.1} parent=5 // pred_fallthru
        _
      %p2543 = scmp.le.s32.totalorder 2, %s34
      // Predicated region
      $region140: #{tpu_custom_call.1} parent=5 // pred_check
        %p2544 = pneg %p2543
      $region141: #{tpu_custom_call.1} parent=5 // pred_check_branch
        %2546 = sbr.rel (%p2544) target = $region143
      $region142: #{tpu_custom_call.1} parent=5 // pred_region
        %s2547 = ssub.s32 %s34, 2
        // Predicated region
        $region144: #{tpu_custom_call.1} parent=142 // pred_check
          %p2548 = pneg %p504
        $region145: #{tpu_custom_call.1} parent=142 // pred_check_branch
          %2550 = sbr.rel (%p2548) target = $region147
        $region146: #{tpu_custom_call.1} parent=142 // pred_region
          %s2551 = smul.u32 8, %s46
          %p2552 = scmp.lt.s32.totalorder %s45, 1
          %s2553 = scalar_select %p2552, %s45, 1
          %p2554 = scmp.lt.s32.totalorder %s2551, 15
          %s2555 = scalar_select %p2554, %s2551, 15
          %s2556 = smul.addr %s2553, 16
          %s2557 = sadd.s32 %s2555, %s2556
          %s2558 = smul.addr %s2557, 8
          %s2559 = scalar_lea.vmem %s20, %s2558
        $region147: #{tpu_custom_call.1} parent=142 // pred_fallthru
          _
        // Predicated region
        $region148: #{tpu_custom_call.1} parent=142 // pred_check
          %p2560 = pneg %p532
        $region149: #{tpu_custom_call.1} parent=142 // pred_check_branch
          %2562 = sbr.rel (%p2560) target = $region151
        $region150: #{tpu_custom_call.1} parent=142 // pred_region
          %s2563 = smul.u32 8, %s46
          %p2564 = scmp.lt.s32.totalorder %s45, 1
          %s2565 = scalar_select %p2564, %s45, 1
          %p2566 = scmp.lt.s32.totalorder %s2563, 15
          %s2567 = scalar_select %p2566, %s2563, 15
          %s2568 = smul.addr %s2565, 16
          %s2569 = sadd.s32 %s2567, %s2568
          %s2570 = smul.addr %s2569, 8
          %s2571 = scalar_lea.vmem %s21, %s2570
        $region151: #{tpu_custom_call.1} parent=142 // pred_fallthru
          _
        // Predicated region
        $region152: #{tpu_custom_call.1} parent=142 // pred_check
          %p2572 = pneg %p560
        $region153: #{tpu_custom_call.1} parent=142 // pred_check_branch
          %2574 = sbr.rel (%p2572) target = $region155
        $region154: #{tpu_custom_call.1} parent=142 // pred_region
          %s2575 = smul.u32 8, %s46
          %p2576 = scmp.lt.s32.totalorder %s45, 1
          %s2577 = scalar_select %p2576, %s45, 1
          %p2578 = scmp.lt.s32.totalorder %s2575, 15
          %s2579 = scalar_select %p2578, %s2575, 15
          %s2580 = smul.addr %s2577, 16
          %s2581 = sadd.s32 %s2579, %s2580
          %s2582 = smul.addr %s2581, 4
          %s2583 = scalar_lea.vmem %s22, %s2582
        $region155: #{tpu_custom_call.1} parent=142 // pred_fallthru
          _
        // Predicated region
        $region156: #{tpu_custom_call.1} parent=142 // pred_check
          %p2584 = pneg %p588
        $region157: #{tpu_custom_call.1} parent=142 // pred_check_branch
          %2586 = sbr.rel (%p2584) target = $region159
        $region158: #{tpu_custom_call.1} parent=142 // pred_region
          %s2587 = smul.u32 8, %s46
          %p2588 = scmp.lt.s32.totalorder %s45, 1
          %s2589 = scalar_select %p2588, %s45, 1
          %p2590 = scmp.lt.s32.totalorder %s2587, 15
          %s2591 = scalar_select %p2590, %s2587, 15
          %s2592 = smul.addr %s2589, 16
          %s2593 = sadd.s32 %s2591, %s2592
          %s2594 = smul.addr %s2593, 8
          %s2595 = scalar_lea.vmem %s23, %s2594
        $region159: #{tpu_custom_call.1} parent=142 // pred_fallthru
          _
        // Predicated region
        $region160: #{tpu_custom_call.1} parent=142 // pred_check
          %p2596 = pneg %p614
        $region161: #{tpu_custom_call.1} parent=142 // pred_check_branch
          %2598 = sbr.rel (%p2596) target = $region163
        $region162: #{tpu_custom_call.1} parent=142 // pred_region
          %s2599 = sand.u32 %s599, 1
          %s2600 = scalar_lea.sflag [#allocation8], %s2599
          %s2601 = sand.u32 %s599, 1
          %s2602 = scalar_lea.vmem [#allocation7], %s2601
          %2603 = dma.done %s2600, 16
        $region163: #{tpu_custom_call.1} parent=142 // pred_fallthru
          _
      $region143: #{tpu_custom_call.1} parent=5 // pred_fallthru
        _
    $region6: #{tpu_custom_call.1} parent=1 // loop_footer
      %s38 = sadd.s32 1, %s34
    $region7: #{tpu_custom_call.1} parent=1 // loop_footer_branch
      %33 = sbr.rel target = $region3
    $region8: #{tpu_custom_call.1} parent=1 // loop_exit
      _
    %2604 = vsyncpa [#allocation8], 1
    %s2605 = scalar_lea.sflag [#allocation8], 1
    %2606 = vsyncpa %s2605, 1

</llo_original>
